<compile_context>
chip_gen: v7x
topology: tpu7x:2x2x1
jax: 0.10.0
libtpu: 0.0.40
codegen_flags: <defaults>
</compile_context>

<pallas_src>
import functools
import math

import jax
import jax.numpy as jnp
import numpy as np
from jax.experimental import pallas as pl

# ---- model hyper-params (small stand-in for bert-base) ----
H = 128          # hidden size (stand-in for 768)
NH = 4           # attention heads
DH = H // NH
FFN = 512        # intermediate size
NLAYERS = 2
VOCAB = 96
MAX_POS = 32
S = 16           # padded sub-word sequence length
LN_EPS = 1e-12
DROPOUT_P = 0.5
PAD_ID, CLS_ID, SEP_ID = 0, 1, 2


def _gelu(x):
    return 0.5 * x * (1.0 + jnp.tanh(0.7978845608028654 * (x + 0.044715 * x * x * x)))


def _ln(x, g, b, eps=LN_EPS):
    mu = jnp.mean(x, axis=-1, keepdims=True)
    var = jnp.mean(jnp.square(x - mu), axis=-1, keepdims=True)
    return (x - mu) * jax.lax.rsqrt(var + eps) * g + b


def _bdot(a, b):
    # bf16 operands (MXU native), fp32 accumulation
    return jnp.dot(a.astype(jnp.bfloat16), b.astype(jnp.bfloat16),
                   preferred_element_type=jnp.float32)


# ---------------- the single fused Pallas kernel ----------------

def _bert_fused_kernel(x0_ref, madd_ref, sel_ref, u_ref,
                       embg_ref, embb_ref,
                       wqkv_ref, bqkv_ref, wo_ref, bo_ref, ln1g_ref, ln1b_ref,
                       w1_ref, b1_ref, w2_ref, b2_ref, ln2g_ref, ln2b_ref,
                       pre_ref, drop_ref, *, batch, seq, rate):
    scale = 1.0 / math.sqrt(DH)

    # embedding LayerNorm fused into the prologue
    x = _ln(x0_ref[...], embg_ref[...], embb_ref[...])            # (B*S, H) fp32
    madd = madd_ref[...]                                          # (B, S) additive mask

    for li in range(NLAYERS):
        # ---- self-attention block: all batches & heads in one invocation ----
        qkv = _bdot(x, wqkv_ref[li]) + bqkv_ref[li]               # (B*S, 3H) lane-dense
        ctx_rows = []
        for b in range(batch):
            r0 = b * seq
            m_b = madd[b:b + 1, :]                                # (1, S)
            heads = []
            for hh in range(NH):
                c = hh * DH
                q = qkv[r0:r0 + seq, c:c + DH]                    # (S, DH) static lane slice
                k = qkv[r0:r0 + seq, H + c:H + c + DH]
                v = qkv[r0:r0 + seq, 2 * H + c:2 * H + c + DH]
                s = jax.lax.dot_general(
                    q.astype(jnp.bfloat16), k.astype(jnp.bfloat16),
                    (((1,), (1,)), ((), ())),
                    preferred_element_type=jnp.float32) * scale
                p = jax.nn.softmax(s + m_b, axis=-1)
                heads.append(_bdot(p, v))                         # (S, DH)
            ctx_rows.append(jnp.concatenate(heads, axis=-1))      # (S, H) lane-dense
        ctx = jnp.concatenate(ctx_rows, axis=0)                   # (B*S, H)

        # out-proj with fused residual + LayerNorm epilogue
        y = _bdot(ctx, wo_ref[li]) + bo_ref[li]
        x = _ln(x + y, ln1g_ref[li], ln1b_ref[li])

        # ---- feed-forward block with fused residual + LayerNorm epilogue ----
        h1 = _gelu(_bdot(x, w1_ref[li]) + b1_ref[li])             # (B*S, FFN)
        h2 = _bdot(h1, w2_ref[li]) + b2_ref[li]
        x = _ln(x + h2, ln2g_ref[li], ln2b_ref[li])

    # ---- word alignment: masked_select -> masked_scatter -> first-pooling ->
    #      masked_scatter expressed as a one-hot selection matmul; dropout fused.
    g = _bdot(sel_ref[...], x)                                    # (M_pad, H)
    pre_ref[...] = g
    keep = (u_ref[...] >= rate).astype(jnp.float32)
    drop_ref[...] = g * keep * (1.0 / (1.0 - rate))


def bert_embedding_forward(params, input_ids, attn_mask, sel, u):
    B, Sq = input_ids.shape
    M_pad = sel.shape[0]
    # embedding sum (tiny gather) in JAX; LN happens inside the fused kernel
    x0 = (jnp.take(params["tok_emb"], input_ids, axis=0)
          + params["pos_emb"][:Sq][None, :, :]
          + params["type_emb"][0][None, None, :]).reshape(B * Sq, H)
    madd = (1.0 - attn_mask.astype(jnp.float32)) * -1e9           # (B, S)
    pre, drop = pl.pallas_call(
        functools.partial(_bert_fused_kernel, batch=B, seq=Sq, rate=DROPOUT_P),
        out_shape=(jax.ShapeDtypeStruct((M_pad, H), jnp.float32),   # pre-dropout gather
                   jax.ShapeDtypeStruct((M_pad, H), jnp.float32)),  # dropout output
    )(x0, madd, sel, u,
      params["emb_ln_g"], params["emb_ln_b"],
      params["wqkv"], params["bqkv"], params["wo"], params["bo"],
      params["ln1_g"], params["ln1_b"],
      params["w1"], params["b1"], params["w2"], params["b2"],
      params["ln2_g"], params["ln2_b"])
    return pre, drop


bert_embedding_forward = jax.jit(bert_embedding_forward)


# ---------------- parameters (stacked per-layer for the fused kernel) ----------------

def init_params(key):
    def w(k, shape, scale=0.02):
        return (scale * jax.random.normal(k, shape)).astype(jnp.float32)

    keys = jax.random.split(key, 3)
    params = {
        "tok_emb": w(keys[0], (VOCAB, H)),
        "pos_emb": w(keys[1], (MAX_POS, H)),
        "type_emb": w(keys[2], (2, H)),
        "emb_ln_g": jnp.ones((1, H), jnp.float32),
        "emb_ln_b": jnp.zeros((1, H), jnp.float32),
    }
    wqkv, wo, w1, w2 = [], [], [], []
    for li in range(NLAYERS):
        lk = jax.random.split(jax.random.fold_in(key, 100 + li), 4)
        wqkv.append(w(lk[0], (H, 3 * H)))
        wo.append(w(lk[1], (H, H)))
        w1.append(w(lk[2], (H, FFN)))
        w2.append(w(lk[3], (FFN, H)))
    params.update({
        "wqkv": jnp.stack(wqkv), "bqkv": jnp.zeros((NLAYERS, 1, 3 * H), jnp.float32),
        "wo": jnp.stack(wo), "bo": jnp.zeros((NLAYERS, 1, H), jnp.float32),
        "ln1_g": jnp.ones((NLAYERS, 1, H), jnp.float32),
        "ln1_b": jnp.zeros((NLAYERS, 1, H), jnp.float32),
        "w1": jnp.stack(w1), "b1": jnp.zeros((NLAYERS, 1, FFN), jnp.float32),
        "w2": jnp.stack(w2), "b2": jnp.zeros((NLAYERS, 1, H), jnp.float32),
        "ln2_g": jnp.ones((NLAYERS, 1, H), jnp.float32),
        "ln2_b": jnp.zeros((NLAYERS, 1, H), jnp.float32),
    })
    return params


# ---------------- pure-JAX reference (mirrors the kernel's bf16 matmul casts) ----------------

def bert_encoder_ref(params, input_ids, attn_mask):
    B, Sq = input_ids.shape
    x = (params["tok_emb"][input_ids] + params["pos_emb"][:Sq][None]
         + params["type_emb"][0][None, None])
    x = _ln(x, params["emb_ln_g"], params["emb_ln_b"]).reshape(B * Sq, H)
    madd = (1.0 - attn_mask.astype(jnp.float32)) * -1e9
    for li in range(NLAYERS):
        qkv = _bdot(x, params["wqkv"][li]) + params["bqkv"][li]
        qkv = qkv.reshape(B, Sq, 3, NH, DH).transpose(2, 0, 3, 1, 4)
        q, k, v = qkv[0], qkv[1], qkv[2]                           # (B, NH, S, DH)
        s = jnp.einsum("bhqd,bhkd->bhqk", q.astype(jnp.bfloat16), k.astype(jnp.bfloat16),
                       preferred_element_type=jnp.float32) / math.sqrt(DH)
        p = jax.nn.softmax(s + madd[:, None, None, :], axis=-1)
        ctx = jnp.einsum("bhqk,bhkd->bhqd", p.astype(jnp.bfloat16), v.astype(jnp.bfloat16),
                         preferred_element_type=jnp.float32)
        ctx = ctx.transpose(0, 2, 1, 3).reshape(B * Sq, H)
        x = _ln(x + _bdot(ctx, params["wo"][li]) + params["bo"][li],
                params["ln1_g"][li], params["ln1_b"][li])
        h2 = _bdot(_gelu(_bdot(x, params["w1"][li]) + params["b1"][li]),
                   params["w2"][li]) + params["b2"][li]
        x = _ln(x + h2, params["ln2_g"][li], params["ln2_b"][li])
    return x  # (B*S, H)


# ---------------- driver ----------------

if __name__ == "__main__":
    # Raw word-level inputs: 2 samples with 3 and 5 words; each word maps to a
    # deterministic number of word-pieces (synthetic "tokenization").
    lens = [3, 5]
    subwords_per_word = [[2, 1, 3], [1, 2, 1, 2, 1]]
    B = len(lens)
    max_len = max(lens)

    key = jax.random.PRNGKey(0)
    params = init_params(key)

    # Padded sub-word batch: [CLS] pieces... [SEP] [PAD]...
    input_ids = np.full((B, S), PAD_ID, dtype=np.int32)
    attn_mask = np.zeros((B, S), dtype=np.int32)
    rng = np.random.default_rng(0)
    for b in range(B):
        n_sub = int(sum(subwords_per_word[b]))
        ids = [CLS_ID] + list(rng.integers(3, VOCAB, size=n_sub)) + [SEP_ID]
        input_ids[b, :len(ids)] = ids
        attn_mask[b, :len(ids)] = 1
    input_ids = jnp.asarray(input_ids)
    attn_mask = jnp.asarray(attn_mask)

    # One-hot selection matrix implementing
    #   masked_select(drop [CLS]/[SEP]/pad) -> masked_scatter to (num_words, max_tok_len, H)
    #   -> first-pooling (hidden==output => identity) -> masked_scatter to (B, max_len, H)
    # i.e. out[b, w] = encoder_out[b, first_subword_pos(b, w)], zero for padded words.
    M_pad = 16  # rows padded to a sublane multiple
    sel = np.zeros((M_pad, B * S), dtype=np.float32)
    valid = np.zeros((M_pad,), dtype=np.float32)
    for b in range(B):
        off = 1  # skip [CLS]
        for w_i in range(lens[b]):
            sel[b * max_len + w_i, b * S + off] = 1.0
            valid[b * max_len + w_i] = 1.0
            off += subwords_per_word[b][w_i]
    sel = jnp.asarray(sel)

    # training-mode dropout uniforms (hardware PRNG unavailable in interpret mode)
    u = jax.random.uniform(jax.random.PRNGKey(1234), (M_pad, H), jnp.float32)

    # ---- fused Pallas forward ----
    pre, drop = bert_embedding_forward(params, input_ids, attn_mask, sel, u)
    out = drop[: B * max_len].reshape(B, max_len, H)
    out = jax.block_until_ready(out)

    # ---- correctness check vs pure-JAX reference (pre-dropout) ----
    hid_ref = bert_encoder_ref(params, input_ids, attn_mask)                 # (B*S, H)
    ref_pre = _bdot(sel, hid_ref)[: B * max_len].reshape(B, max_len, H)
    pallas_pre = pre[: B * max_len].reshape(B, max_len, H)

    assert out.shape == (B, max_len, H)
    assert bool(jnp.all(jnp.isfinite(out)))
    assert bool(jnp.allclose(pallas_pre, ref_pre, atol=2e-2, rtol=2e-2))
    word_mask = jnp.asarray(valid[: B * max_len].reshape(B, max_len, 1))
    assert bool(jnp.all(jnp.where(word_mask == 0, pallas_pre, 0.0) == 0.0))
    # fused dropout: each element is either 0 or the pre-dropout value / (1 - p)
    ratio_ok = jnp.where(drop == 0.0, True,
                         jnp.isclose(drop, pre / (1.0 - DROPOUT_P), atol=1e-4, rtol=1e-4))
    assert bool(jnp.all(ratio_ok))
    print("KERNEL_OK")
</pallas_src>

<mosaic_0001>
module attributes {stable_mosaic.version = 11 : i64} {
  func.func @_bert_fused_kernel(%arg0: memref<32x128xf32, #tpu.memory_space<vmem>>, %arg1: memref<2x16xf32, #tpu.memory_space<vmem>>, %arg2: memref<16x32xf32, #tpu.memory_space<vmem>>, %arg3: memref<16x128xf32, #tpu.memory_space<vmem>>, %arg4: memref<1x128xf32, #tpu.memory_space<vmem>>, %arg5: memref<1x128xf32, #tpu.memory_space<vmem>>, %arg6: memref<2x128x384xf32, #tpu.memory_space<vmem>>, %arg7: memref<2x1x384xf32, #tpu.memory_space<vmem>>, %arg8: memref<2x128x128xf32, #tpu.memory_space<vmem>>, %arg9: memref<2x1x128xf32, #tpu.memory_space<vmem>>, %arg10: memref<2x1x128xf32, #tpu.memory_space<vmem>>, %arg11: memref<2x1x128xf32, #tpu.memory_space<vmem>>, %arg12: memref<2x128x512xf32, #tpu.memory_space<vmem>>, %arg13: memref<2x1x512xf32, #tpu.memory_space<vmem>>, %arg14: memref<2x512x128xf32, #tpu.memory_space<vmem>>, %arg15: memref<2x1x128xf32, #tpu.memory_space<vmem>>, %arg16: memref<2x1x128xf32, #tpu.memory_space<vmem>>, %arg17: memref<2x1x128xf32, #tpu.memory_space<vmem>>, %arg18: memref<16x128xf32, #tpu.memory_space<vmem>>, %arg19: memref<16x128xf32, #tpu.memory_space<vmem>>) attributes {dimension_semantics = [], scalar_prefetch = 0 : i64, scratch_operands = 0 : i64, tpu.core_type = #tpu.core_type<tc>} {
    %c0 = arith.constant 0 : index
    %c0_0 = arith.constant 0 : index
    %0 = vector.load %arg0[%c0, %c0_0] : memref<32x128xf32, #tpu.memory_space<vmem>>, vector<32x128xf32>
    %c0_1 = arith.constant 0 : index
    %c0_2 = arith.constant 0 : index
    %1 = vector.load %arg4[%c0_1, %c0_2] : memref<1x128xf32, #tpu.memory_space<vmem>>, vector<1x128xf32>
    %c0_3 = arith.constant 0 : index
    %c0_4 = arith.constant 0 : index
    %2 = vector.load %arg5[%c0_3, %c0_4] : memref<1x128xf32, #tpu.memory_space<vmem>>, vector<1x128xf32>
    %cst = arith.constant dense<0.000000e+00> : vector<32xf32>
    %3 = vector.multi_reduction <add>, %0, %cst [1] : vector<32x128xf32> to vector<32xf32>
    %4 = vector.shape_cast %3 : vector<32xf32> to vector<32x1xf32>
    %cst_5 = arith.constant 1.280000e+02 : f32
    %5 = vector.broadcast %cst_5 : f32 to vector<32x1xf32>
    %6 = arith.divf %4, %5 : vector<32x1xf32>
    %7 = vector.broadcast %6 : vector<32x1xf32> to vector<32x128xf32>
    %8 = arith.subf %0, %7 : vector<32x128xf32>
    %9 = arith.mulf %8, %8 : vector<32x128xf32>
    %cst_6 = arith.constant dense<0.000000e+00> : vector<32xf32>
    %10 = vector.multi_reduction <add>, %9, %cst_6 [1] : vector<32x128xf32> to vector<32xf32>
    %11 = vector.shape_cast %10 : vector<32xf32> to vector<32x1xf32>
    %cst_7 = arith.constant 1.280000e+02 : f32
    %12 = vector.broadcast %cst_7 : f32 to vector<32x1xf32>
    %13 = arith.divf %11, %12 : vector<32x1xf32>
    %14 = vector.broadcast %6 : vector<32x1xf32> to vector<32x128xf32>
    %15 = arith.subf %0, %14 : vector<32x128xf32>
    %cst_8 = arith.constant 9.99999996E-13 : f32
    %16 = vector.broadcast %cst_8 : f32 to vector<32x1xf32>
    %17 = arith.addf %13, %16 : vector<32x1xf32>
    %18 = math.rsqrt %17 : vector<32x1xf32>
    %19 = vector.broadcast %18 : vector<32x1xf32> to vector<32x128xf32>
    %20 = arith.mulf %15, %19 : vector<32x128xf32>
    %21 = vector.broadcast %1 : vector<1x128xf32> to vector<32x128xf32>
    %22 = arith.mulf %20, %21 : vector<32x128xf32>
    %23 = vector.broadcast %2 : vector<1x128xf32> to vector<32x128xf32>
    %24 = arith.addf %22, %23 : vector<32x128xf32>
    %c0_9 = arith.constant 0 : index
    %c0_10 = arith.constant 0 : index
    %25 = vector.load %arg1[%c0_9, %c0_10] : memref<2x16xf32, #tpu.memory_space<vmem>>, vector<2x16xf32>
    %c0_11 = arith.constant 0 : index
    %c0_12 = arith.constant 0 : index
    %c0_13 = arith.constant 0 : index
    %26 = vector.load %arg6[%c0_11, %c0_12, %c0_13] : memref<2x128x384xf32, #tpu.memory_space<vmem>>, vector<1x128x384xf32>
    %27 = vector.shape_cast %26 : vector<1x128x384xf32> to vector<128x384xf32>
    %28 = arith.truncf %24 : vector<32x128xf32> to vector<32x128xbf16>
    %29 = arith.truncf %27 : vector<128x384xf32> to vector<128x384xbf16>
    %cst_14 = arith.constant dense<0.000000e+00> : vector<32x384xf32>
    %30 = tpu.matmul %28, %29, %cst_14 {dimension_numbers = #tpu.dot_dimension_numbers<[1], [0], [0], [1], [0, 0, 1, 1], [], []>} : vector<32x128xbf16>, vector<128x384xbf16>, vector<32x384xf32> -> vector<32x384xf32>
    %c0_15 = arith.constant 0 : index
    %c0_16 = arith.constant 0 : index
    %c0_17 = arith.constant 0 : index
    %31 = vector.load %arg7[%c0_15, %c0_16, %c0_17] : memref<2x1x384xf32, #tpu.memory_space<vmem>>, vector<1x1x384xf32>
    %32 = vector.shape_cast %31 : vector<1x1x384xf32> to vector<1x384xf32>
    %33 = vector.broadcast %32 : vector<1x384xf32> to vector<32x384xf32>
    %34 = arith.addf %30, %33 : vector<32x384xf32>
    %35 = vector.extract_strided_slice %25 {offsets = [0, 0], sizes = [1, 16], strides = [1, 1]} : vector<2x16xf32> to vector<1x16xf32>
    %36 = vector.extract_strided_slice %34 {offsets = [0, 0], sizes = [16, 32], strides = [1, 1]} : vector<32x384xf32> to vector<16x32xf32>
    %37 = vector.extract_strided_slice %34 {offsets = [0, 128], sizes = [16, 32], strides = [1, 1]} : vector<32x384xf32> to vector<16x32xf32>
    %38 = vector.extract_strided_slice %34 {offsets = [0, 256], sizes = [16, 32], strides = [1, 1]} : vector<32x384xf32> to vector<16x32xf32>
    %39 = arith.truncf %36 : vector<16x32xf32> to vector<16x32xbf16>
    %40 = arith.truncf %37 : vector<16x32xf32> to vector<16x32xbf16>
    %cst_18 = arith.constant dense<0.000000e+00> : vector<16x16xf32>
    %41 = tpu.matmul %39, %40, %cst_18 {dimension_numbers = #tpu.dot_dimension_numbers<[1], [1], [0], [0], [0, 0, 1, 0], [], []>} : vector<16x32xbf16>, vector<16x32xbf16>, vector<16x16xf32> -> vector<16x16xf32>
    %cst_19 = arith.constant 0.176776692 : f32
    %42 = vector.broadcast %cst_19 : f32 to vector<16x16xf32>
    %43 = arith.mulf %41, %42 : vector<16x16xf32>
    %44 = vector.broadcast %35 : vector<1x16xf32> to vector<16x16xf32>
    %45 = arith.addf %43, %44 : vector<16x16xf32>
    %cst_20 = arith.constant dense<0xFF800000> : vector<16xf32>
    %46 = vector.multi_reduction <maximumf>, %45, %cst_20 [1] : vector<16x16xf32> to vector<16xf32>
    %cst_21 = arith.constant 0xFF800000 : f32
    %47 = vector.broadcast %cst_21 : f32 to vector<16xf32>
    %48 = arith.maximumf %47, %46 : vector<16xf32>
    %49 = vector.shape_cast %48 : vector<16xf32> to vector<16x1xf32>
    %50 = vector.broadcast %49 : vector<16x1xf32> to vector<16x16xf32>
    %51 = arith.subf %45, %50 : vector<16x16xf32>
    %52 = math.exp %51 : vector<16x16xf32>
    %cst_22 = arith.constant dense<0.000000e+00> : vector<16xf32>
    %53 = vector.multi_reduction <add>, %52, %cst_22 [1] : vector<16x16xf32> to vector<16xf32>
    %54 = vector.shape_cast %53 : vector<16xf32> to vector<16x1xf32>
    %55 = vector.broadcast %54 : vector<16x1xf32> to vector<16x16xf32>
    %56 = arith.divf %52, %55 : vector<16x16xf32>
    %57 = arith.truncf %56 : vector<16x16xf32> to vector<16x16xbf16>
    %58 = arith.truncf %38 : vector<16x32xf32> to vector<16x32xbf16>
    %cst_23 = arith.constant dense<0.000000e+00> : vector<16x32xf32>
    %59 = tpu.matmul %57, %58, %cst_23 {dimension_numbers = #tpu.dot_dimension_numbers<[1], [0], [0], [1], [0, 0, 1, 1], [], []>} : vector<16x16xbf16>, vector<16x32xbf16>, vector<16x32xf32> -> vector<16x32xf32>
    %60 = vector.extract_strided_slice %34 {offsets = [0, 32], sizes = [16, 32], strides = [1, 1]} : vector<32x384xf32> to vector<16x32xf32>
    %61 = vector.extract_strided_slice %34 {offsets = [0, 160], sizes = [16, 32], strides = [1, 1]} : vector<32x384xf32> to vector<16x32xf32>
    %62 = vector.extract_strided_slice %34 {offsets = [0, 288], sizes = [16, 32], strides = [1, 1]} : vector<32x384xf32> to vector<16x32xf32>
    %63 = arith.truncf %60 : vector<16x32xf32> to vector<16x32xbf16>
    %64 = arith.truncf %61 : vector<16x32xf32> to vector<16x32xbf16>
    %cst_24 = arith.constant dense<0.000000e+00> : vector<16x16xf32>
    %65 = tpu.matmul %63, %64, %cst_24 {dimension_numbers = #tpu.dot_dimension_numbers<[1], [1], [0], [0], [0, 0, 1, 0], [], []>} : vector<16x32xbf16>, vector<16x32xbf16>, vector<16x16xf32> -> vector<16x16xf32>
    %cst_25 = arith.constant 0.176776692 : f32
    %66 = vector.broadcast %cst_25 : f32 to vector<16x16xf32>
    %67 = arith.mulf %65, %66 : vector<16x16xf32>
    %68 = vector.broadcast %35 : vector<1x16xf32> to vector<16x16xf32>
    %69 = arith.addf %67, %68 : vector<16x16xf32>
    %cst_26 = arith.constant dense<0xFF800000> : vector<16xf32>
    %70 = vector.multi_reduction <maximumf>, %69, %cst_26 [1] : vector<16x16xf32> to vector<16xf32>
    %cst_27 = arith.constant 0xFF800000 : f32
    %71 = vector.broadcast %cst_27 : f32 to vector<16xf32>
    %72 = arith.maximumf %71, %70 : vector<16xf32>
    %73 = vector.shape_cast %72 : vector<16xf32> to vector<16x1xf32>
    %74 = vector.broadcast %73 : vector<16x1xf32> to vector<16x16xf32>
    %75 = arith.subf %69, %74 : vector<16x16xf32>
    %76 = math.exp %75 : vector<16x16xf32>
    %cst_28 = arith.constant dense<0.000000e+00> : vector<16xf32>
    %77 = vector.multi_reduction <add>, %76, %cst_28 [1] : vector<16x16xf32> to vector<16xf32>
    %78 = vector.shape_cast %77 : vector<16xf32> to vector<16x1xf32>
    %79 = vector.broadcast %78 : vector<16x1xf32> to vector<16x16xf32>
    %80 = arith.divf %76, %79 : vector<16x16xf32>
    %81 = arith.truncf %80 : vector<16x16xf32> to vector<16x16xbf16>
    %82 = arith.truncf %62 : vector<16x32xf32> to vector<16x32xbf16>
    %cst_29 = arith.constant dense<0.000000e+00> : vector<16x32xf32>
    %83 = tpu.matmul %81, %82, %cst_29 {dimension_numbers = #tpu.dot_dimension_numbers<[1], [0], [0], [1], [0, 0, 1, 1], [], []>} : vector<16x16xbf16>, vector<16x32xbf16>, vector<16x32xf32> -> vector<16x32xf32>
    %84 = vector.extract_strided_slice %34 {offsets = [0, 64], sizes = [16, 32], strides = [1, 1]} : vector<32x384xf32> to vector<16x32xf32>
    %85 = vector.extract_strided_slice %34 {offsets = [0, 192], sizes = [16, 32], strides = [1, 1]} : vector<32x384xf32> to vector<16x32xf32>
    %86 = vector.extract_strided_slice %34 {offsets = [0, 320], sizes = [16, 32], strides = [1, 1]} : vector<32x384xf32> to vector<16x32xf32>
    %87 = arith.truncf %84 : vector<16x32xf32> to vector<16x32xbf16>
    %88 = arith.truncf %85 : vector<16x32xf32> to vector<16x32xbf16>
    %cst_30 = arith.constant dense<0.000000e+00> : vector<16x16xf32>
    %89 = tpu.matmul %87, %88, %cst_30 {dimension_numbers = #tpu.dot_dimension_numbers<[1], [1], [0], [0], [0, 0, 1, 0], [], []>} : vector<16x32xbf16>, vector<16x32xbf16>, vector<16x16xf32> -> vector<16x16xf32>
    %cst_31 = arith.constant 0.176776692 : f32
    %90 = vector.broadcast %cst_31 : f32 to vector<16x16xf32>
    %91 = arith.mulf %89, %90 : vector<16x16xf32>
    %92 = vector.broadcast %35 : vector<1x16xf32> to vector<16x16xf32>
    %93 = arith.addf %91, %92 : vector<16x16xf32>
    %cst_32 = arith.constant dense<0xFF800000> : vector<16xf32>
    %94 = vector.multi_reduction <maximumf>, %93, %cst_32 [1] : vector<16x16xf32> to vector<16xf32>
    %cst_33 = arith.constant 0xFF800000 : f32
    %95 = vector.broadcast %cst_33 : f32 to vector<16xf32>
    %96 = arith.maximumf %95, %94 : vector<16xf32>
    %97 = vector.shape_cast %96 : vector<16xf32> to vector<16x1xf32>
    %98 = vector.broadcast %97 : vector<16x1xf32> to vector<16x16xf32>
    %99 = arith.subf %93, %98 : vector<16x16xf32>
    %100 = math.exp %99 : vector<16x16xf32>
    %cst_34 = arith.constant dense<0.000000e+00> : vector<16xf32>
    %101 = vector.multi_reduction <add>, %100, %cst_34 [1] : vector<16x16xf32> to vector<16xf32>
    %102 = vector.shape_cast %101 : vector<16xf32> to vector<16x1xf32>
    %103 = vector.broadcast %102 : vector<16x1xf32> to vector<16x16xf32>
    %104 = arith.divf %100, %103 : vector<16x16xf32>
    %105 = arith.truncf %104 : vector<16x16xf32> to vector<16x16xbf16>
    %106 = arith.truncf %86 : vector<16x32xf32> to vector<16x32xbf16>
    %cst_35 = arith.constant dense<0.000000e+00> : vector<16x32xf32>
    %107 = tpu.matmul %105, %106, %cst_35 {dimension_numbers = #tpu.dot_dimension_numbers<[1], [0], [0], [1], [0, 0, 1, 1], [], []>} : vector<16x16xbf16>, vector<16x32xbf16>, vector<16x32xf32> -> vector<16x32xf32>
    %108 = vector.extract_strided_slice %34 {offsets = [0, 96], sizes = [16, 32], strides = [1, 1]} : vector<32x384xf32> to vector<16x32xf32>
    %109 = vector.extract_strided_slice %34 {offsets = [0, 224], sizes = [16, 32], strides = [1, 1]} : vector<32x384xf32> to vector<16x32xf32>
    %110 = vector.extract_strided_slice %34 {offsets = [0, 352], sizes = [16, 32], strides = [1, 1]} : vector<32x384xf32> to vector<16x32xf32>
    %111 = arith.truncf %108 : vector<16x32xf32> to vector<16x32xbf16>
    %112 = arith.truncf %109 : vector<16x32xf32> to vector<16x32xbf16>
    %cst_36 = arith.constant dense<0.000000e+00> : vector<16x16xf32>
    %113 = tpu.matmul %111, %112, %cst_36 {dimension_numbers = #tpu.dot_dimension_numbers<[1], [1], [0], [0], [0, 0, 1, 0], [], []>} : vector<16x32xbf16>, vector<16x32xbf16>, vector<16x16xf32> -> vector<16x16xf32>
    %cst_37 = arith.constant 0.176776692 : f32
    %114 = vector.broadcast %cst_37 : f32 to vector<16x16xf32>
    %115 = arith.mulf %113, %114 : vector<16x16xf32>
    %116 = vector.broadcast %35 : vector<1x16xf32> to vector<16x16xf32>
    %117 = arith.addf %115, %116 : vector<16x16xf32>
    %cst_38 = arith.constant dense<0xFF800000> : vector<16xf32>
    %118 = vector.multi_reduction <maximumf>, %117, %cst_38 [1] : vector<16x16xf32> to vector<16xf32>
    %cst_39 = arith.constant 0xFF800000 : f32
    %119 = vector.broadcast %cst_39 : f32 to vector<16xf32>
    %120 = arith.maximumf %119, %118 : vector<16xf32>
    %121 = vector.shape_cast %120 : vector<16xf32> to vector<16x1xf32>
    %122 = vector.broadcast %121 : vector<16x1xf32> to vector<16x16xf32>
    %123 = arith.subf %117, %122 : vector<16x16xf32>
    %124 = math.exp %123 : vector<16x16xf32>
    %cst_40 = arith.constant dense<0.000000e+00> : vector<16xf32>
    %125 = vector.multi_reduction <add>, %124, %cst_40 [1] : vector<16x16xf32> to vector<16xf32>
    %126 = vector.shape_cast %125 : vector<16xf32> to vector<16x1xf32>
    %127 = vector.broadcast %126 : vector<16x1xf32> to vector<16x16xf32>
    %128 = arith.divf %124, %127 : vector<16x16xf32>
    %129 = arith.truncf %128 : vector<16x16xf32> to vector<16x16xbf16>
    %130 = arith.truncf %110 : vector<16x32xf32> to vector<16x32xbf16>
    %cst_41 = arith.constant dense<0.000000e+00> : vector<16x32xf32>
    %131 = tpu.matmul %129, %130, %cst_41 {dimension_numbers = #tpu.dot_dimension_numbers<[1], [0], [0], [1], [0, 0, 1, 1], [], []>} : vector<16x16xbf16>, vector<16x32xbf16>, vector<16x32xf32> -> vector<16x32xf32>
    %132 = tpu.concatenate %59, %83, %107, %131 in 1 : vector<16x32xf32>, vector<16x32xf32>, vector<16x32xf32>, vector<16x32xf32> -> vector<16x128xf32>
    %133 = vector.extract_strided_slice %25 {offsets = [1, 0], sizes = [1, 16], strides = [1, 1]} : vector<2x16xf32> to vector<1x16xf32>
    %134 = vector.extract_strided_slice %34 {offsets = [16, 0], sizes = [16, 32], strides = [1, 1]} : vector<32x384xf32> to vector<16x32xf32>
    %135 = vector.extract_strided_slice %34 {offsets = [16, 128], sizes = [16, 32], strides = [1, 1]} : vector<32x384xf32> to vector<16x32xf32>
    %136 = vector.extract_strided_slice %34 {offsets = [16, 256], sizes = [16, 32], strides = [1, 1]} : vector<32x384xf32> to vector<16x32xf32>
    %137 = arith.truncf %134 : vector<16x32xf32> to vector<16x32xbf16>
    %138 = arith.truncf %135 : vector<16x32xf32> to vector<16x32xbf16>
    %cst_42 = arith.constant dense<0.000000e+00> : vector<16x16xf32>
    %139 = tpu.matmul %137, %138, %cst_42 {dimension_numbers = #tpu.dot_dimension_numbers<[1], [1], [0], [0], [0, 0, 1, 0], [], []>} : vector<16x32xbf16>, vector<16x32xbf16>, vector<16x16xf32> -> vector<16x16xf32>
    %cst_43 = arith.constant 0.176776692 : f32
    %140 = vector.broadcast %cst_43 : f32 to vector<16x16xf32>
    %141 = arith.mulf %139, %140 : vector<16x16xf32>
    %142 = vector.broadcast %133 : vector<1x16xf32> to vector<16x16xf32>
    %143 = arith.addf %141, %142 : vector<16x16xf32>
    %cst_44 = arith.constant dense<0xFF800000> : vector<16xf32>
    %144 = vector.multi_reduction <maximumf>, %143, %cst_44 [1] : vector<16x16xf32> to vector<16xf32>
    %cst_45 = arith.constant 0xFF800000 : f32
    %145 = vector.broadcast %cst_45 : f32 to vector<16xf32>
    %146 = arith.maximumf %145, %144 : vector<16xf32>
    %147 = vector.shape_cast %146 : vector<16xf32> to vector<16x1xf32>
    %148 = vector.broadcast %147 : vector<16x1xf32> to vector<16x16xf32>
    %149 = arith.subf %143, %148 : vector<16x16xf32>
    %150 = math.exp %149 : vector<16x16xf32>
    %cst_46 = arith.constant dense<0.000000e+00> : vector<16xf32>
    %151 = vector.multi_reduction <add>, %150, %cst_46 [1] : vector<16x16xf32> to vector<16xf32>
    %152 = vector.shape_cast %151 : vector<16xf32> to vector<16x1xf32>
    %153 = vector.broadcast %152 : vector<16x1xf32> to vector<16x16xf32>
    %154 = arith.divf %150, %153 : vector<16x16xf32>
    %155 = arith.truncf %154 : vector<16x16xf32> to vector<16x16xbf16>
    %156 = arith.truncf %136 : vector<16x32xf32> to vector<16x32xbf16>
    %cst_47 = arith.constant dense<0.000000e+00> : vector<16x32xf32>
    %157 = tpu.matmul %155, %156, %cst_47 {dimension_numbers = #tpu.dot_dimension_numbers<[1], [0], [0], [1], [0, 0, 1, 1], [], []>} : vector<16x16xbf16>, vector<16x32xbf16>, vector<16x32xf32> -> vector<16x32xf32>
    %158 = vector.extract_strided_slice %34 {offsets = [16, 32], sizes = [16, 32], strides = [1, 1]} : vector<32x384xf32> to vector<16x32xf32>
    %159 = vector.extract_strided_slice %34 {offsets = [16, 160], sizes = [16, 32], strides = [1, 1]} : vector<32x384xf32> to vector<16x32xf32>
    %160 = vector.extract_strided_slice %34 {offsets = [16, 288], sizes = [16, 32], strides = [1, 1]} : vector<32x384xf32> to vector<16x32xf32>
    %161 = arith.truncf %158 : vector<16x32xf32> to vector<16x32xbf16>
    %162 = arith.truncf %159 : vector<16x32xf32> to vector<16x32xbf16>
    %cst_48 = arith.constant dense<0.000000e+00> : vector<16x16xf32>
    %163 = tpu.matmul %161, %162, %cst_48 {dimension_numbers = #tpu.dot_dimension_numbers<[1], [1], [0], [0], [0, 0, 1, 0], [], []>} : vector<16x32xbf16>, vector<16x32xbf16>, vector<16x16xf32> -> vector<16x16xf32>
    %cst_49 = arith.constant 0.176776692 : f32
    %164 = vector.broadcast %cst_49 : f32 to vector<16x16xf32>
    %165 = arith.mulf %163, %164 : vector<16x16xf32>
    %166 = vector.broadcast %133 : vector<1x16xf32> to vector<16x16xf32>
    %167 = arith.addf %165, %166 : vector<16x16xf32>
    %cst_50 = arith.constant dense<0xFF800000> : vector<16xf32>
    %168 = vector.multi_reduction <maximumf>, %167, %cst_50 [1] : vector<16x16xf32> to vector<16xf32>
    %cst_51 = arith.constant 0xFF800000 : f32
    %169 = vector.broadcast %cst_51 : f32 to vector<16xf32>
    %170 = arith.maximumf %169, %168 : vector<16xf32>
    %171 = vector.shape_cast %170 : vector<16xf32> to vector<16x1xf32>
    %172 = vector.broadcast %171 : vector<16x1xf32> to vector<16x16xf32>
    %173 = arith.subf %167, %172 : vector<16x16xf32>
    %174 = math.exp %173 : vector<16x16xf32>
    %cst_52 = arith.constant dense<0.000000e+00> : vector<16xf32>
    %175 = vector.multi_reduction <add>, %174, %cst_52 [1] : vector<16x16xf32> to vector<16xf32>
    %176 = vector.shape_cast %175 : vector<16xf32> to vector<16x1xf32>
    %177 = vector.broadcast %176 : vector<16x1xf32> to vector<16x16xf32>
    %178 = arith.divf %174, %177 : vector<16x16xf32>
    %179 = arith.truncf %178 : vector<16x16xf32> to vector<16x16xbf16>
    %180 = arith.truncf %160 : vector<16x32xf32> to vector<16x32xbf16>
    %cst_53 = arith.constant dense<0.000000e+00> : vector<16x32xf32>
    %181 = tpu.matmul %179, %180, %cst_53 {dimension_numbers = #tpu.dot_dimension_numbers<[1], [0], [0], [1], [0, 0, 1, 1], [], []>} : vector<16x16xbf16>, vector<16x32xbf16>, vector<16x32xf32> -> vector<16x32xf32>
    %182 = vector.extract_strided_slice %34 {offsets = [16, 64], sizes = [16, 32], strides = [1, 1]} : vector<32x384xf32> to vector<16x32xf32>
    %183 = vector.extract_strided_slice %34 {offsets = [16, 192], sizes = [16, 32], strides = [1, 1]} : vector<32x384xf32> to vector<16x32xf32>
    %184 = vector.extract_strided_slice %34 {offsets = [16, 320], sizes = [16, 32], strides = [1, 1]} : vector<32x384xf32> to vector<16x32xf32>
    %185 = arith.truncf %182 : vector<16x32xf32> to vector<16x32xbf16>
    %186 = arith.truncf %183 : vector<16x32xf32> to vector<16x32xbf16>
    %cst_54 = arith.constant dense<0.000000e+00> : vector<16x16xf32>
    %187 = tpu.matmul %185, %186, %cst_54 {dimension_numbers = #tpu.dot_dimension_numbers<[1], [1], [0], [0], [0, 0, 1, 0], [], []>} : vector<16x32xbf16>, vector<16x32xbf16>, vector<16x16xf32> -> vector<16x16xf32>
    %cst_55 = arith.constant 0.176776692 : f32
    %188 = vector.broadcast %cst_55 : f32 to vector<16x16xf32>
    %189 = arith.mulf %187, %188 : vector<16x16xf32>
    %190 = vector.broadcast %133 : vector<1x16xf32> to vector<16x16xf32>
    %191 = arith.addf %189, %190 : vector<16x16xf32>
    %cst_56 = arith.constant dense<0xFF800000> : vector<16xf32>
    %192 = vector.multi_reduction <maximumf>, %191, %cst_56 [1] : vector<16x16xf32> to vector<16xf32>
    %cst_57 = arith.constant 0xFF800000 : f32
    %193 = vector.broadcast %cst_57 : f32 to vector<16xf32>
    %194 = arith.maximumf %193, %192 : vector<16xf32>
    %195 = vector.shape_cast %194 : vector<16xf32> to vector<16x1xf32>
    %196 = vector.broadcast %195 : vector<16x1xf32> to vector<16x16xf32>
    %197 = arith.subf %191, %196 : vector<16x16xf32>
    %198 = math.exp %197 : vector<16x16xf32>
    %cst_58 = arith.constant dense<0.000000e+00> : vector<16xf32>
    %199 = vector.multi_reduction <add>, %198, %cst_58 [1] : vector<16x16xf32> to vector<16xf32>
    %200 = vector.shape_cast %199 : vector<16xf32> to vector<16x1xf32>
    %201 = vector.broadcast %200 : vector<16x1xf32> to vector<16x16xf32>
    %202 = arith.divf %198, %201 : vector<16x16xf32>
    %203 = arith.truncf %202 : vector<16x16xf32> to vector<16x16xbf16>
    %204 = arith.truncf %184 : vector<16x32xf32> to vector<16x32xbf16>
    %cst_59 = arith.constant dense<0.000000e+00> : vector<16x32xf32>
    %205 = tpu.matmul %203, %204, %cst_59 {dimension_numbers = #tpu.dot_dimension_numbers<[1], [0], [0], [1], [0, 0, 1, 1], [], []>} : vector<16x16xbf16>, vector<16x32xbf16>, vector<16x32xf32> -> vector<16x32xf32>
    %206 = vector.extract_strided_slice %34 {offsets = [16, 96], sizes = [16, 32], strides = [1, 1]} : vector<32x384xf32> to vector<16x32xf32>
    %207 = vector.extract_strided_slice %34 {offsets = [16, 224], sizes = [16, 32], strides = [1, 1]} : vector<32x384xf32> to vector<16x32xf32>
    %208 = vector.extract_strided_slice %34 {offsets = [16, 352], sizes = [16, 32], strides = [1, 1]} : vector<32x384xf32> to vector<16x32xf32>
    %209 = arith.truncf %206 : vector<16x32xf32> to vector<16x32xbf16>
    %210 = arith.truncf %207 : vector<16x32xf32> to vector<16x32xbf16>
    %cst_60 = arith.constant dense<0.000000e+00> : vector<16x16xf32>
    %211 = tpu.matmul %209, %210, %cst_60 {dimension_numbers = #tpu.dot_dimension_numbers<[1], [1], [0], [0], [0, 0, 1, 0], [], []>} : vector<16x32xbf16>, vector<16x32xbf16>, vector<16x16xf32> -> vector<16x16xf32>
    %cst_61 = arith.constant 0.176776692 : f32
    %212 = vector.broadcast %cst_61 : f32 to vector<16x16xf32>
    %213 = arith.mulf %211, %212 : vector<16x16xf32>
    %214 = vector.broadcast %133 : vector<1x16xf32> to vector<16x16xf32>
    %215 = arith.addf %213, %214 : vector<16x16xf32>
    %cst_62 = arith.constant dense<0xFF800000> : vector<16xf32>
    %216 = vector.multi_reduction <maximumf>, %215, %cst_62 [1] : vector<16x16xf32> to vector<16xf32>
    %cst_63 = arith.constant 0xFF800000 : f32
    %217 = vector.broadcast %cst_63 : f32 to vector<16xf32>
    %218 = arith.maximumf %217, %216 : vector<16xf32>
    %219 = vector.shape_cast %218 : vector<16xf32> to vector<16x1xf32>
    %220 = vector.broadcast %219 : vector<16x1xf32> to vector<16x16xf32>
    %221 = arith.subf %215, %220 : vector<16x16xf32>
    %222 = math.exp %221 : vector<16x16xf32>
    %cst_64 = arith.constant dense<0.000000e+00> : vector<16xf32>
    %223 = vector.multi_reduction <add>, %222, %cst_64 [1] : vector<16x16xf32> to vector<16xf32>
    %224 = vector.shape_cast %223 : vector<16xf32> to vector<16x1xf32>
    %225 = vector.broadcast %224 : vector<16x1xf32> to vector<16x16xf32>
    %226 = arith.divf %222, %225 : vector<16x16xf32>
    %227 = arith.truncf %226 : vector<16x16xf32> to vector<16x16xbf16>
    %228 = arith.truncf %208 : vector<16x32xf32> to vector<16x32xbf16>
    %cst_65 = arith.constant dense<0.000000e+00> : vector<16x32xf32>
    %229 = tpu.matmul %227, %228, %cst_65 {dimension_numbers = #tpu.dot_dimension_numbers<[1], [0], [0], [1], [0, 0, 1, 1], [], []>} : vector<16x16xbf16>, vector<16x32xbf16>, vector<16x32xf32> -> vector<16x32xf32>
    %230 = tpu.concatenate %157, %181, %205, %229 in 1 : vector<16x32xf32>, vector<16x32xf32>, vector<16x32xf32>, vector<16x32xf32> -> vector<16x128xf32>
    %231 = tpu.concatenate %132, %230 in 0 : vector<16x128xf32>, vector<16x128xf32> -> vector<32x128xf32>
    %c0_66 = arith.constant 0 : index
    %c0_67 = arith.constant 0 : index
    %c0_68 = arith.constant 0 : index
    %232 = vector.load %arg8[%c0_66, %c0_67, %c0_68] : memref<2x128x128xf32, #tpu.memory_space<vmem>>, vector<1x128x128xf32>
    %233 = vector.shape_cast %232 : vector<1x128x128xf32> to vector<128x128xf32>
    %234 = arith.truncf %231 : vector<32x128xf32> to vector<32x128xbf16>
    %235 = arith.truncf %233 : vector<128x128xf32> to vector<128x128xbf16>
    %cst_69 = arith.constant dense<0.000000e+00> : vector<32x128xf32>
    %236 = tpu.matmul %234, %235, %cst_69 {dimension_numbers = #tpu.dot_dimension_numbers<[1], [0], [0], [1], [0, 0, 1, 1], [], []>} : vector<32x128xbf16>, vector<128x128xbf16>, vector<32x128xf32> -> vector<32x128xf32>
    %c0_70 = arith.constant 0 : index
    %c0_71 = arith.constant 0 : index
    %c0_72 = arith.constant 0 : index
    %237 = vector.load %arg9[%c0_70, %c0_71, %c0_72] : memref<2x1x128xf32, #tpu.memory_space<vmem>>, vector<1x1x128xf32>
    %238 = vector.shape_cast %237 : vector<1x1x128xf32> to vector<1x128xf32>
    %239 = vector.broadcast %238 : vector<1x128xf32> to vector<32x128xf32>
    %240 = arith.addf %236, %239 : vector<32x128xf32>
    %241 = arith.addf %24, %240 : vector<32x128xf32>
    %c0_73 = arith.constant 0 : index
    %c0_74 = arith.constant 0 : index
    %c0_75 = arith.constant 0 : index
    %242 = vector.load %arg10[%c0_73, %c0_74, %c0_75] : memref<2x1x128xf32, #tpu.memory_space<vmem>>, vector<1x1x128xf32>
    %243 = vector.shape_cast %242 : vector<1x1x128xf32> to vector<1x128xf32>
    %c0_76 = arith.constant 0 : index
    %c0_77 = arith.constant 0 : index
    %c0_78 = arith.constant 0 : index
    %244 = vector.load %arg11[%c0_76, %c0_77, %c0_78] : memref<2x1x128xf32, #tpu.memory_space<vmem>>, vector<1x1x128xf32>
    %245 = vector.shape_cast %244 : vector<1x1x128xf32> to vector<1x128xf32>
    %cst_79 = arith.constant dense<0.000000e+00> : vector<32xf32>
    %246 = vector.multi_reduction <add>, %241, %cst_79 [1] : vector<32x128xf32> to vector<32xf32>
    %247 = vector.shape_cast %246 : vector<32xf32> to vector<32x1xf32>
    %cst_80 = arith.constant 1.280000e+02 : f32
    %248 = vector.broadcast %cst_80 : f32 to vector<32x1xf32>
    %249 = arith.divf %247, %248 : vector<32x1xf32>
    %250 = vector.broadcast %249 : vector<32x1xf32> to vector<32x128xf32>
    %251 = arith.subf %241, %250 : vector<32x128xf32>
    %252 = arith.mulf %251, %251 : vector<32x128xf32>
    %cst_81 = arith.constant dense<0.000000e+00> : vector<32xf32>
    %253 = vector.multi_reduction <add>, %252, %cst_81 [1] : vector<32x128xf32> to vector<32xf32>
    %254 = vector.shape_cast %253 : vector<32xf32> to vector<32x1xf32>
    %cst_82 = arith.constant 1.280000e+02 : f32
    %255 = vector.broadcast %cst_82 : f32 to vector<32x1xf32>
    %256 = arith.divf %254, %255 : vector<32x1xf32>
    %257 = vector.broadcast %249 : vector<32x1xf32> to vector<32x128xf32>
    %258 = arith.subf %241, %257 : vector<32x128xf32>
    %cst_83 = arith.constant 9.99999996E-13 : f32
    %259 = vector.broadcast %cst_83 : f32 to vector<32x1xf32>
    %260 = arith.addf %256, %259 : vector<32x1xf32>
    %261 = math.rsqrt %260 : vector<32x1xf32>
    %262 = vector.broadcast %261 : vector<32x1xf32> to vector<32x128xf32>
    %263 = arith.mulf %258, %262 : vector<32x128xf32>
    %264 = vector.broadcast %243 : vector<1x128xf32> to vector<32x128xf32>
    %265 = arith.mulf %263, %264 : vector<32x128xf32>
    %266 = vector.broadcast %245 : vector<1x128xf32> to vector<32x128xf32>
    %267 = arith.addf %265, %266 : vector<32x128xf32>
    %c0_84 = arith.constant 0 : index
    %c0_85 = arith.constant 0 : index
    %c0_86 = arith.constant 0 : index
    %268 = vector.load %arg12[%c0_84, %c0_85, %c0_86] : memref<2x128x512xf32, #tpu.memory_space<vmem>>, vector<1x128x512xf32>
    %269 = vector.shape_cast %268 : vector<1x128x512xf32> to vector<128x512xf32>
    %270 = arith.truncf %267 : vector<32x128xf32> to vector<32x128xbf16>
    %271 = arith.truncf %269 : vector<128x512xf32> to vector<128x512xbf16>
    %cst_87 = arith.constant dense<0.000000e+00> : vector<32x512xf32>
    %272 = tpu.matmul %270, %271, %cst_87 {dimension_numbers = #tpu.dot_dimension_numbers<[1], [0], [0], [1], [0, 0, 1, 1], [], []>} : vector<32x128xbf16>, vector<128x512xbf16>, vector<32x512xf32> -> vector<32x512xf32>
    %c0_88 = arith.constant 0 : index
    %c0_89 = arith.constant 0 : index
    %c0_90 = arith.constant 0 : index
    %273 = vector.load %arg13[%c0_88, %c0_89, %c0_90] : memref<2x1x512xf32, #tpu.memory_space<vmem>>, vector<1x1x512xf32>
    %274 = vector.shape_cast %273 : vector<1x1x512xf32> to vector<1x512xf32>
    %275 = vector.broadcast %274 : vector<1x512xf32> to vector<32x512xf32>
    %276 = arith.addf %272, %275 : vector<32x512xf32>
    %cst_91 = arith.constant 5.000000e-01 : f32
    %277 = vector.broadcast %cst_91 : f32 to vector<32x512xf32>
    %278 = arith.mulf %277, %276 : vector<32x512xf32>
    %cst_92 = arith.constant 4.471500e-02 : f32
    %279 = vector.broadcast %cst_92 : f32 to vector<32x512xf32>
    %280 = arith.mulf %279, %276 : vector<32x512xf32>
    %281 = arith.mulf %280, %276 : vector<32x512xf32>
    %282 = arith.mulf %281, %276 : vector<32x512xf32>
    %283 = arith.addf %276, %282 : vector<32x512xf32>
    %cst_93 = arith.constant 0.797884583 : f32
    %284 = vector.broadcast %cst_93 : f32 to vector<32x512xf32>
    %285 = arith.mulf %284, %283 : vector<32x512xf32>
    %286 = math.tanh %285 : vector<32x512xf32>
    %cst_94 = arith.constant 1.000000e+00 : f32
    %287 = vector.broadcast %cst_94 : f32 to vector<32x512xf32>
    %288 = arith.addf %287, %286 : vector<32x512xf32>
    %289 = arith.mulf %278, %288 : vector<32x512xf32>
    %c0_95 = arith.constant 0 : index
    %c0_96 = arith.constant 0 : index
    %c0_97 = arith.constant 0 : index
    %290 = vector.load %arg14[%c0_95, %c0_96, %c0_97] : memref<2x512x128xf32, #tpu.memory_space<vmem>>, vector<1x512x128xf32>
    %291 = vector.shape_cast %290 : vector<1x512x128xf32> to vector<512x128xf32>
    %292 = arith.truncf %289 : vector<32x512xf32> to vector<32x512xbf16>
    %293 = arith.truncf %291 : vector<512x128xf32> to vector<512x128xbf16>
    %cst_98 = arith.constant dense<0.000000e+00> : vector<32x128xf32>
    %294 = tpu.matmul %292, %293, %cst_98 {dimension_numbers = #tpu.dot_dimension_numbers<[1], [0], [0], [1], [0, 0, 1, 1], [], []>} : vector<32x512xbf16>, vector<512x128xbf16>, vector<32x128xf32> -> vector<32x128xf32>
    %c0_99 = arith.constant 0 : index
    %c0_100 = arith.constant 0 : index
    %c0_101 = arith.constant 0 : index
    %295 = vector.load %arg15[%c0_99, %c0_100, %c0_101] : memref<2x1x128xf32, #tpu.memory_space<vmem>>, vector<1x1x128xf32>
    %296 = vector.shape_cast %295 : vector<1x1x128xf32> to vector<1x128xf32>
    %297 = vector.broadcast %296 : vector<1x128xf32> to vector<32x128xf32>
    %298 = arith.addf %294, %297 : vector<32x128xf32>
    %299 = arith.addf %267, %298 : vector<32x128xf32>
    %c0_102 = arith.constant 0 : index
    %c0_103 = arith.constant 0 : index
    %c0_104 = arith.constant 0 : index
    %300 = vector.load %arg16[%c0_102, %c0_103, %c0_104] : memref<2x1x128xf32, #tpu.memory_space<vmem>>, vector<1x1x128xf32>
    %301 = vector.shape_cast %300 : vector<1x1x128xf32> to vector<1x128xf32>
    %c0_105 = arith.constant 0 : index
    %c0_106 = arith.constant 0 : index
    %c0_107 = arith.constant 0 : index
    %302 = vector.load %arg17[%c0_105, %c0_106, %c0_107] : memref<2x1x128xf32, #tpu.memory_space<vmem>>, vector<1x1x128xf32>
    %303 = vector.shape_cast %302 : vector<1x1x128xf32> to vector<1x128xf32>
    %cst_108 = arith.constant dense<0.000000e+00> : vector<32xf32>
    %304 = vector.multi_reduction <add>, %299, %cst_108 [1] : vector<32x128xf32> to vector<32xf32>
    %305 = vector.shape_cast %304 : vector<32xf32> to vector<32x1xf32>
    %cst_109 = arith.constant 1.280000e+02 : f32
    %306 = vector.broadcast %cst_109 : f32 to vector<32x1xf32>
    %307 = arith.divf %305, %306 : vector<32x1xf32>
    %308 = vector.broadcast %307 : vector<32x1xf32> to vector<32x128xf32>
    %309 = arith.subf %299, %308 : vector<32x128xf32>
    %310 = arith.mulf %309, %309 : vector<32x128xf32>
    %cst_110 = arith.constant dense<0.000000e+00> : vector<32xf32>
    %311 = vector.multi_reduction <add>, %310, %cst_110 [1] : vector<32x128xf32> to vector<32xf32>
    %312 = vector.shape_cast %311 : vector<32xf32> to vector<32x1xf32>
    %cst_111 = arith.constant 1.280000e+02 : f32
    %313 = vector.broadcast %cst_111 : f32 to vector<32x1xf32>
    %314 = arith.divf %312, %313 : vector<32x1xf32>
    %315 = vector.broadcast %307 : vector<32x1xf32> to vector<32x128xf32>
    %316 = arith.subf %299, %315 : vector<32x128xf32>
    %cst_112 = arith.constant 9.99999996E-13 : f32
    %317 = vector.broadcast %cst_112 : f32 to vector<32x1xf32>
    %318 = arith.addf %314, %317 : vector<32x1xf32>
    %319 = math.rsqrt %318 : vector<32x1xf32>
    %320 = vector.broadcast %319 : vector<32x1xf32> to vector<32x128xf32>
    %321 = arith.mulf %316, %320 : vector<32x128xf32>
    %322 = vector.broadcast %301 : vector<1x128xf32> to vector<32x128xf32>
    %323 = arith.mulf %321, %322 : vector<32x128xf32>
    %324 = vector.broadcast %303 : vector<1x128xf32> to vector<32x128xf32>
    %325 = arith.addf %323, %324 : vector<32x128xf32>
    %c1 = arith.constant 1 : index
    %c0_113 = arith.constant 0 : index
    %c0_114 = arith.constant 0 : index
    %326 = vector.load %arg6[%c1, %c0_113, %c0_114] : memref<2x128x384xf32, #tpu.memory_space<vmem>>, vector<1x128x384xf32>
    %327 = vector.shape_cast %326 : vector<1x128x384xf32> to vector<128x384xf32>
    %328 = arith.truncf %325 : vector<32x128xf32> to vector<32x128xbf16>
    %329 = arith.truncf %327 : vector<128x384xf32> to vector<128x384xbf16>
    %cst_115 = arith.constant dense<0.000000e+00> : vector<32x384xf32>
    %330 = tpu.matmul %328, %329, %cst_115 {dimension_numbers = #tpu.dot_dimension_numbers<[1], [0], [0], [1], [0, 0, 1, 1], [], []>} : vector<32x128xbf16>, vector<128x384xbf16>, vector<32x384xf32> -> vector<32x384xf32>
    %c1_116 = arith.constant 1 : index
    %c0_117 = arith.constant 0 : index
    %c0_118 = arith.constant 0 : index
    %331 = vector.load %arg7[%c1_116, %c0_117, %c0_118] : memref<2x1x384xf32, #tpu.memory_space<vmem>>, vector<1x1x384xf32>
    %332 = vector.shape_cast %331 : vector<1x1x384xf32> to vector<1x384xf32>
    %333 = vector.broadcast %332 : vector<1x384xf32> to vector<32x384xf32>
    %334 = arith.addf %330, %333 : vector<32x384xf32>
    %335 = vector.extract_strided_slice %25 {offsets = [0, 0], sizes = [1, 16], strides = [1, 1]} : vector<2x16xf32> to vector<1x16xf32>
    %336 = vector.extract_strided_slice %334 {offsets = [0, 0], sizes = [16, 32], strides = [1, 1]} : vector<32x384xf32> to vector<16x32xf32>
    %337 = vector.extract_strided_slice %334 {offsets = [0, 128], sizes = [16, 32], strides = [1, 1]} : vector<32x384xf32> to vector<16x32xf32>
    %338 = vector.extract_strided_slice %334 {offsets = [0, 256], sizes = [16, 32], strides = [1, 1]} : vector<32x384xf32> to vector<16x32xf32>
    %339 = arith.truncf %336 : vector<16x32xf32> to vector<16x32xbf16>
    %340 = arith.truncf %337 : vector<16x32xf32> to vector<16x32xbf16>
    %cst_119 = arith.constant dense<0.000000e+00> : vector<16x16xf32>
    %341 = tpu.matmul %339, %340, %cst_119 {dimension_numbers = #tpu.dot_dimension_numbers<[1], [1], [0], [0], [0, 0, 1, 0], [], []>} : vector<16x32xbf16>, vector<16x32xbf16>, vector<16x16xf32> -> vector<16x16xf32>
    %cst_120 = arith.constant 0.176776692 : f32
    %342 = vector.broadcast %cst_120 : f32 to vector<16x16xf32>
    %343 = arith.mulf %341, %342 : vector<16x16xf32>
    %344 = vector.broadcast %335 : vector<1x16xf32> to vector<16x16xf32>
    %345 = arith.addf %343, %344 : vector<16x16xf32>
    %cst_121 = arith.constant dense<0xFF800000> : vector<16xf32>
    %346 = vector.multi_reduction <maximumf>, %345, %cst_121 [1] : vector<16x16xf32> to vector<16xf32>
    %cst_122 = arith.constant 0xFF800000 : f32
    %347 = vector.broadcast %cst_122 : f32 to vector<16xf32>
    %348 = arith.maximumf %347, %346 : vector<16xf32>
    %349 = vector.shape_cast %348 : vector<16xf32> to vector<16x1xf32>
    %350 = vector.broadcast %349 : vector<16x1xf32> to vector<16x16xf32>
    %351 = arith.subf %345, %350 : vector<16x16xf32>
    %352 = math.exp %351 : vector<16x16xf32>
    %cst_123 = arith.constant dense<0.000000e+00> : vector<16xf32>
    %353 = vector.multi_reduction <add>, %352, %cst_123 [1] : vector<16x16xf32> to vector<16xf32>
    %354 = vector.shape_cast %353 : vector<16xf32> to vector<16x1xf32>
    %355 = vector.broadcast %354 : vector<16x1xf32> to vector<16x16xf32>
    %356 = arith.divf %352, %355 : vector<16x16xf32>
    %357 = arith.truncf %356 : vector<16x16xf32> to vector<16x16xbf16>
    %358 = arith.truncf %338 : vector<16x32xf32> to vector<16x32xbf16>
    %cst_124 = arith.constant dense<0.000000e+00> : vector<16x32xf32>
    %359 = tpu.matmul %357, %358, %cst_124 {dimension_numbers = #tpu.dot_dimension_numbers<[1], [0], [0], [1], [0, 0, 1, 1], [], []>} : vector<16x16xbf16>, vector<16x32xbf16>, vector<16x32xf32> -> vector<16x32xf32>
    %360 = vector.extract_strided_slice %334 {offsets = [0, 32], sizes = [16, 32], strides = [1, 1]} : vector<32x384xf32> to vector<16x32xf32>
    %361 = vector.extract_strided_slice %334 {offsets = [0, 160], sizes = [16, 32], strides = [1, 1]} : vector<32x384xf32> to vector<16x32xf32>
    %362 = vector.extract_strided_slice %334 {offsets = [0, 288], sizes = [16, 32], strides = [1, 1]} : vector<32x384xf32> to vector<16x32xf32>
    %363 = arith.truncf %360 : vector<16x32xf32> to vector<16x32xbf16>
    %364 = arith.truncf %361 : vector<16x32xf32> to vector<16x32xbf16>
    %cst_125 = arith.constant dense<0.000000e+00> : vector<16x16xf32>
    %365 = tpu.matmul %363, %364, %cst_125 {dimension_numbers = #tpu.dot_dimension_numbers<[1], [1], [0], [0], [0, 0, 1, 0], [], []>} : vector<16x32xbf16>, vector<16x32xbf16>, vector<16x16xf32> -> vector<16x16xf32>
    %cst_126 = arith.constant 0.176776692 : f32
    %366 = vector.broadcast %cst_126 : f32 to vector<16x16xf32>
    %367 = arith.mulf %365, %366 : vector<16x16xf32>
    %368 = vector.broadcast %335 : vector<1x16xf32> to vector<16x16xf32>
    %369 = arith.addf %367, %368 : vector<16x16xf32>
    %cst_127 = arith.constant dense<0xFF800000> : vector<16xf32>
    %370 = vector.multi_reduction <maximumf>, %369, %cst_127 [1] : vector<16x16xf32> to vector<16xf32>
    %cst_128 = arith.constant 0xFF800000 : f32
    %371 = vector.broadcast %cst_128 : f32 to vector<16xf32>
    %372 = arith.maximumf %371, %370 : vector<16xf32>
    %373 = vector.shape_cast %372 : vector<16xf32> to vector<16x1xf32>
    %374 = vector.broadcast %373 : vector<16x1xf32> to vector<16x16xf32>
    %375 = arith.subf %369, %374 : vector<16x16xf32>
    %376 = math.exp %375 : vector<16x16xf32>
    %cst_129 = arith.constant dense<0.000000e+00> : vector<16xf32>
    %377 = vector.multi_reduction <add>, %376, %cst_129 [1] : vector<16x16xf32> to vector<16xf32>
    %378 = vector.shape_cast %377 : vector<16xf32> to vector<16x1xf32>
    %379 = vector.broadcast %378 : vector<16x1xf32> to vector<16x16xf32>
    %380 = arith.divf %376, %379 : vector<16x16xf32>
    %381 = arith.truncf %380 : vector<16x16xf32> to vector<16x16xbf16>
    %382 = arith.truncf %362 : vector<16x32xf32> to vector<16x32xbf16>
    %cst_130 = arith.constant dense<0.000000e+00> : vector<16x32xf32>
    %383 = tpu.matmul %381, %382, %cst_130 {dimension_numbers = #tpu.dot_dimension_numbers<[1], [0], [0], [1], [0, 0, 1, 1], [], []>} : vector<16x16xbf16>, vector<16x32xbf16>, vector<16x32xf32> -> vector<16x32xf32>
    %384 = vector.extract_strided_slice %334 {offsets = [0, 64], sizes = [16, 32], strides = [1, 1]} : vector<32x384xf32> to vector<16x32xf32>
    %385 = vector.extract_strided_slice %334 {offsets = [0, 192], sizes = [16, 32], strides = [1, 1]} : vector<32x384xf32> to vector<16x32xf32>
    %386 = vector.extract_strided_slice %334 {offsets = [0, 320], sizes = [16, 32], strides = [1, 1]} : vector<32x384xf32> to vector<16x32xf32>
    %387 = arith.truncf %384 : vector<16x32xf32> to vector<16x32xbf16>
    %388 = arith.truncf %385 : vector<16x32xf32> to vector<16x32xbf16>
    %cst_131 = arith.constant dense<0.000000e+00> : vector<16x16xf32>
    %389 = tpu.matmul %387, %388, %cst_131 {dimension_numbers = #tpu.dot_dimension_numbers<[1], [1], [0], [0], [0, 0, 1, 0], [], []>} : vector<16x32xbf16>, vector<16x32xbf16>, vector<16x16xf32> -> vector<16x16xf32>
    %cst_132 = arith.constant 0.176776692 : f32
    %390 = vector.broadcast %cst_132 : f32 to vector<16x16xf32>
    %391 = arith.mulf %389, %390 : vector<16x16xf32>
    %392 = vector.broadcast %335 : vector<1x16xf32> to vector<16x16xf32>
    %393 = arith.addf %391, %392 : vector<16x16xf32>
    %cst_133 = arith.constant dense<0xFF800000> : vector<16xf32>
    %394 = vector.multi_reduction <maximumf>, %393, %cst_133 [1] : vector<16x16xf32> to vector<16xf32>
    %cst_134 = arith.constant 0xFF800000 : f32
    %395 = vector.broadcast %cst_134 : f32 to vector<16xf32>
    %396 = arith.maximumf %395, %394 : vector<16xf32>
    %397 = vector.shape_cast %396 : vector<16xf32> to vector<16x1xf32>
    %398 = vector.broadcast %397 : vector<16x1xf32> to vector<16x16xf32>
    %399 = arith.subf %393, %398 : vector<16x16xf32>
    %400 = math.exp %399 : vector<16x16xf32>
    %cst_135 = arith.constant dense<0.000000e+00> : vector<16xf32>
    %401 = vector.multi_reduction <add>, %400, %cst_135 [1] : vector<16x16xf32> to vector<16xf32>
    %402 = vector.shape_cast %401 : vector<16xf32> to vector<16x1xf32>
    %403 = vector.broadcast %402 : vector<16x1xf32> to vector<16x16xf32>
    %404 = arith.divf %400, %403 : vector<16x16xf32>
    %405 = arith.truncf %404 : vector<16x16xf32> to vector<16x16xbf16>
    %406 = arith.truncf %386 : vector<16x32xf32> to vector<16x32xbf16>
    %cst_136 = arith.constant dense<0.000000e+00> : vector<16x32xf32>
    %407 = tpu.matmul %405, %406, %cst_136 {dimension_numbers = #tpu.dot_dimension_numbers<[1], [0], [0], [1], [0, 0, 1, 1], [], []>} : vector<16x16xbf16>, vector<16x32xbf16>, vector<16x32xf32> -> vector<16x32xf32>
    %408 = vector.extract_strided_slice %334 {offsets = [0, 96], sizes = [16, 32], strides = [1, 1]} : vector<32x384xf32> to vector<16x32xf32>
    %409 = vector.extract_strided_slice %334 {offsets = [0, 224], sizes = [16, 32], strides = [1, 1]} : vector<32x384xf32> to vector<16x32xf32>
    %410 = vector.extract_strided_slice %334 {offsets = [0, 352], sizes = [16, 32], strides = [1, 1]} : vector<32x384xf32> to vector<16x32xf32>
    %411 = arith.truncf %408 : vector<16x32xf32> to vector<16x32xbf16>
    %412 = arith.truncf %409 : vector<16x32xf32> to vector<16x32xbf16>
    %cst_137 = arith.constant dense<0.000000e+00> : vector<16x16xf32>
    %413 = tpu.matmul %411, %412, %cst_137 {dimension_numbers = #tpu.dot_dimension_numbers<[1], [1], [0], [0], [0, 0, 1, 0], [], []>} : vector<16x32xbf16>, vector<16x32xbf16>, vector<16x16xf32> -> vector<16x16xf32>
    %cst_138 = arith.constant 0.176776692 : f32
    %414 = vector.broadcast %cst_138 : f32 to vector<16x16xf32>
    %415 = arith.mulf %413, %414 : vector<16x16xf32>
    %416 = vector.broadcast %335 : vector<1x16xf32> to vector<16x16xf32>
    %417 = arith.addf %415, %416 : vector<16x16xf32>
    %cst_139 = arith.constant dense<0xFF800000> : vector<16xf32>
    %418 = vector.multi_reduction <maximumf>, %417, %cst_139 [1] : vector<16x16xf32> to vector<16xf32>
    %cst_140 = arith.constant 0xFF800000 : f32
    %419 = vector.broadcast %cst_140 : f32 to vector<16xf32>
    %420 = arith.maximumf %419, %418 : vector<16xf32>
    %421 = vector.shape_cast %420 : vector<16xf32> to vector<16x1xf32>
    %422 = vector.broadcast %421 : vector<16x1xf32> to vector<16x16xf32>
    %423 = arith.subf %417, %422 : vector<16x16xf32>
    %424 = math.exp %423 : vector<16x16xf32>
    %cst_141 = arith.constant dense<0.000000e+00> : vector<16xf32>
    %425 = vector.multi_reduction <add>, %424, %cst_141 [1] : vector<16x16xf32> to vector<16xf32>
    %426 = vector.shape_cast %425 : vector<16xf32> to vector<16x1xf32>
    %427 = vector.broadcast %426 : vector<16x1xf32> to vector<16x16xf32>
    %428 = arith.divf %424, %427 : vector<16x16xf32>
    %429 = arith.truncf %428 : vector<16x16xf32> to vector<16x16xbf16>
    %430 = arith.truncf %410 : vector<16x32xf32> to vector<16x32xbf16>
    %cst_142 = arith.constant dense<0.000000e+00> : vector<16x32xf32>
    %431 = tpu.matmul %429, %430, %cst_142 {dimension_numbers = #tpu.dot_dimension_numbers<[1], [0], [0], [1], [0, 0, 1, 1], [], []>} : vector<16x16xbf16>, vector<16x32xbf16>, vector<16x32xf32> -> vector<16x32xf32>
    %432 = tpu.concatenate %359, %383, %407, %431 in 1 : vector<16x32xf32>, vector<16x32xf32>, vector<16x32xf32>, vector<16x32xf32> -> vector<16x128xf32>
    %433 = vector.extract_strided_slice %25 {offsets = [1, 0], sizes = [1, 16], strides = [1, 1]} : vector<2x16xf32> to vector<1x16xf32>
    %434 = vector.extract_strided_slice %334 {offsets = [16, 0], sizes = [16, 32], strides = [1, 1]} : vector<32x384xf32> to vector<16x32xf32>
    %435 = vector.extract_strided_slice %334 {offsets = [16, 128], sizes = [16, 32], strides = [1, 1]} : vector<32x384xf32> to vector<16x32xf32>
    %436 = vector.extract_strided_slice %334 {offsets = [16, 256], sizes = [16, 32], strides = [1, 1]} : vector<32x384xf32> to vector<16x32xf32>
    %437 = arith.truncf %434 : vector<16x32xf32> to vector<16x32xbf16>
    %438 = arith.truncf %435 : vector<16x32xf32> to vector<16x32xbf16>
    %cst_143 = arith.constant dense<0.000000e+00> : vector<16x16xf32>
    %439 = tpu.matmul %437, %438, %cst_143 {dimension_numbers = #tpu.dot_dimension_numbers<[1], [1], [0], [0], [0, 0, 1, 0], [], []>} : vector<16x32xbf16>, vector<16x32xbf16>, vector<16x16xf32> -> vector<16x16xf32>
    %cst_144 = arith.constant 0.176776692 : f32
    %440 = vector.broadcast %cst_144 : f32 to vector<16x16xf32>
    %441 = arith.mulf %439, %440 : vector<16x16xf32>
    %442 = vector.broadcast %433 : vector<1x16xf32> to vector<16x16xf32>
    %443 = arith.addf %441, %442 : vector<16x16xf32>
    %cst_145 = arith.constant dense<0xFF800000> : vector<16xf32>
    %444 = vector.multi_reduction <maximumf>, %443, %cst_145 [1] : vector<16x16xf32> to vector<16xf32>
    %cst_146 = arith.constant 0xFF800000 : f32
    %445 = vector.broadcast %cst_146 : f32 to vector<16xf32>
    %446 = arith.maximumf %445, %444 : vector<16xf32>
    %447 = vector.shape_cast %446 : vector<16xf32> to vector<16x1xf32>
    %448 = vector.broadcast %447 : vector<16x1xf32> to vector<16x16xf32>
    %449 = arith.subf %443, %448 : vector<16x16xf32>
    %450 = math.exp %449 : vector<16x16xf32>
    %cst_147 = arith.constant dense<0.000000e+00> : vector<16xf32>
    %451 = vector.multi_reduction <add>, %450, %cst_147 [1] : vector<16x16xf32> to vector<16xf32>
    %452 = vector.shape_cast %451 : vector<16xf32> to vector<16x1xf32>
    %453 = vector.broadcast %452 : vector<16x1xf32> to vector<16x16xf32>
    %454 = arith.divf %450, %453 : vector<16x16xf32>
    %455 = arith.truncf %454 : vector<16x16xf32> to vector<16x16xbf16>
    %456 = arith.truncf %436 : vector<16x32xf32> to vector<16x32xbf16>
    %cst_148 = arith.constant dense<0.000000e+00> : vector<16x32xf32>
    %457 = tpu.matmul %455, %456, %cst_148 {dimension_numbers = #tpu.dot_dimension_numbers<[1], [0], [0], [1], [0, 0, 1, 1], [], []>} : vector<16x16xbf16>, vector<16x32xbf16>, vector<16x32xf32> -> vector<16x32xf32>
    %458 = vector.extract_strided_slice %334 {offsets = [16, 32], sizes = [16, 32], strides = [1, 1]} : vector<32x384xf32> to vector<16x32xf32>
    %459 = vector.extract_strided_slice %334 {offsets = [16, 160], sizes = [16, 32], strides = [1, 1]} : vector<32x384xf32> to vector<16x32xf32>
    %460 = vector.extract_strided_slice %334 {offsets = [16, 288], sizes = [16, 32], strides = [1, 1]} : vector<32x384xf32> to vector<16x32xf32>
    %461 = arith.truncf %458 : vector<16x32xf32> to vector<16x32xbf16>
    %462 = arith.truncf %459 : vector<16x32xf32> to vector<16x32xbf16>
    %cst_149 = arith.constant dense<0.000000e+00> : vector<16x16xf32>
    %463 = tpu.matmul %461, %462, %cst_149 {dimension_numbers = #tpu.dot_dimension_numbers<[1], [1], [0], [0], [0, 0, 1, 0], [], []>} : vector<16x32xbf16>, vector<16x32xbf16>, vector<16x16xf32> -> vector<16x16xf32>
    %cst_150 = arith.constant 0.176776692 : f32
    %464 = vector.broadcast %cst_150 : f32 to vector<16x16xf32>
    %465 = arith.mulf %463, %464 : vector<16x16xf32>
    %466 = vector.broadcast %433 : vector<1x16xf32> to vector<16x16xf32>
    %467 = arith.addf %465, %466 : vector<16x16xf32>
    %cst_151 = arith.constant dense<0xFF800000> : vector<16xf32>
    %468 = vector.multi_reduction <maximumf>, %467, %cst_151 [1] : vector<16x16xf32> to vector<16xf32>
    %cst_152 = arith.constant 0xFF800000 : f32
    %469 = vector.broadcast %cst_152 : f32 to vector<16xf32>
    %470 = arith.maximumf %469, %468 : vector<16xf32>
    %471 = vector.shape_cast %470 : vector<16xf32> to vector<16x1xf32>
    %472 = vector.broadcast %471 : vector<16x1xf32> to vector<16x16xf32>
    %473 = arith.subf %467, %472 : vector<16x16xf32>
    %474 = math.exp %473 : vector<16x16xf32>
    %cst_153 = arith.constant dense<0.000000e+00> : vector<16xf32>
    %475 = vector.multi_reduction <add>, %474, %cst_153 [1] : vector<16x16xf32> to vector<16xf32>
    %476 = vector.shape_cast %475 : vector<16xf32> to vector<16x1xf32>
    %477 = vector.broadcast %476 : vector<16x1xf32> to vector<16x16xf32>
    %478 = arith.divf %474, %477 : vector<16x16xf32>
    %479 = arith.truncf %478 : vector<16x16xf32> to vector<16x16xbf16>
    %480 = arith.truncf %460 : vector<16x32xf32> to vector<16x32xbf16>
    %cst_154 = arith.constant dense<0.000000e+00> : vector<16x32xf32>
    %481 = tpu.matmul %479, %480, %cst_154 {dimension_numbers = #tpu.dot_dimension_numbers<[1], [0], [0], [1], [0, 0, 1, 1], [], []>} : vector<16x16xbf16>, vector<16x32xbf16>, vector<16x32xf32> -> vector<16x32xf32>
    %482 = vector.extract_strided_slice %334 {offsets = [16, 64], sizes = [16, 32], strides = [1, 1]} : vector<32x384xf32> to vector<16x32xf32>
    %483 = vector.extract_strided_slice %334 {offsets = [16, 192], sizes = [16, 32], strides = [1, 1]} : vector<32x384xf32> to vector<16x32xf32>
    %484 = vector.extract_strided_slice %334 {offsets = [16, 320], sizes = [16, 32], strides = [1, 1]} : vector<32x384xf32> to vector<16x32xf32>
    %485 = arith.truncf %482 : vector<16x32xf32> to vector<16x32xbf16>
    %486 = arith.truncf %483 : vector<16x32xf32> to vector<16x32xbf16>
    %cst_155 = arith.constant dense<0.000000e+00> : vector<16x16xf32>
    %487 = tpu.matmul %485, %486, %cst_155 {dimension_numbers = #tpu.dot_dimension_numbers<[1], [1], [0], [0], [0, 0, 1, 0], [], []>} : vector<16x32xbf16>, vector<16x32xbf16>, vector<16x16xf32> -> vector<16x16xf32>
    %cst_156 = arith.constant 0.176776692 : f32
    %488 = vector.broadcast %cst_156 : f32 to vector<16x16xf32>
    %489 = arith.mulf %487, %488 : vector<16x16xf32>
    %490 = vector.broadcast %433 : vector<1x16xf32> to vector<16x16xf32>
    %491 = arith.addf %489, %490 : vector<16x16xf32>
    %cst_157 = arith.constant dense<0xFF800000> : vector<16xf32>
    %492 = vector.multi_reduction <maximumf>, %491, %cst_157 [1] : vector<16x16xf32> to vector<16xf32>
    %cst_158 = arith.constant 0xFF800000 : f32
    %493 = vector.broadcast %cst_158 : f32 to vector<16xf32>
    %494 = arith.maximumf %493, %492 : vector<16xf32>
    %495 = vector.shape_cast %494 : vector<16xf32> to vector<16x1xf32>
    %496 = vector.broadcast %495 : vector<16x1xf32> to vector<16x16xf32>
    %497 = arith.subf %491, %496 : vector<16x16xf32>
    %498 = math.exp %497 : vector<16x16xf32>
    %cst_159 = arith.constant dense<0.000000e+00> : vector<16xf32>
    %499 = vector.multi_reduction <add>, %498, %cst_159 [1] : vector<16x16xf32> to vector<16xf32>
    %500 = vector.shape_cast %499 : vector<16xf32> to vector<16x1xf32>
    %501 = vector.broadcast %500 : vector<16x1xf32> to vector<16x16xf32>
    %502 = arith.divf %498, %501 : vector<16x16xf32>
    %503 = arith.truncf %502 : vector<16x16xf32> to vector<16x16xbf16>
    %504 = arith.truncf %484 : vector<16x32xf32> to vector<16x32xbf16>
    %cst_160 = arith.constant dense<0.000000e+00> : vector<16x32xf32>
    %505 = tpu.matmul %503, %504, %cst_160 {dimension_numbers = #tpu.dot_dimension_numbers<[1], [0], [0], [1], [0, 0, 1, 1], [], []>} : vector<16x16xbf16>, vector<16x32xbf16>, vector<16x32xf32> -> vector<16x32xf32>
    %506 = vector.extract_strided_slice %334 {offsets = [16, 96], sizes = [16, 32], strides = [1, 1]} : vector<32x384xf32> to vector<16x32xf32>
    %507 = vector.extract_strided_slice %334 {offsets = [16, 224], sizes = [16, 32], strides = [1, 1]} : vector<32x384xf32> to vector<16x32xf32>
    %508 = vector.extract_strided_slice %334 {offsets = [16, 352], sizes = [16, 32], strides = [1, 1]} : vector<32x384xf32> to vector<16x32xf32>
    %509 = arith.truncf %506 : vector<16x32xf32> to vector<16x32xbf16>
    %510 = arith.truncf %507 : vector<16x32xf32> to vector<16x32xbf16>
    %cst_161 = arith.constant dense<0.000000e+00> : vector<16x16xf32>
    %511 = tpu.matmul %509, %510, %cst_161 {dimension_numbers = #tpu.dot_dimension_numbers<[1], [1], [0], [0], [0, 0, 1, 0], [], []>} : vector<16x32xbf16>, vector<16x32xbf16>, vector<16x16xf32> -> vector<16x16xf32>
    %cst_162 = arith.constant 0.176776692 : f32
    %512 = vector.broadcast %cst_162 : f32 to vector<16x16xf32>
    %513 = arith.mulf %511, %512 : vector<16x16xf32>
    %514 = vector.broadcast %433 : vector<1x16xf32> to vector<16x16xf32>
    %515 = arith.addf %513, %514 : vector<16x16xf32>
    %cst_163 = arith.constant dense<0xFF800000> : vector<16xf32>
    %516 = vector.multi_reduction <maximumf>, %515, %cst_163 [1] : vector<16x16xf32> to vector<16xf32>
    %cst_164 = arith.constant 0xFF800000 : f32
    %517 = vector.broadcast %cst_164 : f32 to vector<16xf32>
    %518 = arith.maximumf %517, %516 : vector<16xf32>
    %519 = vector.shape_cast %518 : vector<16xf32> to vector<16x1xf32>
    %520 = vector.broadcast %519 : vector<16x1xf32> to vector<16x16xf32>
    %521 = arith.subf %515, %520 : vector<16x16xf32>
    %522 = math.exp %521 : vector<16x16xf32>
    %cst_165 = arith.constant dense<0.000000e+00> : vector<16xf32>
    %523 = vector.multi_reduction <add>, %522, %cst_165 [1] : vector<16x16xf32> to vector<16xf32>
    %524 = vector.shape_cast %523 : vector<16xf32> to vector<16x1xf32>
    %525 = vector.broadcast %524 : vector<16x1xf32> to vector<16x16xf32>
    %526 = arith.divf %522, %525 : vector<16x16xf32>
    %527 = arith.truncf %526 : vector<16x16xf32> to vector<16x16xbf16>
    %528 = arith.truncf %508 : vector<16x32xf32> to vector<16x32xbf16>
    %cst_166 = arith.constant dense<0.000000e+00> : vector<16x32xf32>
    %529 = tpu.matmul %527, %528, %cst_166 {dimension_numbers = #tpu.dot_dimension_numbers<[1], [0], [0], [1], [0, 0, 1, 1], [], []>} : vector<16x16xbf16>, vector<16x32xbf16>, vector<16x32xf32> -> vector<16x32xf32>
    %530 = tpu.concatenate %457, %481, %505, %529 in 1 : vector<16x32xf32>, vector<16x32xf32>, vector<16x32xf32>, vector<16x32xf32> -> vector<16x128xf32>
    %531 = tpu.concatenate %432, %530 in 0 : vector<16x128xf32>, vector<16x128xf32> -> vector<32x128xf32>
    %c1_167 = arith.constant 1 : index
    %c0_168 = arith.constant 0 : index
    %c0_169 = arith.constant 0 : index
    %532 = vector.load %arg8[%c1_167, %c0_168, %c0_169] : memref<2x128x128xf32, #tpu.memory_space<vmem>>, vector<1x128x128xf32>
    %533 = vector.shape_cast %532 : vector<1x128x128xf32> to vector<128x128xf32>
    %534 = arith.truncf %531 : vector<32x128xf32> to vector<32x128xbf16>
    %535 = arith.truncf %533 : vector<128x128xf32> to vector<128x128xbf16>
    %cst_170 = arith.constant dense<0.000000e+00> : vector<32x128xf32>
    %536 = tpu.matmul %534, %535, %cst_170 {dimension_numbers = #tpu.dot_dimension_numbers<[1], [0], [0], [1], [0, 0, 1, 1], [], []>} : vector<32x128xbf16>, vector<128x128xbf16>, vector<32x128xf32> -> vector<32x128xf32>
    %c1_171 = arith.constant 1 : index
    %c0_172 = arith.constant 0 : index
    %c0_173 = arith.constant 0 : index
    %537 = vector.load %arg9[%c1_171, %c0_172, %c0_173] : memref<2x1x128xf32, #tpu.memory_space<vmem>>, vector<1x1x128xf32>
    %538 = vector.shape_cast %537 : vector<1x1x128xf32> to vector<1x128xf32>
    %539 = vector.broadcast %538 : vector<1x128xf32> to vector<32x128xf32>
    %540 = arith.addf %536, %539 : vector<32x128xf32>
    %541 = arith.addf %325, %540 : vector<32x128xf32>
    %c1_174 = arith.constant 1 : index
    %c0_175 = arith.constant 0 : index
    %c0_176 = arith.constant 0 : index
    %542 = vector.load %arg10[%c1_174, %c0_175, %c0_176] : memref<2x1x128xf32, #tpu.memory_space<vmem>>, vector<1x1x128xf32>
    %543 = vector.shape_cast %542 : vector<1x1x128xf32> to vector<1x128xf32>
    %c1_177 = arith.constant 1 : index
    %c0_178 = arith.constant 0 : index
    %c0_179 = arith.constant 0 : index
    %544 = vector.load %arg11[%c1_177, %c0_178, %c0_179] : memref<2x1x128xf32, #tpu.memory_space<vmem>>, vector<1x1x128xf32>
    %545 = vector.shape_cast %544 : vector<1x1x128xf32> to vector<1x128xf32>
    %cst_180 = arith.constant dense<0.000000e+00> : vector<32xf32>
    %546 = vector.multi_reduction <add>, %541, %cst_180 [1] : vector<32x128xf32> to vector<32xf32>
    %547 = vector.shape_cast %546 : vector<32xf32> to vector<32x1xf32>
    %cst_181 = arith.constant 1.280000e+02 : f32
    %548 = vector.broadcast %cst_181 : f32 to vector<32x1xf32>
    %549 = arith.divf %547, %548 : vector<32x1xf32>
    %550 = vector.broadcast %549 : vector<32x1xf32> to vector<32x128xf32>
    %551 = arith.subf %541, %550 : vector<32x128xf32>
    %552 = arith.mulf %551, %551 : vector<32x128xf32>
    %cst_182 = arith.constant dense<0.000000e+00> : vector<32xf32>
    %553 = vector.multi_reduction <add>, %552, %cst_182 [1] : vector<32x128xf32> to vector<32xf32>
    %554 = vector.shape_cast %553 : vector<32xf32> to vector<32x1xf32>
    %cst_183 = arith.constant 1.280000e+02 : f32
    %555 = vector.broadcast %cst_183 : f32 to vector<32x1xf32>
    %556 = arith.divf %554, %555 : vector<32x1xf32>
    %557 = vector.broadcast %549 : vector<32x1xf32> to vector<32x128xf32>
    %558 = arith.subf %541, %557 : vector<32x128xf32>
    %cst_184 = arith.constant 9.99999996E-13 : f32
    %559 = vector.broadcast %cst_184 : f32 to vector<32x1xf32>
    %560 = arith.addf %556, %559 : vector<32x1xf32>
    %561 = math.rsqrt %560 : vector<32x1xf32>
    %562 = vector.broadcast %561 : vector<32x1xf32> to vector<32x128xf32>
    %563 = arith.mulf %558, %562 : vector<32x128xf32>
    %564 = vector.broadcast %543 : vector<1x128xf32> to vector<32x128xf32>
    %565 = arith.mulf %563, %564 : vector<32x128xf32>
    %566 = vector.broadcast %545 : vector<1x128xf32> to vector<32x128xf32>
    %567 = arith.addf %565, %566 : vector<32x128xf32>
    %c1_185 = arith.constant 1 : index
    %c0_186 = arith.constant 0 : index
    %c0_187 = arith.constant 0 : index
    %568 = vector.load %arg12[%c1_185, %c0_186, %c0_187] : memref<2x128x512xf32, #tpu.memory_space<vmem>>, vector<1x128x512xf32>
    %569 = vector.shape_cast %568 : vector<1x128x512xf32> to vector<128x512xf32>
    %570 = arith.truncf %567 : vector<32x128xf32> to vector<32x128xbf16>
    %571 = arith.truncf %569 : vector<128x512xf32> to vector<128x512xbf16>
    %cst_188 = arith.constant dense<0.000000e+00> : vector<32x512xf32>
    %572 = tpu.matmul %570, %571, %cst_188 {dimension_numbers = #tpu.dot_dimension_numbers<[1], [0], [0], [1], [0, 0, 1, 1], [], []>} : vector<32x128xbf16>, vector<128x512xbf16>, vector<32x512xf32> -> vector<32x512xf32>
    %c1_189 = arith.constant 1 : index
    %c0_190 = arith.constant 0 : index
    %c0_191 = arith.constant 0 : index
    %573 = vector.load %arg13[%c1_189, %c0_190, %c0_191] : memref<2x1x512xf32, #tpu.memory_space<vmem>>, vector<1x1x512xf32>
    %574 = vector.shape_cast %573 : vector<1x1x512xf32> to vector<1x512xf32>
    %575 = vector.broadcast %574 : vector<1x512xf32> to vector<32x512xf32>
    %576 = arith.addf %572, %575 : vector<32x512xf32>
    %cst_192 = arith.constant 5.000000e-01 : f32
    %577 = vector.broadcast %cst_192 : f32 to vector<32x512xf32>
    %578 = arith.mulf %577, %576 : vector<32x512xf32>
    %cst_193 = arith.constant 4.471500e-02 : f32
    %579 = vector.broadcast %cst_193 : f32 to vector<32x512xf32>
    %580 = arith.mulf %579, %576 : vector<32x512xf32>
    %581 = arith.mulf %580, %576 : vector<32x512xf32>
    %582 = arith.mulf %581, %576 : vector<32x512xf32>
    %583 = arith.addf %576, %582 : vector<32x512xf32>
    %cst_194 = arith.constant 0.797884583 : f32
    %584 = vector.broadcast %cst_194 : f32 to vector<32x512xf32>
    %585 = arith.mulf %584, %583 : vector<32x512xf32>
    %586 = math.tanh %585 : vector<32x512xf32>
    %cst_195 = arith.constant 1.000000e+00 : f32
    %587 = vector.broadcast %cst_195 : f32 to vector<32x512xf32>
    %588 = arith.addf %587, %586 : vector<32x512xf32>
    %589 = arith.mulf %578, %588 : vector<32x512xf32>
    %c1_196 = arith.constant 1 : index
    %c0_197 = arith.constant 0 : index
    %c0_198 = arith.constant 0 : index
    %590 = vector.load %arg14[%c1_196, %c0_197, %c0_198] : memref<2x512x128xf32, #tpu.memory_space<vmem>>, vector<1x512x128xf32>
    %591 = vector.shape_cast %590 : vector<1x512x128xf32> to vector<512x128xf32>
    %592 = arith.truncf %589 : vector<32x512xf32> to vector<32x512xbf16>
    %593 = arith.truncf %591 : vector<512x128xf32> to vector<512x128xbf16>
    %cst_199 = arith.constant dense<0.000000e+00> : vector<32x128xf32>
    %594 = tpu.matmul %592, %593, %cst_199 {dimension_numbers = #tpu.dot_dimension_numbers<[1], [0], [0], [1], [0, 0, 1, 1], [], []>} : vector<32x512xbf16>, vector<512x128xbf16>, vector<32x128xf32> -> vector<32x128xf32>
    %c1_200 = arith.constant 1 : index
    %c0_201 = arith.constant 0 : index
    %c0_202 = arith.constant 0 : index
    %595 = vector.load %arg15[%c1_200, %c0_201, %c0_202] : memref<2x1x128xf32, #tpu.memory_space<vmem>>, vector<1x1x128xf32>
    %596 = vector.shape_cast %595 : vector<1x1x128xf32> to vector<1x128xf32>
    %597 = vector.broadcast %596 : vector<1x128xf32> to vector<32x128xf32>
    %598 = arith.addf %594, %597 : vector<32x128xf32>
    %599 = arith.addf %567, %598 : vector<32x128xf32>
    %c1_203 = arith.constant 1 : index
    %c0_204 = arith.constant 0 : index
    %c0_205 = arith.constant 0 : index
    %600 = vector.load %arg16[%c1_203, %c0_204, %c0_205] : memref<2x1x128xf32, #tpu.memory_space<vmem>>, vector<1x1x128xf32>
    %601 = vector.shape_cast %600 : vector<1x1x128xf32> to vector<1x128xf32>
    %c1_206 = arith.constant 1 : index
    %c0_207 = arith.constant 0 : index
    %c0_208 = arith.constant 0 : index
    %602 = vector.load %arg17[%c1_206, %c0_207, %c0_208] : memref<2x1x128xf32, #tpu.memory_space<vmem>>, vector<1x1x128xf32>
    %603 = vector.shape_cast %602 : vector<1x1x128xf32> to vector<1x128xf32>
    %cst_209 = arith.constant dense<0.000000e+00> : vector<32xf32>
    %604 = vector.multi_reduction <add>, %599, %cst_209 [1] : vector<32x128xf32> to vector<32xf32>
    %605 = vector.shape_cast %604 : vector<32xf32> to vector<32x1xf32>
    %cst_210 = arith.constant 1.280000e+02 : f32
    %606 = vector.broadcast %cst_210 : f32 to vector<32x1xf32>
    %607 = arith.divf %605, %606 : vector<32x1xf32>
    %608 = vector.broadcast %607 : vector<32x1xf32> to vector<32x128xf32>
    %609 = arith.subf %599, %608 : vector<32x128xf32>
    %610 = arith.mulf %609, %609 : vector<32x128xf32>
    %cst_211 = arith.constant dense<0.000000e+00> : vector<32xf32>
    %611 = vector.multi_reduction <add>, %610, %cst_211 [1] : vector<32x128xf32> to vector<32xf32>
    %612 = vector.shape_cast %611 : vector<32xf32> to vector<32x1xf32>
    %cst_212 = arith.constant 1.280000e+02 : f32
    %613 = vector.broadcast %cst_212 : f32 to vector<32x1xf32>
    %614 = arith.divf %612, %613 : vector<32x1xf32>
    %615 = vector.broadcast %607 : vector<32x1xf32> to vector<32x128xf32>
    %616 = arith.subf %599, %615 : vector<32x128xf32>
    %cst_213 = arith.constant 9.99999996E-13 : f32
    %617 = vector.broadcast %cst_213 : f32 to vector<32x1xf32>
    %618 = arith.addf %614, %617 : vector<32x1xf32>
    %619 = math.rsqrt %618 : vector<32x1xf32>
    %620 = vector.broadcast %619 : vector<32x1xf32> to vector<32x128xf32>
    %621 = arith.mulf %616, %620 : vector<32x128xf32>
    %622 = vector.broadcast %601 : vector<1x128xf32> to vector<32x128xf32>
    %623 = arith.mulf %621, %622 : vector<32x128xf32>
    %624 = vector.broadcast %603 : vector<1x128xf32> to vector<32x128xf32>
    %625 = arith.addf %623, %624 : vector<32x128xf32>
    %c0_214 = arith.constant 0 : index
    %c0_215 = arith.constant 0 : index
    %626 = vector.load %arg2[%c0_214, %c0_215] : memref<16x32xf32, #tpu.memory_space<vmem>>, vector<16x32xf32>
    %627 = arith.truncf %626 : vector<16x32xf32> to vector<16x32xbf16>
    %628 = arith.truncf %625 : vector<32x128xf32> to vector<32x128xbf16>
    %cst_216 = arith.constant dense<0.000000e+00> : vector<16x128xf32>
    %629 = tpu.matmul %627, %628, %cst_216 {dimension_numbers = #tpu.dot_dimension_numbers<[1], [0], [0], [1], [0, 0, 1, 1], [], []>} : vector<16x32xbf16>, vector<32x128xbf16>, vector<16x128xf32> -> vector<16x128xf32>
    %c0_217 = arith.constant 0 : index
    %c0_218 = arith.constant 0 : index
    %630 = vector.load %arg18[%c0_217, %c0_218] : memref<16x128xf32, #tpu.memory_space<vmem>>, vector<16x128xf32>
    tpu.vector_store %arg18[%c0_217, %c0_218], %629 {strides = array<i32>} : memref<16x128xf32, #tpu.memory_space<vmem>>, vector<16x128xf32>,
    %c0_219 = arith.constant 0 : index
    %c0_220 = arith.constant 0 : index
    %631 = vector.load %arg3[%c0_219, %c0_220] : memref<16x128xf32, #tpu.memory_space<vmem>>, vector<16x128xf32>
    %cst_221 = arith.constant 5.000000e-01 : f32
    %632 = vector.broadcast %cst_221 : f32 to vector<16x128xf32>
    %633 = arith.cmpf oge, %631, %632 : vector<16x128xf32>
    %634 = arith.extui %633 : vector<16x128xi1> to vector<16x128xi32>
    %635 = arith.sitofp %634 : vector<16x128xi32> to vector<16x128xf32>
    %636 = arith.mulf %629, %635 : vector<16x128xf32>
    %cst_222 = arith.constant 2.000000e+00 : f32
    %637 = vector.broadcast %cst_222 : f32 to vector<16x128xf32>
    %638 = arith.mulf %636, %637 : vector<16x128xf32>
    %c0_223 = arith.constant 0 : index
    %c0_224 = arith.constant 0 : index
    %639 = vector.load %arg19[%c0_223, %c0_224] : memref<16x128xf32, #tpu.memory_space<vmem>>, vector<16x128xf32>
    tpu.vector_store %arg19[%c0_223, %c0_224], %638 {strides = array<i32>} : memref<16x128xf32, #tpu.memory_space<vmem>>, vector<16x128xf32>,
    return
  }
}

</mosaic_0001>

<llo_original>
// kernel: bert_embedding_forward.1
$region0: #{bert_embedding_forward.1}
  #allocation0 [shape = 'u32[]', space=smem, size = 0x4, offset = 0x4, fixed_abs, tag = 'smem constant byte address 0x4 - core index']
  #allocation1 [shape = 'u32[144,128]{1,0:T(1,128)}', space=vmem, size = 0x12000, scoped, tag = 'internal scratch']
  %s0 = inlined_call_operand.vmem [shape: f32[32,128], index: 0, kind: input, shape index: {}]
  %s1 = inlined_call_operand.vmem [shape: f32[2,16], index: 1, kind: input, shape index: {}]
  %s2 = inlined_call_operand.vmem [shape: f32[16,32], index: 2, kind: input, shape index: {}]
  %s3 = inlined_call_operand.vmem [shape: f32[16,128], index: 3, kind: input, shape index: {}]
  %s4 = inlined_call_operand.vmem [shape: f32[1,128], index: 4, kind: input, shape index: {}]
  %s5 = inlined_call_operand.vmem [shape: f32[1,128], index: 5, kind: input, shape index: {}]
  %s6 = inlined_call_operand.hbm [shape: f32[2,128,384], index: 6, kind: input, shape index: {}]
  %s7 = inlined_call_operand.vmem [shape: f32[2,1,384], index: 7, kind: input, shape index: {}]
  %s8 = inlined_call_operand.vmem [shape: f32[2,128,128], index: 8, kind: input, shape index: {}]
  %s9 = inlined_call_operand.vmem [shape: f32[2,1,128], index: 9, kind: input, shape index: {}]
  %s10 = inlined_call_operand.vmem [shape: f32[2,1,128], index: 10, kind: input, shape index: {}]
  %s11 = inlined_call_operand.vmem [shape: f32[2,1,128], index: 11, kind: input, shape index: {}]
  %s12 = inlined_call_operand.hbm [shape: f32[2,128,512], index: 12, kind: input, shape index: {}]
  %s13 = inlined_call_operand.vmem [shape: f32[2,1,512], index: 13, kind: input, shape index: {}]
  %s14 = inlined_call_operand.hbm [shape: f32[2,512,128], index: 14, kind: input, shape index: {}]
  %s15 = inlined_call_operand.vmem [shape: f32[2,1,128], index: 15, kind: input, shape index: {}]
  %s16 = inlined_call_operand.vmem [shape: f32[2,1,128], index: 16, kind: input, shape index: {}]
  %s17 = inlined_call_operand.vmem [shape: f32[2,1,128], index: 17, kind: input, shape index: {}]
  %s18 = inlined_call_operand.hbm [shape: f32[16,128], index: 18, kind: output, shape index: {0}]
  %s19 = inlined_call_operand.hbm [shape: f32[16,128], index: 19, kind: output, shape index: {1}]
  %20 = xla_tuple %s18, %s19
  %s21 = sld [smem:[#allocation0]]
  $region102: #{bert_embedding_forward.1} parent=0
    _
  %s23 = ssub.s32 1, %s21
  %s24 = scalar_select 0, %s23, %s21
  $region1: #{bert_embedding_forward.1} parent=0
    #allocation2 [shape = 'u8[393216]{0}', space=vmem, size = 0x60000, scoped, tag = 'input window, operand 6, single buffered']
    #allocation3 [shape = 's32[1]{0}', space=sflag, size = 0x4, scoped, tag = 'scoped memory for bert_embedding_forward.1']
    #allocation4 [shape = 's32[1]{0}', space=sflag, size = 0x4, scoped, tag = 'scoped memory for bert_embedding_forward.1']
    #allocation5 [shape = 'u8[524288]{0}', space=vmem, size = 0x80000, scoped, tag = 'input window, operand 12, single buffered']
    #allocation6 [shape = 's32[1]{0}', space=sflag, size = 0x4, scoped, tag = 'scoped memory for bert_embedding_forward.1']
    #allocation7 [shape = 'u8[524288]{0}', space=vmem, size = 0x80000, scoped, tag = 'input window, operand 14, single buffered']
    #allocation8 [shape = 'u8[8192]{0}', space=vmem, size = 0x2000, scoped, tag = 'output window, operand 0, single buffered']
    #allocation9 [shape = 'u8[8192]{0}', space=vmem, size = 0x2000, scoped, tag = 'output window, operand 1, single buffered']
    #allocation10 [shape = 's32[1]{0}', space=sflag, size = 0x4, scoped, tag = 'scoped memory for bert_embedding_forward.1']
    %25 = vsyncpa [#allocation3], 0
    %26 = vsyncpa [#allocation6], 0
    %27 = vsyncpa [#allocation4], 0
    %28 = vsyncpa [#allocation10], 0
    // Predicated region
    $region2: #{bert_embedding_forward.1} parent=1 // pred_check
      _
    $region3: #{bert_embedding_forward.1} parent=1 // pred_check_branch
      %30 = sbr.rel (0) target = $region5
    $region4: #{bert_embedding_forward.1} parent=1 // pred_region
      _
    $region5: #{bert_embedding_forward.1} parent=1 // pred_fallthru
      _
    // Predicated region
    $region6: #{bert_embedding_forward.1} parent=1 // pred_check
      _
    $region7: #{bert_embedding_forward.1} parent=1 // pred_check_branch
      %32 = sbr.rel (0) target = $region9
    $region8: #{bert_embedding_forward.1} parent=1 // pred_region
      _
    $region9: #{bert_embedding_forward.1} parent=1 // pred_fallthru
      _
    // Predicated region
    $region10: #{bert_embedding_forward.1} parent=1 // pred_check
      _
    $region11: #{bert_embedding_forward.1} parent=1 // pred_check_branch
      %34 = sbr.rel (0) target = $region13
    $region12: #{bert_embedding_forward.1} parent=1 // pred_region
      _
    $region13: #{bert_embedding_forward.1} parent=1 // pred_fallthru
      _
    // Predicated region
    $region14: #{bert_embedding_forward.1} parent=1 // pred_check
      _
    $region15: #{bert_embedding_forward.1} parent=1 // pred_check_branch
      %36 = sbr.rel (0) target = $region17
    $region16: #{bert_embedding_forward.1} parent=1 // pred_region
      _
    $region17: #{bert_embedding_forward.1} parent=1 // pred_fallthru
      _
    // Predicated region
    $region18: #{bert_embedding_forward.1} parent=1 // pred_check
      _
    $region19: #{bert_embedding_forward.1} parent=1 // pred_check_branch
      %38 = sbr.rel (0) target = $region21
    $region20: #{bert_embedding_forward.1} parent=1 // pred_region
      _
    $region21: #{bert_embedding_forward.1} parent=1 // pred_fallthru
      _
    // Predicated region
    $region22: #{bert_embedding_forward.1} parent=1 // pred_check
      _
    $region23: #{bert_embedding_forward.1} parent=1 // pred_check_branch
      %40 = sbr.rel (0) target = $region25
    $region24: #{bert_embedding_forward.1} parent=1 // pred_region
      _
    $region25: #{bert_embedding_forward.1} parent=1 // pred_fallthru
      _
    // Predicated region
    $region26: #{bert_embedding_forward.1} parent=1 // pred_check
      _
    $region27: #{bert_embedding_forward.1} parent=1 // pred_check_branch
      %42 = sbr.rel (0) target = $region29
    $region28: #{bert_embedding_forward.1} parent=1 // pred_region
      %s44 = ssub.s32 12288, 12288
      %45 = vsyncadd [#allocation3], %s44
      %s46 = sshll.u32 [#allocation2], 4
      %s47 = int_to_ptr.vmem [resolvable:$true] %s46
      %52 = dma.hbm_to_vmem [thread:$0]  %s6, 12288, %s47, [#allocation3], 384, 384, 24
    $region29: #{bert_embedding_forward.1} parent=1 // pred_fallthru
      _
    // Predicated region
    $region30: #{bert_embedding_forward.1} parent=1 // pred_check
      _
    $region31: #{bert_embedding_forward.1} parent=1 // pred_check_branch
      %54 = sbr.rel (0) target = $region33
    $region32: #{bert_embedding_forward.1} parent=1 // pred_region
      _
    $region33: #{bert_embedding_forward.1} parent=1 // pred_fallthru
      _
    // Predicated region
    $region34: #{bert_embedding_forward.1} parent=1 // pred_check
      _
    $region35: #{bert_embedding_forward.1} parent=1 // pred_check_branch
      %56 = sbr.rel (0) target = $region37
    $region36: #{bert_embedding_forward.1} parent=1 // pred_region
      _
    $region37: #{bert_embedding_forward.1} parent=1 // pred_fallthru
      _
    // Predicated region
    $region38: #{bert_embedding_forward.1} parent=1 // pred_check
      _
    $region39: #{bert_embedding_forward.1} parent=1 // pred_check_branch
      %58 = sbr.rel (0) target = $region41
    $region40: #{bert_embedding_forward.1} parent=1 // pred_region
      _
    $region41: #{bert_embedding_forward.1} parent=1 // pred_fallthru
      _
    // Predicated region
    $region42: #{bert_embedding_forward.1} parent=1 // pred_check
      _
    $region43: #{bert_embedding_forward.1} parent=1 // pred_check_branch
      %60 = sbr.rel (0) target = $region45
    $region44: #{bert_embedding_forward.1} parent=1 // pred_region
      _
    $region45: #{bert_embedding_forward.1} parent=1 // pred_fallthru
      _
    // Predicated region
    $region46: #{bert_embedding_forward.1} parent=1 // pred_check
      _
    $region47: #{bert_embedding_forward.1} parent=1 // pred_check_branch
      %62 = sbr.rel (0) target = $region49
    $region48: #{bert_embedding_forward.1} parent=1 // pred_region
      _
    $region49: #{bert_embedding_forward.1} parent=1 // pred_fallthru
      _
    // Predicated region
    $region50: #{bert_embedding_forward.1} parent=1 // pred_check
      _
    $region51: #{bert_embedding_forward.1} parent=1 // pred_check_branch
      %64 = sbr.rel (0) target = $region53
    $region52: #{bert_embedding_forward.1} parent=1 // pred_region
      %s66 = ssub.s32 16384, 16384
      %67 = vsyncadd [#allocation6], %s66
      %s68 = sshll.u32 [#allocation5], 4
      %s69 = int_to_ptr.vmem [resolvable:$true] %s68
      %74 = dma.hbm_to_vmem [thread:$0]  %s12, 16384, %s69, [#allocation6], 512, 512, 32
    $region53: #{bert_embedding_forward.1} parent=1 // pred_fallthru
      _
    // Predicated region
    $region54: #{bert_embedding_forward.1} parent=1 // pred_check
      _
    $region55: #{bert_embedding_forward.1} parent=1 // pred_check_branch
      %76 = sbr.rel (0) target = $region57
    $region56: #{bert_embedding_forward.1} parent=1 // pred_region
      _
    $region57: #{bert_embedding_forward.1} parent=1 // pred_fallthru
      _
    // Predicated region
    $region58: #{bert_embedding_forward.1} parent=1 // pred_check
      _
    $region59: #{bert_embedding_forward.1} parent=1 // pred_check_branch
      %78 = sbr.rel (0) target = $region61
    $region60: #{bert_embedding_forward.1} parent=1 // pred_region
      %s80 = ssub.s32 16384, 16384
      %81 = vsyncadd [#allocation6], %s80
      %s82 = sshll.u32 [#allocation7], 4
      %s83 = int_to_ptr.vmem [resolvable:$true] %s82
      %88 = dma.hbm_to_vmem [thread:$0]  %s14, 16384, %s83, [#allocation6], 128, 128, 8
    $region61: #{bert_embedding_forward.1} parent=1 // pred_fallthru
      _
    // Predicated region
    $region62: #{bert_embedding_forward.1} parent=1 // pred_check
      _
    $region63: #{bert_embedding_forward.1} parent=1 // pred_check_branch
      %90 = sbr.rel (0) target = $region65
    $region64: #{bert_embedding_forward.1} parent=1 // pred_region
      _
    $region65: #{bert_embedding_forward.1} parent=1 // pred_fallthru
      _
    // Predicated region
    $region66: #{bert_embedding_forward.1} parent=1 // pred_check
      _
    $region67: #{bert_embedding_forward.1} parent=1 // pred_check_branch
      %92 = sbr.rel (0) target = $region69
    $region68: #{bert_embedding_forward.1} parent=1 // pred_region
      _
    $region69: #{bert_embedding_forward.1} parent=1 // pred_fallthru
      _
    // Predicated region
    $region70: #{bert_embedding_forward.1} parent=1 // pred_check
      _
    $region71: #{bert_embedding_forward.1} parent=1 // pred_check_branch
      %94 = sbr.rel (0) target = $region73
    $region72: #{bert_embedding_forward.1} parent=1 // pred_region
      _
    $region73: #{bert_embedding_forward.1} parent=1 // pred_fallthru
      _
    // Predicated region
    $region74: #{bert_embedding_forward.1} parent=1 // pred_check
      _
    $region75: #{bert_embedding_forward.1} parent=1 // pred_check_branch
      %96 = sbr.rel (0) target = $region77
    $region76: #{bert_embedding_forward.1} parent=1 // pred_region
      %97 = dma.done [#allocation3], 12288
    $region77: #{bert_embedding_forward.1} parent=1 // pred_fallthru
      _
    // Predicated region
    $region78: #{bert_embedding_forward.1} parent=1 // pred_check
      _
    $region79: #{bert_embedding_forward.1} parent=1 // pred_check_branch
      %99 = sbr.rel (0) target = $region81
    $region80: #{bert_embedding_forward.1} parent=1 // pred_region
      %100 = dma.done [#allocation6], 16384
    $region81: #{bert_embedding_forward.1} parent=1 // pred_fallthru
      _
    // Predicated region
    $region82: #{bert_embedding_forward.1} parent=1 // pred_check
      _
    $region83: #{bert_embedding_forward.1} parent=1 // pred_check_branch
      %102 = sbr.rel (0) target = $region85
    $region84: #{bert_embedding_forward.1} parent=1 // pred_region
      %103 = dma.done [#allocation6], 16384
    $region85: #{bert_embedding_forward.1} parent=1 // pred_fallthru
      _
    %v105 = vld [vmem:[%s0] sm:$0xff]
    %v106 = vld [vmem:[%s0 + $0x8] sm:$0xff]
    %v107 = vld [vmem:[%s0 + $0x10] sm:$0xff]
    %v108 = vld [vmem:[%s0 + $0x18] sm:$0xff]
    %v109 = vld [vmem:[%s4] sm:$0x1]
    %v110 = vld [vmem:[%s5] sm:$0x1]
    %111 = vadd.xlane.f32.xlu0 %v105
    %v112 = vpop.xlane.xlu0 %111
    %113 = vadd.xlane.f32.xlu0 %v106
    %v114 = vpop.xlane.xlu0 %113
    %115 = vadd.xlane.f32.xlu0 %v107
    %v116 = vpop.xlane.xlu0 %115
    %117 = vadd.xlane.f32.xlu0 %v108
    %v118 = vpop.xlane.xlu0 %117
    %v119 = vrcp.pop 128.0
    %v120 = vmul.f32 %v112, %v119
    %v121 = vmul.f32 %v114, %v119
    %v122 = vmul.f32 %v116, %v119
    %v123 = vmul.f32 %v118, %v119
    %v124 = vsub.f32 %v105, %v120
    %v125 = vsub.f32 %v106, %v121
    %v126 = vsub.f32 %v107, %v122
    %v127 = vsub.f32 %v108, %v123
    %v128 = vmul.f32 %v124, %v124
    %v129 = vmul.f32 %v125, %v125
    %v130 = vmul.f32 %v126, %v126
    %v131 = vmul.f32 %v127, %v127
    %132 = vadd.xlane.f32.xlu0 %v128
    %v133 = vpop.xlane.xlu0 %132
    %134 = vadd.xlane.f32.xlu0 %v129
    %v135 = vpop.xlane.xlu0 %134
    %136 = vadd.xlane.f32.xlu0 %v130
    %v137 = vpop.xlane.xlu0 %136
    %138 = vadd.xlane.f32.xlu0 %v131
    %v139 = vpop.xlane.xlu0 %138
    %v140 = vmul.f32 %v133, %v119
    %v141 = vmul.f32 %v135, %v119
    %v142 = vmul.f32 %v137, %v119
    %v143 = vmul.f32 %v139, %v119
    %v144 = vadd.f32 %v140, 1e-12
    %v145 = vadd.f32 %v141, 1e-12
    %v146 = vadd.f32 %v142, 1e-12
    %v147 = vadd.f32 %v143, 1e-12
    %v148 = vrsqrt.pop %v144
    %v149 = vrsqrt.pop %v145
    %v150 = vrsqrt.pop %v146
    %v151 = vrsqrt.pop %v147
    %v152 = vmul.f32 %v124, %v148
    %v153 = vmul.f32 %v125, %v149
    %v154 = vmul.f32 %v126, %v150
    %v155 = vmul.f32 %v127, %v151
    %v157 = vlaneseq
    %v158 = vshrl.u32 %v157, 7
    %v159 = vsub.s32 0, %v158
    %v160 = vrot.slane %v109, %v159
    %v162 = vmul.f32 %v152, %v160
    %v163 = vmul.f32 %v153, %v160
    %v164 = vmul.f32 %v154, %v160
    %v165 = vmul.f32 %v155, %v160
    %v167 = vlaneseq
    %v168 = vshrl.u32 %v167, 7
    %v169 = vsub.s32 0, %v168
    %v170 = vrot.slane %v110, %v169
    %v172 = vadd.f32 %v162, %v170
    %v173 = vadd.f32 %v163, %v170
    %v174 = vadd.f32 %v164, %v170
    %v175 = vadd.f32 %v165, %v170
    %v176 = vld [vmem:[%s1] sm:$0x3]
    %v177 = vld [vmem:[#allocation2] sm:$0xff]
    %v178 = vld [vmem:[#allocation2 + $0x8] sm:$0xff]
    %v179 = vld [vmem:[#allocation2 + $0x10] sm:$0xff]
    %v180 = vld [vmem:[#allocation2 + $0x18] sm:$0xff]
    %v181 = vld [vmem:[#allocation2 + $0x20] sm:$0xff]
    %v182 = vld [vmem:[#allocation2 + $0x28] sm:$0xff]
    %v183 = vld [vmem:[#allocation2 + $0x30] sm:$0xff]
    %v184 = vld [vmem:[#allocation2 + $0x38] sm:$0xff]
    %v185 = vld [vmem:[#allocation2 + $0x40] sm:$0xff]
    %v186 = vld [vmem:[#allocation2 + $0x48] sm:$0xff]
    %v187 = vld [vmem:[#allocation2 + $0x50] sm:$0xff]
    %v188 = vld [vmem:[#allocation2 + $0x58] sm:$0xff]
    %v189 = vld [vmem:[#allocation2 + $0x60] sm:$0xff]
    %v190 = vld [vmem:[#allocation2 + $0x68] sm:$0xff]
    %v191 = vld [vmem:[#allocation2 + $0x70] sm:$0xff]
    %v192 = vld [vmem:[#allocation2 + $0x78] sm:$0xff]
    %v193 = vld [vmem:[#allocation2 + $0x80] sm:$0xff]
    %v194 = vld [vmem:[#allocation2 + $0x88] sm:$0xff]
    %v195 = vld [vmem:[#allocation2 + $0x90] sm:$0xff]
    %v196 = vld [vmem:[#allocation2 + $0x98] sm:$0xff]
    %v197 = vld [vmem:[#allocation2 + $0xa0] sm:$0xff]
    %v198 = vld [vmem:[#allocation2 + $0xa8] sm:$0xff]
    %v199 = vld [vmem:[#allocation2 + $0xb0] sm:$0xff]
    %v200 = vld [vmem:[#allocation2 + $0xb8] sm:$0xff]
    %v201 = vld [vmem:[#allocation2 + $0xc0] sm:$0xff]
    %v202 = vld [vmem:[#allocation2 + $0xc8] sm:$0xff]
    %v203 = vld [vmem:[#allocation2 + $0xd0] sm:$0xff]
    %v204 = vld [vmem:[#allocation2 + $0xd8] sm:$0xff]
    %v205 = vld [vmem:[#allocation2 + $0xe0] sm:$0xff]
    %v206 = vld [vmem:[#allocation2 + $0xe8] sm:$0xff]
    %v207 = vld [vmem:[#allocation2 + $0xf0] sm:$0xff]
    %v208 = vld [vmem:[#allocation2 + $0xf8] sm:$0xff]
    %v209 = vld [vmem:[#allocation2 + $0x100] sm:$0xff]
    %v210 = vld [vmem:[#allocation2 + $0x108] sm:$0xff]
    %v211 = vld [vmem:[#allocation2 + $0x110] sm:$0xff]
    %v212 = vld [vmem:[#allocation2 + $0x118] sm:$0xff]
    %v213 = vld [vmem:[#allocation2 + $0x120] sm:$0xff]
    %v214 = vld [vmem:[#allocation2 + $0x128] sm:$0xff]
    %v215 = vld [vmem:[#allocation2 + $0x130] sm:$0xff]
    %v216 = vld [vmem:[#allocation2 + $0x138] sm:$0xff]
    %v217 = vld [vmem:[#allocation2 + $0x140] sm:$0xff]
    %v218 = vld [vmem:[#allocation2 + $0x148] sm:$0xff]
    %v219 = vld [vmem:[#allocation2 + $0x150] sm:$0xff]
    %v220 = vld [vmem:[#allocation2 + $0x158] sm:$0xff]
    %v221 = vld [vmem:[#allocation2 + $0x160] sm:$0xff]
    %v222 = vld [vmem:[#allocation2 + $0x168] sm:$0xff]
    %v223 = vld [vmem:[#allocation2 + $0x170] sm:$0xff]
    %v224 = vld [vmem:[#allocation2 + $0x178] sm:$0xff]
    %v225 = vpack.c.bf16 %v173, %v172
    %v226 = vpack.c.bf16 %v175, %v174
    %v227 = vpack.c.bf16 %v180, %v177
    %v228 = vpack.c.bf16 %v181, %v178
    %v229 = vpack.c.bf16 %v182, %v179
    %v230 = vpack.c.bf16 %v186, %v183
    %v231 = vpack.c.bf16 %v187, %v184
    %v232 = vpack.c.bf16 %v188, %v185
    %v233 = vpack.c.bf16 %v192, %v189
    %v234 = vpack.c.bf16 %v193, %v190
    %v235 = vpack.c.bf16 %v194, %v191
    %v236 = vpack.c.bf16 %v198, %v195
    %v237 = vpack.c.bf16 %v199, %v196
    %v238 = vpack.c.bf16 %v200, %v197
    %v239 = vpack.c.bf16 %v204, %v201
    %v240 = vpack.c.bf16 %v205, %v202
    %v241 = vpack.c.bf16 %v206, %v203
    %v242 = vpack.c.bf16 %v210, %v207
    %v243 = vpack.c.bf16 %v211, %v208
    %v244 = vpack.c.bf16 %v212, %v209
    %v245 = vpack.c.bf16 %v216, %v213
    %v246 = vpack.c.bf16 %v217, %v214
    %v247 = vpack.c.bf16 %v218, %v215
    %v248 = vpack.c.bf16 %v222, %v219
    %v249 = vpack.c.bf16 %v223, %v220
    %v250 = vpack.c.bf16 %v224, %v221
    %v251 = vld [vmem:[%s7] sm:$0x7]
    %v253 = vlaneseq
    %v254 = vshrl.u32 %v253, 7
    %v255 = vsub.s32 0, %v254
    %v256 = vrot.slane %v251, %v255
    %v257 = vlaneseq
    %v258 = vshrl.u32 %v257, 7
    %v259 = vsub.s32 1, %v258
    %v260 = vrot.slane %v251, %v259
    %v261 = vlaneseq
    %v262 = vshrl.u32 %v261, 7
    %v263 = vsub.s32 2, %v262
    %v264 = vrot.slane %v251, %v263
    %268 = vmatprep.subr.bf16.mxu0 %v228
    %269 = vmatpush1.bf16.msra.mxu0 %v227
    %270 = vmatprep.subr.bf16.mxu0 %v231
    %271 = vmatpush1.bf16.msra.mxu0 %v230
    %272 = vmatprep.subr.bf16.mxu0 %v234
    %273 = vmatpush1.bf16.msra.mxu0 %v233
    %274 = vmatprep.subr.bf16.mxu0 %v237
    %275 = vmatpush1.bf16.msra.mxu0 %v236
    %276 = vmatprep.subr.bf16.mxu0 %v240
    %277 = vmatpush1.bf16.msra.mxu0 %v239
    %278 = vmatprep.subr.bf16.mxu0 %v243
    %279 = vmatpush1.bf16.msra.mxu0 %v242
    %280 = vmatprep.subr.bf16.mxu0 %v246
    %281 = vmatpush1.bf16.msra.mxu0 %v245
    %282 = vmatprep.subr.bf16.mxu0 %v249
    %283 = vmatpush1.bf16.msra.mxu0 %v248
    %284 = vmatprep.subr.bf16.mxu0 0
    %285 = vmatpush1.bf16.msra.mxu0 0
    %286 = vmatprep.subr.bf16.mxu0 0
    %287 = vmatpush1.bf16.msra.mxu0 0
    %288 = vmatprep.subr.bf16.mxu0 0
    %289 = vmatpush1.bf16.msra.mxu0 0
    %290 = vmatprep.subr.bf16.mxu0 0
    %291 = vmatpush1.bf16.msra.mxu0 0
    %292 = vmatprep.subr.bf16.mxu0 0
    %293 = vmatpush1.bf16.msra.mxu0 0
    %294 = vmatprep.subr.bf16.mxu0 0
    %295 = vmatpush1.bf16.msra.mxu0 0
    %296 = vmatprep.subr.bf16.mxu0 0
    %297 = vmatpush1.bf16.msra.mxu0 0
    %298 = vmatprep.subr.bf16.mxu0 0
    %299 = vmatpush1.bf16.msra.mxu0 0
    %300 = vmatprep.mubr.bf16.mxu0 0
    %301 = vmatmul.mubr.bf16.gmra.mrb[0].mxu0 %v225
    %v302 = vpop.f32.mrb[0].mxu0
    %v303 = vadd.f32 %v256, %v302
    %v304 = vpop.f32.mrb[0].mxu0
    %v305 = vadd.f32 %v260, %v304
    %v306 = vpop.f32.mrb[0].mxu0
    %v307 = vadd.f32 %v256, %v306
    %v308 = vpop.f32.mrb[0].mxu0
    %v309 = vadd.f32 %v260, %v308
    %310 = vmatprep.mubr.bf16.mxu0 0
    %311 = vmatmul.mubr.bf16.gmra.mrb[0].mxu0 %v226
    %v312 = vpop.f32.mrb[0].mxu0
    %v313 = vadd.f32 %v256, %v312
    %v314 = vpop.f32.mrb[0].mxu0
    %v315 = vadd.f32 %v260, %v314
    %v316 = vpop.f32.mrb[0].mxu0
    %v317 = vadd.f32 %v256, %v316
    %v318 = vpop.f32.mrb[0].mxu0
    %v319 = vadd.f32 %v260, %v318
    %320 = vdwg.mxu0
    %321 = vmatprep.subr.bf16.mxu0 0
    %322 = vmatpush1.bf16.msra.mxu0 %v229
    %323 = vmatprep.subr.bf16.mxu0 0
    %324 = vmatpush1.bf16.msra.mxu0 %v232
    %325 = vmatprep.subr.bf16.mxu0 0
    %326 = vmatpush1.bf16.msra.mxu0 %v235
    %327 = vmatprep.subr.bf16.mxu0 0
    %328 = vmatpush1.bf16.msra.mxu0 %v238
    %329 = vmatprep.subr.bf16.mxu0 0
    %330 = vmatpush1.bf16.msra.mxu0 %v241
    %331 = vmatprep.subr.bf16.mxu0 0
    %332 = vmatpush1.bf16.msra.mxu0 %v244
    %333 = vmatprep.subr.bf16.mxu0 0
    %334 = vmatpush1.bf16.msra.mxu0 %v247
    %335 = vmatprep.subr.bf16.mxu0 0
    %336 = vmatpush1.bf16.msra.mxu0 %v250
    %337 = vmatprep.subr.bf16.mxu0 0
    %338 = vmatpush1.bf16.msra.mxu0 0
    %339 = vmatprep.subr.bf16.mxu0 0
    %340 = vmatpush1.bf16.msra.mxu0 0
    %341 = vmatprep.subr.bf16.mxu0 0
    %342 = vmatpush1.bf16.msra.mxu0 0
    %343 = vmatprep.subr.bf16.mxu0 0
    %344 = vmatpush1.bf16.msra.mxu0 0
    %345 = vmatprep.subr.bf16.mxu0 0
    %346 = vmatpush1.bf16.msra.mxu0 0
    %347 = vmatprep.subr.bf16.mxu0 0
    %348 = vmatpush1.bf16.msra.mxu0 0
    %349 = vmatprep.subr.bf16.mxu0 0
    %350 = vmatpush1.bf16.msra.mxu0 0
    %351 = vmatprep.subr.bf16.mxu0 0
    %352 = vmatpush1.bf16.msra.mxu0 0
    %353 = vmatprep.mubr.bf16.mxu0 0
    %354 = vmatmul.mubr.bf16.gmra.mrb[0].mxu0 %v225
    %v355 = vpop.f32.mrb[0].mxu0
    %v356 = vadd.f32 %v264, %v355
    %v357 = vpop.f32.mrb[0].mxu0
    %v358 = vpop.f32.mrb[0].mxu0
    %v359 = vadd.f32 %v264, %v358
    %v360 = vpop.f32.mrb[0].mxu0
    %361 = vmatprep.mubr.bf16.mxu0 0
    %362 = vmatmul.mubr.bf16.gmra.mrb[0].mxu0 %v226
    %v363 = vpop.f32.mrb[0].mxu0
    %v364 = vadd.f32 %v264, %v363
    %v365 = vpop.f32.mrb[0].mxu0
    %v366 = vpop.f32.mrb[0].mxu0
    %v367 = vadd.f32 %v264, %v366
    %v368 = vpop.f32.mrb[0].mxu0
    %369 = vdwg.mxu0
    %v370 = vpack.c.bf16 %v307, %v303
    %v371 = vpack.c.bf16 %v309, %v305
    %vm372 = vcmask 261120
    %v374 = vsel %vm372, %v370, 0
    %v377 = vsel %vm372, %v371, 0
    %379 = vmatprep.subr.bf16.mxu0 0
    %380 = vmatpush1.bf16.xpose.msra.mxu0 %v377
    %381 = vmatprep.subr.bf16.mxu0 0
    %382 = vmatpush1.bf16.xpose.msra.mxu0 0
    %383 = vmatprep.subr.bf16.mxu0 0
    %384 = vmatpush1.bf16.xpose.msra.mxu0 0
    %385 = vmatprep.subr.bf16.mxu0 0
    %386 = vmatpush1.bf16.xpose.msra.mxu0 0
    %387 = vmatprep.subr.bf16.mxu0 0
    %388 = vmatpush1.bf16.xpose.msra.mxu0 0
    %389 = vmatprep.subr.bf16.mxu0 0
    %390 = vmatpush1.bf16.xpose.msra.mxu0 0
    %391 = vmatprep.subr.bf16.mxu0 0
    %392 = vmatpush1.bf16.xpose.msra.mxu0 0
    %393 = vmatprep.subr.bf16.mxu0 0
    %394 = vmatpush1.bf16.xpose.msra.mxu0 0
    %395 = vmatprep.subr.bf16.mxu0 0
    %396 = vmatpush1.bf16.xpose.msra.mxu0 0
    %397 = vmatprep.subr.bf16.mxu0 0
    %398 = vmatpush1.bf16.xpose.msra.mxu0 0
    %399 = vmatprep.subr.bf16.mxu0 0
    %400 = vmatpush1.bf16.xpose.msra.mxu0 0
    %401 = vmatprep.subr.bf16.mxu0 0
    %402 = vmatpush1.bf16.xpose.msra.mxu0 0
    %403 = vmatprep.subr.bf16.mxu0 0
    %404 = vmatpush1.bf16.xpose.msra.mxu0 0
    %405 = vmatprep.subr.bf16.mxu0 0
    %406 = vmatpush1.bf16.xpose.msra.mxu0 0
    %407 = vmatprep.subr.bf16.mxu0 0
    %408 = vmatpush1.bf16.xpose.msra.mxu0 0
    %409 = vmatprep.subr.bf16.mxu0 0
    %410 = vmatpush1.bf16.xpose.msra.mxu0 0
    %411 = vmatprep.mubr.bf16.mxu0 0
    %412 = vmatmul.mubr.bf16.gmra.mrb[0].mxu0 %v374
    %v413 = vpop.f32.mrb[0].mxu0
    %v414 = vadd.f32 0.0, %v413
    %v415 = vpop.f32.mrb[0].mxu0
    %v416 = vpop.f32.mrb[0].mxu0
    %v417 = vadd.f32 0.0, %v416
    %v418 = vpop.f32.mrb[0].mxu0
    %419 = vdwg.mxu0
    %v420 = vmul.f32 %v414, 0.17677669
    %v421 = vmul.f32 %v417, 0.17677669
    %v422 = vlaneseq
    %v423 = vshrl.u32 %v422, 7
    %v424 = vsub.s32 0, %v423
    %v425 = vrot.slane %v176, %v424
    %v426 = vadd.f32 %v420, %v425
    %v427 = vadd.f32 %v421, %v425
    %vm428 = vcmask 130048
    %v429 = vsel %vm428, %v426, -inf
    %430 = vmax.xlane.f32.xlu0 %v429
    %v431 = vpop.xlane.xlu0 %430
    %v432 = vsel %vm428, %v427, -inf
    %433 = vmax.xlane.f32.xlu0 %v432
    %v434 = vpop.xlane.xlu0 %433
    %v435 = vsub.f32 %v426, %v431
    %v436 = vsub.f32 %v427, %v434
    %v437 = vmul.f32 %v435, 1.442695
    %v438 = vpow.pop %v437
    %v439 = vmul.f32 %v436, 1.442695
    %v440 = vpow.pop %v439
    %v441 = vsel %vm428, %v438, 0.0
    %442 = vadd.xlane.f32.xlu0 %v441
    %v443 = vpop.xlane.xlu0 %442
    %v444 = vsel %vm428, %v440, 0.0
    %445 = vadd.xlane.f32.xlu0 %v444
    %v446 = vpop.xlane.xlu0 %445
    %v447 = vrcp.pop %v443
    %v448 = vmul.f32 %v438, %v447
    %v449 = vrcp.pop %v446
    %v450 = vmul.f32 %v440, %v449
    %v451 = vpack.c.bf16 %v450, %v448
    %v452 = vpack.c.bf16 %v359, %v356
    %v454 = vsel %vm428, %v451, 0
    %456 = vmatprep.subr.bf16.mxu0 0
    %457 = vmatpush1.bf16.msra.mxu0 %v452
    %458 = vmatprep.subr.bf16.mxu0 0
    %459 = vmatpush1.bf16.msra.mxu0 0
    %460 = vmatprep.subr.bf16.mxu0 0
    %461 = vmatpush1.bf16.msra.mxu0 0
    %462 = vmatprep.subr.bf16.mxu0 0
    %463 = vmatpush1.bf16.msra.mxu0 0
    %464 = vmatprep.subr.bf16.mxu0 0
    %465 = vmatpush1.bf16.msra.mxu0 0
    %466 = vmatprep.subr.bf16.mxu0 0
    %467 = vmatpush1.bf16.msra.mxu0 0
    %468 = vmatprep.subr.bf16.mxu0 0
    %469 = vmatpush1.bf16.msra.mxu0 0
    %470 = vmatprep.subr.bf16.mxu0 0
    %471 = vmatpush1.bf16.msra.mxu0 0
    %472 = vmatprep.subr.bf16.mxu0 0
    %473 = vmatpush1.bf16.msra.mxu0 0
    %474 = vmatprep.subr.bf16.mxu0 0
    %475 = vmatpush1.bf16.msra.mxu0 0
    %476 = vmatprep.subr.bf16.mxu0 0
    %477 = vmatpush1.bf16.msra.mxu0 0
    %478 = vmatprep.subr.bf16.mxu0 0
    %479 = vmatpush1.bf16.msra.mxu0 0
    %480 = vmatprep.subr.bf16.mxu0 0
    %481 = vmatpush1.bf16.msra.mxu0 0
    %482 = vmatprep.subr.bf16.mxu0 0
    %483 = vmatpush1.bf16.msra.mxu0 0
    %484 = vmatprep.subr.bf16.mxu0 0
    %485 = vmatpush1.bf16.msra.mxu0 0
    %486 = vmatprep.subr.bf16.mxu0 0
    %487 = vmatpush1.bf16.msra.mxu0 0
    %488 = vmatprep.mubr.bf16.mxu0 0
    %489 = vmatmul.mubr.bf16.gmra.mrb[0].mxu0 %v454
    %v490 = vpop.f32.mrb[0].mxu0
    %v491 = vadd.f32 0.0, %v490
    %v492 = vpop.f32.mrb[0].mxu0
    %v493 = vpop.f32.mrb[0].mxu0
    %v494 = vadd.f32 0.0, %v493
    %v495 = vpop.f32.mrb[0].mxu0
    %496 = vdwg.mxu0
    %498 = vrot.lane.b32.xlu0 %v370, 96
    %v499 = vpop.permute.xlu0 %498
    %501 = vrot.lane.b32.xlu0 %v371, 96
    %v502 = vpop.permute.xlu0 %501
    %v504 = vsel %vm372, %v499, 0
    %v507 = vsel %vm372, %v502, 0
    %509 = vmatprep.subr.bf16.mxu0 0
    %510 = vmatpush1.bf16.xpose.msra.mxu0 %v507
    %511 = vmatprep.subr.bf16.mxu0 0
    %512 = vmatpush1.bf16.xpose.msra.mxu0 0
    %513 = vmatprep.subr.bf16.mxu0 0
    %514 = vmatpush1.bf16.xpose.msra.mxu0 0
    %515 = vmatprep.subr.bf16.mxu0 0
    %516 = vmatpush1.bf16.xpose.msra.mxu0 0
    %517 = vmatprep.subr.bf16.mxu0 0
    %518 = vmatpush1.bf16.xpose.msra.mxu0 0
    %519 = vmatprep.subr.bf16.mxu0 0
    %520 = vmatpush1.bf16.xpose.msra.mxu0 0
    %521 = vmatprep.subr.bf16.mxu0 0
    %522 = vmatpush1.bf16.xpose.msra.mxu0 0
    %523 = vmatprep.subr.bf16.mxu0 0
    %524 = vmatpush1.bf16.xpose.msra.mxu0 0
    %525 = vmatprep.subr.bf16.mxu0 0
    %526 = vmatpush1.bf16.xpose.msra.mxu0 0
    %527 = vmatprep.subr.bf16.mxu0 0
    %528 = vmatpush1.bf16.xpose.msra.mxu0 0
    %529 = vmatprep.subr.bf16.mxu0 0
    %530 = vmatpush1.bf16.xpose.msra.mxu0 0
    %531 = vmatprep.subr.bf16.mxu0 0
    %532 = vmatpush1.bf16.xpose.msra.mxu0 0
    %533 = vmatprep.subr.bf16.mxu0 0
    %534 = vmatpush1.bf16.xpose.msra.mxu0 0
    %535 = vmatprep.subr.bf16.mxu0 0
    %536 = vmatpush1.bf16.xpose.msra.mxu0 0
    %537 = vmatprep.subr.bf16.mxu0 0
    %538 = vmatpush1.bf16.xpose.msra.mxu0 0
    %539 = vmatprep.subr.bf16.mxu0 0
    %540 = vmatpush1.bf16.xpose.msra.mxu0 0
    %541 = vmatprep.mubr.bf16.mxu0 0
    %542 = vmatmul.mubr.bf16.gmra.mrb[0].mxu0 %v504
    %v543 = vpop.f32.mrb[0].mxu0
    %v544 = vadd.f32 0.0, %v543
    %v545 = vpop.f32.mrb[0].mxu0
    %v546 = vpop.f32.mrb[0].mxu0
    %v547 = vadd.f32 0.0, %v546
    %v548 = vpop.f32.mrb[0].mxu0
    %549 = vdwg.mxu0
    %v550 = vmul.f32 %v544, 0.17677669
    %v551 = vmul.f32 %v547, 0.17677669
    %v552 = vadd.f32 %v550, %v425
    %v553 = vadd.f32 %v551, %v425
    %v554 = vsel %vm428, %v552, -inf
    %555 = vmax.xlane.f32.xlu0 %v554
    %v556 = vpop.xlane.xlu0 %555
    %v557 = vsel %vm428, %v553, -inf
    %558 = vmax.xlane.f32.xlu0 %v557
    %v559 = vpop.xlane.xlu0 %558
    %v560 = vsub.f32 %v552, %v556
    %v561 = vsub.f32 %v553, %v559
    %v562 = vmul.f32 %v560, 1.442695
    %v563 = vpow.pop %v562
    %v564 = vmul.f32 %v561, 1.442695
    %v565 = vpow.pop %v564
    %v566 = vsel %vm428, %v563, 0.0
    %567 = vadd.xlane.f32.xlu0 %v566
    %v568 = vpop.xlane.xlu0 %567
    %v569 = vsel %vm428, %v565, 0.0
    %570 = vadd.xlane.f32.xlu0 %v569
    %v571 = vpop.xlane.xlu0 %570
    %v572 = vrcp.pop %v568
    %v573 = vmul.f32 %v563, %v572
    %v574 = vrcp.pop %v571
    %v575 = vmul.f32 %v565, %v574
    %v576 = vpack.c.bf16 %v575, %v573
    %578 = vrot.lane.b32.xlu0 %v452, 96
    %v579 = vpop.permute.xlu0 %578
    %v582 = vsel %vm428, %v576, 0
    %584 = vmatprep.subr.bf16.mxu0 0
    %585 = vmatpush1.bf16.msra.mxu0 %v579
    %586 = vmatprep.subr.bf16.mxu0 0
    %587 = vmatpush1.bf16.msra.mxu0 0
    %588 = vmatprep.subr.bf16.mxu0 0
    %589 = vmatpush1.bf16.msra.mxu0 0
    %590 = vmatprep.subr.bf16.mxu0 0
    %591 = vmatpush1.bf16.msra.mxu0 0
    %592 = vmatprep.subr.bf16.mxu0 0
    %593 = vmatpush1.bf16.msra.mxu0 0
    %594 = vmatprep.subr.bf16.mxu0 0
    %595 = vmatpush1.bf16.msra.mxu0 0
    %596 = vmatprep.subr.bf16.mxu0 0
    %597 = vmatpush1.bf16.msra.mxu0 0
    %598 = vmatprep.subr.bf16.mxu0 0
    %599 = vmatpush1.bf16.msra.mxu0 0
    %600 = vmatprep.subr.bf16.mxu0 0
    %601 = vmatpush1.bf16.msra.mxu0 0
    %602 = vmatprep.subr.bf16.mxu0 0
    %603 = vmatpush1.bf16.msra.mxu0 0
    %604 = vmatprep.subr.bf16.mxu0 0
    %605 = vmatpush1.bf16.msra.mxu0 0
    %606 = vmatprep.subr.bf16.mxu0 0
    %607 = vmatpush1.bf16.msra.mxu0 0
    %608 = vmatprep.subr.bf16.mxu0 0
    %609 = vmatpush1.bf16.msra.mxu0 0
    %610 = vmatprep.subr.bf16.mxu0 0
    %611 = vmatpush1.bf16.msra.mxu0 0
    %612 = vmatprep.subr.bf16.mxu0 0
    %613 = vmatpush1.bf16.msra.mxu0 0
    %614 = vmatprep.subr.bf16.mxu0 0
    %615 = vmatpush1.bf16.msra.mxu0 0
    %616 = vmatprep.mubr.bf16.mxu0 0
    %617 = vmatmul.mubr.bf16.gmra.mrb[0].mxu0 %v582
    %v618 = vpop.f32.mrb[0].mxu0
    %v619 = vadd.f32 0.0, %v618
    %v620 = vpop.f32.mrb[0].mxu0
    %v621 = vpop.f32.mrb[0].mxu0
    %v622 = vadd.f32 0.0, %v621
    %v623 = vpop.f32.mrb[0].mxu0
    %624 = vdwg.mxu0
    %625 = vrot.lane.b32.xlu0 %v370, 64
    %v626 = vpop.permute.xlu0 %625
    %627 = vrot.lane.b32.xlu0 %v371, 64
    %v628 = vpop.permute.xlu0 %627
    %v630 = vsel %vm372, %v626, 0
    %v633 = vsel %vm372, %v628, 0
    %635 = vmatprep.subr.bf16.mxu0 0
    %636 = vmatpush1.bf16.xpose.msra.mxu0 %v633
    %637 = vmatprep.subr.bf16.mxu0 0
    %638 = vmatpush1.bf16.xpose.msra.mxu0 0
    %639 = vmatprep.subr.bf16.mxu0 0
    %640 = vmatpush1.bf16.xpose.msra.mxu0 0
    %641 = vmatprep.subr.bf16.mxu0 0
    %642 = vmatpush1.bf16.xpose.msra.mxu0 0
    %643 = vmatprep.subr.bf16.mxu0 0
    %644 = vmatpush1.bf16.xpose.msra.mxu0 0
    %645 = vmatprep.subr.bf16.mxu0 0
    %646 = vmatpush1.bf16.xpose.msra.mxu0 0
    %647 = vmatprep.subr.bf16.mxu0 0
    %648 = vmatpush1.bf16.xpose.msra.mxu0 0
    %649 = vmatprep.subr.bf16.mxu0 0
    %650 = vmatpush1.bf16.xpose.msra.mxu0 0
    %651 = vmatprep.subr.bf16.mxu0 0
    %652 = vmatpush1.bf16.xpose.msra.mxu0 0
    %653 = vmatprep.subr.bf16.mxu0 0
    %654 = vmatpush1.bf16.xpose.msra.mxu0 0
    %655 = vmatprep.subr.bf16.mxu0 0
    %656 = vmatpush1.bf16.xpose.msra.mxu0 0
    %657 = vmatprep.subr.bf16.mxu0 0
    %658 = vmatpush1.bf16.xpose.msra.mxu0 0
    %659 = vmatprep.subr.bf16.mxu0 0
    %660 = vmatpush1.bf16.xpose.msra.mxu0 0
    %661 = vmatprep.subr.bf16.mxu0 0
    %662 = vmatpush1.bf16.xpose.msra.mxu0 0
    %663 = vmatprep.subr.bf16.mxu0 0
    %664 = vmatpush1.bf16.xpose.msra.mxu0 0
    %665 = vmatprep.subr.bf16.mxu0 0
    %666 = vmatpush1.bf16.xpose.msra.mxu0 0
    %667 = vmatprep.mubr.bf16.mxu0 0
    %668 = vmatmul.mubr.bf16.gmra.mrb[0].mxu0 %v630
    %v669 = vpop.f32.mrb[0].mxu0
    %v670 = vadd.f32 0.0, %v669
    %v671 = vpop.f32.mrb[0].mxu0
    %v672 = vpop.f32.mrb[0].mxu0
    %v673 = vadd.f32 0.0, %v672
    %v674 = vpop.f32.mrb[0].mxu0
    %675 = vdwg.mxu0
    %v676 = vmul.f32 %v670, 0.17677669
    %v677 = vmul.f32 %v673, 0.17677669
    %v678 = vadd.f32 %v676, %v425
    %v679 = vadd.f32 %v677, %v425
    %v680 = vsel %vm428, %v678, -inf
    %681 = vmax.xlane.f32.xlu0 %v680
    %v682 = vpop.xlane.xlu0 %681
    %v683 = vsel %vm428, %v679, -inf
    %684 = vmax.xlane.f32.xlu0 %v683
    %v685 = vpop.xlane.xlu0 %684
    %v686 = vsub.f32 %v678, %v682
    %v687 = vsub.f32 %v679, %v685
    %v688 = vmul.f32 %v686, 1.442695
    %v689 = vpow.pop %v688
    %v690 = vmul.f32 %v687, 1.442695
    %v691 = vpow.pop %v690
    %v692 = vsel %vm428, %v689, 0.0
    %693 = vadd.xlane.f32.xlu0 %v692
    %v694 = vpop.xlane.xlu0 %693
    %v695 = vsel %vm428, %v691, 0.0
    %696 = vadd.xlane.f32.xlu0 %v695
    %v697 = vpop.xlane.xlu0 %696
    %v698 = vrcp.pop %v694
    %v699 = vmul.f32 %v689, %v698
    %v700 = vrcp.pop %v697
    %v701 = vmul.f32 %v691, %v700
    %v702 = vpack.c.bf16 %v701, %v699
    %703 = vrot.lane.b32.xlu0 %v452, 64
    %v704 = vpop.permute.xlu0 %703
    %v707 = vsel %vm428, %v702, 0
    %709 = vmatprep.subr.bf16.mxu0 0
    %710 = vmatpush1.bf16.msra.mxu0 %v704
    %711 = vmatprep.subr.bf16.mxu0 0
    %712 = vmatpush1.bf16.msra.mxu0 0
    %713 = vmatprep.subr.bf16.mxu0 0
    %714 = vmatpush1.bf16.msra.mxu0 0
    %715 = vmatprep.subr.bf16.mxu0 0
    %716 = vmatpush1.bf16.msra.mxu0 0
    %717 = vmatprep.subr.bf16.mxu0 0
    %718 = vmatpush1.bf16.msra.mxu0 0
    %719 = vmatprep.subr.bf16.mxu0 0
    %720 = vmatpush1.bf16.msra.mxu0 0
    %721 = vmatprep.subr.bf16.mxu0 0
    %722 = vmatpush1.bf16.msra.mxu0 0
    %723 = vmatprep.subr.bf16.mxu0 0
    %724 = vmatpush1.bf16.msra.mxu0 0
    %725 = vmatprep.subr.bf16.mxu0 0
    %726 = vmatpush1.bf16.msra.mxu0 0
    %727 = vmatprep.subr.bf16.mxu0 0
    %728 = vmatpush1.bf16.msra.mxu0 0
    %729 = vmatprep.subr.bf16.mxu0 0
    %730 = vmatpush1.bf16.msra.mxu0 0
    %731 = vmatprep.subr.bf16.mxu0 0
    %732 = vmatpush1.bf16.msra.mxu0 0
    %733 = vmatprep.subr.bf16.mxu0 0
    %734 = vmatpush1.bf16.msra.mxu0 0
    %735 = vmatprep.subr.bf16.mxu0 0
    %736 = vmatpush1.bf16.msra.mxu0 0
    %737 = vmatprep.subr.bf16.mxu0 0
    %738 = vmatpush1.bf16.msra.mxu0 0
    %739 = vmatprep.subr.bf16.mxu0 0
    %740 = vmatpush1.bf16.msra.mxu0 0
    %741 = vmatprep.mubr.bf16.mxu0 0
    %742 = vmatmul.mubr.bf16.gmra.mrb[0].mxu0 %v707
    %v743 = vpop.f32.mrb[0].mxu0
    %v744 = vadd.f32 0.0, %v743
    %v745 = vpop.f32.mrb[0].mxu0
    %v746 = vpop.f32.mrb[0].mxu0
    %v747 = vadd.f32 0.0, %v746
    %v748 = vpop.f32.mrb[0].mxu0
    %749 = vdwg.mxu0
    %750 = vrot.lane.b32.xlu0 %v370, 32
    %v751 = vpop.permute.xlu0 %750
    %752 = vrot.lane.b32.xlu0 %v371, 32
    %v753 = vpop.permute.xlu0 %752
    %v755 = vsel %vm372, %v751, 0
    %v758 = vsel %vm372, %v753, 0
    %760 = vmatprep.subr.bf16.mxu0 0
    %761 = vmatpush1.bf16.xpose.msra.mxu0 %v758
    %762 = vmatprep.subr.bf16.mxu0 0
    %763 = vmatpush1.bf16.xpose.msra.mxu0 0
    %764 = vmatprep.subr.bf16.mxu0 0
    %765 = vmatpush1.bf16.xpose.msra.mxu0 0
    %766 = vmatprep.subr.bf16.mxu0 0
    %767 = vmatpush1.bf16.xpose.msra.mxu0 0
    %768 = vmatprep.subr.bf16.mxu0 0
    %769 = vmatpush1.bf16.xpose.msra.mxu0 0
    %770 = vmatprep.subr.bf16.mxu0 0
    %771 = vmatpush1.bf16.xpose.msra.mxu0 0
    %772 = vmatprep.subr.bf16.mxu0 0
    %773 = vmatpush1.bf16.xpose.msra.mxu0 0
    %774 = vmatprep.subr.bf16.mxu0 0
    %775 = vmatpush1.bf16.xpose.msra.mxu0 0
    %776 = vmatprep.subr.bf16.mxu0 0
    %777 = vmatpush1.bf16.xpose.msra.mxu0 0
    %778 = vmatprep.subr.bf16.mxu0 0
    %779 = vmatpush1.bf16.xpose.msra.mxu0 0
    %780 = vmatprep.subr.bf16.mxu0 0
    %781 = vmatpush1.bf16.xpose.msra.mxu0 0
    %782 = vmatprep.subr.bf16.mxu0 0
    %783 = vmatpush1.bf16.xpose.msra.mxu0 0
    %784 = vmatprep.subr.bf16.mxu0 0
    %785 = vmatpush1.bf16.xpose.msra.mxu0 0
    %786 = vmatprep.subr.bf16.mxu0 0
    %787 = vmatpush1.bf16.xpose.msra.mxu0 0
    %788 = vmatprep.subr.bf16.mxu0 0
    %789 = vmatpush1.bf16.xpose.msra.mxu0 0
    %790 = vmatprep.subr.bf16.mxu0 0
    %791 = vmatpush1.bf16.xpose.msra.mxu0 0
    %792 = vmatprep.mubr.bf16.mxu0 0
    %793 = vmatmul.mubr.bf16.gmra.mrb[0].mxu0 %v755
    %v794 = vpop.f32.mrb[0].mxu0
    %v795 = vadd.f32 0.0, %v794
    %v796 = vpop.f32.mrb[0].mxu0
    %v797 = vpop.f32.mrb[0].mxu0
    %v798 = vadd.f32 0.0, %v797
    %v799 = vpop.f32.mrb[0].mxu0
    %800 = vdwg.mxu0
    %v801 = vmul.f32 %v795, 0.17677669
    %v802 = vmul.f32 %v798, 0.17677669
    %v803 = vadd.f32 %v801, %v425
    %v804 = vadd.f32 %v802, %v425
    %v805 = vsel %vm428, %v803, -inf
    %806 = vmax.xlane.f32.xlu0 %v805
    %v807 = vpop.xlane.xlu0 %806
    %v808 = vsel %vm428, %v804, -inf
    %809 = vmax.xlane.f32.xlu0 %v808
    %v810 = vpop.xlane.xlu0 %809
    %v811 = vsub.f32 %v803, %v807
    %v812 = vsub.f32 %v804, %v810
    %v813 = vmul.f32 %v811, 1.442695
    %v814 = vpow.pop %v813
    %v815 = vmul.f32 %v812, 1.442695
    %v816 = vpow.pop %v815
    %v817 = vsel %vm428, %v814, 0.0
    %818 = vadd.xlane.f32.xlu0 %v817
    %v819 = vpop.xlane.xlu0 %818
    %v820 = vsel %vm428, %v816, 0.0
    %821 = vadd.xlane.f32.xlu0 %v820
    %v822 = vpop.xlane.xlu0 %821
    %v823 = vrcp.pop %v819
    %v824 = vmul.f32 %v814, %v823
    %v825 = vrcp.pop %v822
    %v826 = vmul.f32 %v816, %v825
    %v827 = vpack.c.bf16 %v826, %v824
    %828 = vrot.lane.b32.xlu0 %v452, 32
    %v829 = vpop.permute.xlu0 %828
    %v832 = vsel %vm428, %v827, 0
    %834 = vmatprep.subr.bf16.mxu0 0
    %835 = vmatpush1.bf16.msra.mxu0 %v829
    %836 = vmatprep.subr.bf16.mxu0 0
    %837 = vmatpush1.bf16.msra.mxu0 0
    %838 = vmatprep.subr.bf16.mxu0 0
    %839 = vmatpush1.bf16.msra.mxu0 0
    %840 = vmatprep.subr.bf16.mxu0 0
    %841 = vmatpush1.bf16.msra.mxu0 0
    %842 = vmatprep.subr.bf16.mxu0 0
    %843 = vmatpush1.bf16.msra.mxu0 0
    %844 = vmatprep.subr.bf16.mxu0 0
    %845 = vmatpush1.bf16.msra.mxu0 0
    %846 = vmatprep.subr.bf16.mxu0 0
    %847 = vmatpush1.bf16.msra.mxu0 0
    %848 = vmatprep.subr.bf16.mxu0 0
    %849 = vmatpush1.bf16.msra.mxu0 0
    %850 = vmatprep.subr.bf16.mxu0 0
    %851 = vmatpush1.bf16.msra.mxu0 0
    %852 = vmatprep.subr.bf16.mxu0 0
    %853 = vmatpush1.bf16.msra.mxu0 0
    %854 = vmatprep.subr.bf16.mxu0 0
    %855 = vmatpush1.bf16.msra.mxu0 0
    %856 = vmatprep.subr.bf16.mxu0 0
    %857 = vmatpush1.bf16.msra.mxu0 0
    %858 = vmatprep.subr.bf16.mxu0 0
    %859 = vmatpush1.bf16.msra.mxu0 0
    %860 = vmatprep.subr.bf16.mxu0 0
    %861 = vmatpush1.bf16.msra.mxu0 0
    %862 = vmatprep.subr.bf16.mxu0 0
    %863 = vmatpush1.bf16.msra.mxu0 0
    %864 = vmatprep.subr.bf16.mxu0 0
    %865 = vmatpush1.bf16.msra.mxu0 0
    %866 = vmatprep.mubr.bf16.mxu0 0
    %867 = vmatmul.mubr.bf16.gmra.mrb[0].mxu0 %v832
    %v868 = vpop.f32.mrb[0].mxu0
    %v869 = vadd.f32 0.0, %v868
    %v870 = vpop.f32.mrb[0].mxu0
    %v871 = vpop.f32.mrb[0].mxu0
    %v872 = vadd.f32 0.0, %v871
    %v873 = vpop.f32.mrb[0].mxu0
    %874 = vdwg.mxu0
    %877 = vrot.lane.b32.xlu0 %v619, 32
    %v878 = vpop.permute.xlu0 %877
    %879 = vrot.lane.b32.xlu0 %v622, 32
    %v880 = vpop.permute.xlu0 %879
    %885 = vrot.lane.b32.xlu0 %v744, 64
    %v886 = vpop.permute.xlu0 %885
    %887 = vrot.lane.b32.xlu0 %v747, 64
    %v888 = vpop.permute.xlu0 %887
    %893 = vrot.lane.b32.xlu0 %v869, 96
    %v894 = vpop.permute.xlu0 %893
    %895 = vrot.lane.b32.xlu0 %v872, 96
    %v896 = vpop.permute.xlu0 %895
    %v899 = vsel %vm372, %v491, %v878
    %v900 = vsel %vm372, %v494, %v880
    %vm901 = vcmask 523264
    %v902 = vsel %vm901, %v899, %v886
    %v903 = vsel %vm901, %v900, %v888
    %vm904 = vcmask 785408
    %v905 = vsel %vm904, %v902, %v894
    %v906 = vsel %vm904, %v903, %v896
    %v907 = vpack.c.bf16 %v317, %v313
    %v908 = vpack.c.bf16 %v319, %v315
    %v910 = vsel %vm372, %v907, 0
    %v913 = vsel %vm372, %v908, 0
    %915 = vmatprep.subr.bf16.mxu0 0
    %916 = vmatpush1.bf16.xpose.msra.mxu0 %v913
    %917 = vmatprep.subr.bf16.mxu0 0
    %918 = vmatpush1.bf16.xpose.msra.mxu0 0
    %919 = vmatprep.subr.bf16.mxu0 0
    %920 = vmatpush1.bf16.xpose.msra.mxu0 0
    %921 = vmatprep.subr.bf16.mxu0 0
    %922 = vmatpush1.bf16.xpose.msra.mxu0 0
    %923 = vmatprep.subr.bf16.mxu0 0
    %924 = vmatpush1.bf16.xpose.msra.mxu0 0
    %925 = vmatprep.subr.bf16.mxu0 0
    %926 = vmatpush1.bf16.xpose.msra.mxu0 0
    %927 = vmatprep.subr.bf16.mxu0 0
    %928 = vmatpush1.bf16.xpose.msra.mxu0 0
    %929 = vmatprep.subr.bf16.mxu0 0
    %930 = vmatpush1.bf16.xpose.msra.mxu0 0
    %931 = vmatprep.subr.bf16.mxu0 0
    %932 = vmatpush1.bf16.xpose.msra.mxu0 0
    %933 = vmatprep.subr.bf16.mxu0 0
    %934 = vmatpush1.bf16.xpose.msra.mxu0 0
    %935 = vmatprep.subr.bf16.mxu0 0
    %936 = vmatpush1.bf16.xpose.msra.mxu0 0
    %937 = vmatprep.subr.bf16.mxu0 0
    %938 = vmatpush1.bf16.xpose.msra.mxu0 0
    %939 = vmatprep.subr.bf16.mxu0 0
    %940 = vmatpush1.bf16.xpose.msra.mxu0 0
    %941 = vmatprep.subr.bf16.mxu0 0
    %942 = vmatpush1.bf16.xpose.msra.mxu0 0
    %943 = vmatprep.subr.bf16.mxu0 0
    %944 = vmatpush1.bf16.xpose.msra.mxu0 0
    %945 = vmatprep.subr.bf16.mxu0 0
    %946 = vmatpush1.bf16.xpose.msra.mxu0 0
    %947 = vmatprep.mubr.bf16.mxu0 0
    %948 = vmatmul.mubr.bf16.gmra.mrb[0].mxu0 %v910
    %v949 = vpop.f32.mrb[0].mxu0
    %v950 = vadd.f32 0.0, %v949
    %v951 = vpop.f32.mrb[0].mxu0
    %v952 = vpop.f32.mrb[0].mxu0
    %v953 = vadd.f32 0.0, %v952
    %v954 = vpop.f32.mrb[0].mxu0
    %955 = vdwg.mxu0
    %v956 = vmul.f32 %v950, 0.17677669
    %v957 = vmul.f32 %v953, 0.17677669
    %v958 = vlaneseq
    %v959 = vshrl.u32 %v958, 7
    %v960 = vsub.s32 1, %v959
    %v961 = vrot.slane %v176, %v960
    %v962 = vadd.f32 %v956, %v961
    %v963 = vadd.f32 %v957, %v961
    %v964 = vsel %vm428, %v962, -inf
    %965 = vmax.xlane.f32.xlu0 %v964
    %v966 = vpop.xlane.xlu0 %965
    %v967 = vsel %vm428, %v963, -inf
    %968 = vmax.xlane.f32.xlu0 %v967
    %v969 = vpop.xlane.xlu0 %968
    %v970 = vsub.f32 %v962, %v966
    %v971 = vsub.f32 %v963, %v969
    %v972 = vmul.f32 %v970, 1.442695
    %v973 = vpow.pop %v972
    %v974 = vmul.f32 %v971, 1.442695
    %v975 = vpow.pop %v974
    %v976 = vsel %vm428, %v973, 0.0
    %977 = vadd.xlane.f32.xlu0 %v976
    %v978 = vpop.xlane.xlu0 %977
    %v979 = vsel %vm428, %v975, 0.0
    %980 = vadd.xlane.f32.xlu0 %v979
    %v981 = vpop.xlane.xlu0 %980
    %v982 = vrcp.pop %v978
    %v983 = vmul.f32 %v973, %v982
    %v984 = vrcp.pop %v981
    %v985 = vmul.f32 %v975, %v984
    %v986 = vpack.c.bf16 %v985, %v983
    %v987 = vpack.c.bf16 %v367, %v364
    %v989 = vsel %vm428, %v986, 0
    %991 = vmatprep.subr.bf16.mxu0 0
    %992 = vmatpush1.bf16.msra.mxu0 %v987
    %993 = vmatprep.subr.bf16.mxu0 0
    %994 = vmatpush1.bf16.msra.mxu0 0
    %995 = vmatprep.subr.bf16.mxu0 0
    %996 = vmatpush1.bf16.msra.mxu0 0
    %997 = vmatprep.subr.bf16.mxu0 0
    %998 = vmatpush1.bf16.msra.mxu0 0
    %999 = vmatprep.subr.bf16.mxu0 0
    %1000 = vmatpush1.bf16.msra.mxu0 0
    %1001 = vmatprep.subr.bf16.mxu0 0
    %1002 = vmatpush1.bf16.msra.mxu0 0
    %1003 = vmatprep.subr.bf16.mxu0 0
    %1004 = vmatpush1.bf16.msra.mxu0 0
    %1005 = vmatprep.subr.bf16.mxu0 0
    %1006 = vmatpush1.bf16.msra.mxu0 0
    %1007 = vmatprep.subr.bf16.mxu0 0
    %1008 = vmatpush1.bf16.msra.mxu0 0
    %1009 = vmatprep.subr.bf16.mxu0 0
    %1010 = vmatpush1.bf16.msra.mxu0 0
    %1011 = vmatprep.subr.bf16.mxu0 0
    %1012 = vmatpush1.bf16.msra.mxu0 0
    %1013 = vmatprep.subr.bf16.mxu0 0
    %1014 = vmatpush1.bf16.msra.mxu0 0
    %1015 = vmatprep.subr.bf16.mxu0 0
    %1016 = vmatpush1.bf16.msra.mxu0 0
    %1017 = vmatprep.subr.bf16.mxu0 0
    %1018 = vmatpush1.bf16.msra.mxu0 0
    %1019 = vmatprep.subr.bf16.mxu0 0
    %1020 = vmatpush1.bf16.msra.mxu0 0
    %1021 = vmatprep.subr.bf16.mxu0 0
    %1022 = vmatpush1.bf16.msra.mxu0 0
    %1023 = vmatprep.mubr.bf16.mxu0 0
    %1024 = vmatmul.mubr.bf16.gmra.mrb[0].mxu0 %v989
    %v1025 = vpop.f32.mrb[0].mxu0
    %v1026 = vadd.f32 0.0, %v1025
    %v1027 = vpop.f32.mrb[0].mxu0
    %v1028 = vpop.f32.mrb[0].mxu0
    %v1029 = vadd.f32 0.0, %v1028
    %v1030 = vpop.f32.mrb[0].mxu0
    %1031 = vdwg.mxu0
    %1033 = vrot.lane.b32.xlu0 %v907, 96
    %v1034 = vpop.permute.xlu0 %1033
    %1036 = vrot.lane.b32.xlu0 %v908, 96
    %v1037 = vpop.permute.xlu0 %1036
    %v1039 = vsel %vm372, %v1034, 0
    %v1042 = vsel %vm372, %v1037, 0
    %1044 = vmatprep.subr.bf16.mxu0 0
    %1045 = vmatpush1.bf16.xpose.msra.mxu0 %v1042
    %1046 = vmatprep.subr.bf16.mxu0 0
    %1047 = vmatpush1.bf16.xpose.msra.mxu0 0
    %1048 = vmatprep.subr.bf16.mxu0 0
    %1049 = vmatpush1.bf16.xpose.msra.mxu0 0
    %1050 = vmatprep.subr.bf16.mxu0 0
    %1051 = vmatpush1.bf16.xpose.msra.mxu0 0
    %1052 = vmatprep.subr.bf16.mxu0 0
    %1053 = vmatpush1.bf16.xpose.msra.mxu0 0
    %1054 = vmatprep.subr.bf16.mxu0 0
    %1055 = vmatpush1.bf16.xpose.msra.mxu0 0
    %1056 = vmatprep.subr.bf16.mxu0 0
    %1057 = vmatpush1.bf16.xpose.msra.mxu0 0
    %1058 = vmatprep.subr.bf16.mxu0 0
    %1059 = vmatpush1.bf16.xpose.msra.mxu0 0
    %1060 = vmatprep.subr.bf16.mxu0 0
    %1061 = vmatpush1.bf16.xpose.msra.mxu0 0
    %1062 = vmatprep.subr.bf16.mxu0 0
    %1063 = vmatpush1.bf16.xpose.msra.mxu0 0
    %1064 = vmatprep.subr.bf16.mxu0 0
    %1065 = vmatpush1.bf16.xpose.msra.mxu0 0
    %1066 = vmatprep.subr.bf16.mxu0 0
    %1067 = vmatpush1.bf16.xpose.msra.mxu0 0
    %1068 = vmatprep.subr.bf16.mxu0 0
    %1069 = vmatpush1.bf16.xpose.msra.mxu0 0
    %1070 = vmatprep.subr.bf16.mxu0 0
    %1071 = vmatpush1.bf16.xpose.msra.mxu0 0
    %1072 = vmatprep.subr.bf16.mxu0 0
    %1073 = vmatpush1.bf16.xpose.msra.mxu0 0
    %1074 = vmatprep.subr.bf16.mxu0 0
    %1075 = vmatpush1.bf16.xpose.msra.mxu0 0
    %1076 = vmatprep.mubr.bf16.mxu0 0
    %1077 = vmatmul.mubr.bf16.gmra.mrb[0].mxu0 %v1039
    %v1078 = vpop.f32.mrb[0].mxu0
    %v1079 = vadd.f32 0.0, %v1078
    %v1080 = vpop.f32.mrb[0].mxu0
    %v1081 = vpop.f32.mrb[0].mxu0
    %v1082 = vadd.f32 0.0, %v1081
    %v1083 = vpop.f32.mrb[0].mxu0
    %1084 = vdwg.mxu0
    %v1085 = vmul.f32 %v1079, 0.17677669
    %v1086 = vmul.f32 %v1082, 0.17677669
    %v1087 = vadd.f32 %v1085, %v961
    %v1088 = vadd.f32 %v1086, %v961
    %v1089 = vsel %vm428, %v1087, -inf
    %1090 = vmax.xlane.f32.xlu0 %v1089
    %v1091 = vpop.xlane.xlu0 %1090
    %v1092 = vsel %vm428, %v1088, -inf
    %1093 = vmax.xlane.f32.xlu0 %v1092
    %v1094 = vpop.xlane.xlu0 %1093
    %v1095 = vsub.f32 %v1087, %v1091
    %v1096 = vsub.f32 %v1088, %v1094
    %v1097 = vmul.f32 %v1095, 1.442695
    %v1098 = vpow.pop %v1097
    %v1099 = vmul.f32 %v1096, 1.442695
    %v1100 = vpow.pop %v1099
    %v1101 = vsel %vm428, %v1098, 0.0
    %1102 = vadd.xlane.f32.xlu0 %v1101
    %v1103 = vpop.xlane.xlu0 %1102
    %v1104 = vsel %vm428, %v1100, 0.0
    %1105 = vadd.xlane.f32.xlu0 %v1104
    %v1106 = vpop.xlane.xlu0 %1105
    %v1107 = vrcp.pop %v1103
    %v1108 = vmul.f32 %v1098, %v1107
    %v1109 = vrcp.pop %v1106
    %v1110 = vmul.f32 %v1100, %v1109
    %v1111 = vpack.c.bf16 %v1110, %v1108
    %1113 = vrot.lane.b32.xlu0 %v987, 96
    %v1114 = vpop.permute.xlu0 %1113
    %v1117 = vsel %vm428, %v1111, 0
    %1119 = vmatprep.subr.bf16.mxu0 0
    %1120 = vmatpush1.bf16.msra.mxu0 %v1114
    %1121 = vmatprep.subr.bf16.mxu0 0
    %1122 = vmatpush1.bf16.msra.mxu0 0
    %1123 = vmatprep.subr.bf16.mxu0 0
    %1124 = vmatpush1.bf16.msra.mxu0 0
    %1125 = vmatprep.subr.bf16.mxu0 0
    %1126 = vmatpush1.bf16.msra.mxu0 0
    %1127 = vmatprep.subr.bf16.mxu0 0
    %1128 = vmatpush1.bf16.msra.mxu0 0
    %1129 = vmatprep.subr.bf16.mxu0 0
    %1130 = vmatpush1.bf16.msra.mxu0 0
    %1131 = vmatprep.subr.bf16.mxu0 0
    %1132 = vmatpush1.bf16.msra.mxu0 0
    %1133 = vmatprep.subr.bf16.mxu0 0
    %1134 = vmatpush1.bf16.msra.mxu0 0
    %1135 = vmatprep.subr.bf16.mxu0 0
    %1136 = vmatpush1.bf16.msra.mxu0 0
    %1137 = vmatprep.subr.bf16.mxu0 0
    %1138 = vmatpush1.bf16.msra.mxu0 0
    %1139 = vmatprep.subr.bf16.mxu0 0
    %1140 = vmatpush1.bf16.msra.mxu0 0
    %1141 = vmatprep.subr.bf16.mxu0 0
    %1142 = vmatpush1.bf16.msra.mxu0 0
    %1143 = vmatprep.subr.bf16.mxu0 0
    %1144 = vmatpush1.bf16.msra.mxu0 0
    %1145 = vmatprep.subr.bf16.mxu0 0
    %1146 = vmatpush1.bf16.msra.mxu0 0
    %1147 = vmatprep.subr.bf16.mxu0 0
    %1148 = vmatpush1.bf16.msra.mxu0 0
    %1149 = vmatprep.subr.bf16.mxu0 0
    %1150 = vmatpush1.bf16.msra.mxu0 0
    %1151 = vmatprep.mubr.bf16.mxu0 0
    %1152 = vmatmul.mubr.bf16.gmra.mrb[0].mxu0 %v1117
    %v1153 = vpop.f32.mrb[0].mxu0
    %v1154 = vadd.f32 0.0, %v1153
    %v1155 = vpop.f32.mrb[0].mxu0
    %v1156 = vpop.f32.mrb[0].mxu0
    %v1157 = vadd.f32 0.0, %v1156
    %v1158 = vpop.f32.mrb[0].mxu0
    %1159 = vdwg.mxu0
    %1160 = vrot.lane.b32.xlu0 %v907, 64
    %v1161 = vpop.permute.xlu0 %1160
    %1162 = vrot.lane.b32.xlu0 %v908, 64
    %v1163 = vpop.permute.xlu0 %1162
    %v1165 = vsel %vm372, %v1161, 0
    %v1168 = vsel %vm372, %v1163, 0
    %1170 = vmatprep.subr.bf16.mxu0 0
    %1171 = vmatpush1.bf16.xpose.msra.mxu0 %v1168
    %1172 = vmatprep.subr.bf16.mxu0 0
    %1173 = vmatpush1.bf16.xpose.msra.mxu0 0
    %1174 = vmatprep.subr.bf16.mxu0 0
    %1175 = vmatpush1.bf16.xpose.msra.mxu0 0
    %1176 = vmatprep.subr.bf16.mxu0 0
    %1177 = vmatpush1.bf16.xpose.msra.mxu0 0
    %1178 = vmatprep.subr.bf16.mxu0 0
    %1179 = vmatpush1.bf16.xpose.msra.mxu0 0
    %1180 = vmatprep.subr.bf16.mxu0 0
    %1181 = vmatpush1.bf16.xpose.msra.mxu0 0
    %1182 = vmatprep.subr.bf16.mxu0 0
    %1183 = vmatpush1.bf16.xpose.msra.mxu0 0
    %1184 = vmatprep.subr.bf16.mxu0 0
    %1185 = vmatpush1.bf16.xpose.msra.mxu0 0
    %1186 = vmatprep.subr.bf16.mxu0 0
    %1187 = vmatpush1.bf16.xpose.msra.mxu0 0
    %1188 = vmatprep.subr.bf16.mxu0 0
    %1189 = vmatpush1.bf16.xpose.msra.mxu0 0
    %1190 = vmatprep.subr.bf16.mxu0 0
    %1191 = vmatpush1.bf16.xpose.msra.mxu0 0
    %1192 = vmatprep.subr.bf16.mxu0 0
    %1193 = vmatpush1.bf16.xpose.msra.mxu0 0
    %1194 = vmatprep.subr.bf16.mxu0 0
    %1195 = vmatpush1.bf16.xpose.msra.mxu0 0
    %1196 = vmatprep.subr.bf16.mxu0 0
    %1197 = vmatpush1.bf16.xpose.msra.mxu0 0
    %1198 = vmatprep.subr.bf16.mxu0 0
    %1199 = vmatpush1.bf16.xpose.msra.mxu0 0
    %1200 = vmatprep.subr.bf16.mxu0 0
    %1201 = vmatpush1.bf16.xpose.msra.mxu0 0
    %1202 = vmatprep.mubr.bf16.mxu0 0
    %1203 = vmatmul.mubr.bf16.gmra.mrb[0].mxu0 %v1165
    %v1204 = vpop.f32.mrb[0].mxu0
    %v1205 = vadd.f32 0.0, %v1204
    %v1206 = vpop.f32.mrb[0].mxu0
    %v1207 = vpop.f32.mrb[0].mxu0
    %v1208 = vadd.f32 0.0, %v1207
    %v1209 = vpop.f32.mrb[0].mxu0
    %1210 = vdwg.mxu0
    %v1211 = vmul.f32 %v1205, 0.17677669
    %v1212 = vmul.f32 %v1208, 0.17677669
    %v1213 = vadd.f32 %v1211, %v961
    %v1214 = vadd.f32 %v1212, %v961
    %v1215 = vsel %vm428, %v1213, -inf
    %1216 = vmax.xlane.f32.xlu0 %v1215
    %v1217 = vpop.xlane.xlu0 %1216
    %v1218 = vsel %vm428, %v1214, -inf
    %1219 = vmax.xlane.f32.xlu0 %v1218
    %v1220 = vpop.xlane.xlu0 %1219
    %v1221 = vsub.f32 %v1213, %v1217
    %v1222 = vsub.f32 %v1214, %v1220
    %v1223 = vmul.f32 %v1221, 1.442695
    %v1224 = vpow.pop %v1223
    %v1225 = vmul.f32 %v1222, 1.442695
    %v1226 = vpow.pop %v1225
    %v1227 = vsel %vm428, %v1224, 0.0
    %1228 = vadd.xlane.f32.xlu0 %v1227
    %v1229 = vpop.xlane.xlu0 %1228
    %v1230 = vsel %vm428, %v1226, 0.0
    %1231 = vadd.xlane.f32.xlu0 %v1230
    %v1232 = vpop.xlane.xlu0 %1231
    %v1233 = vrcp.pop %v1229
    %v1234 = vmul.f32 %v1224, %v1233
    %v1235 = vrcp.pop %v1232
    %v1236 = vmul.f32 %v1226, %v1235
    %v1237 = vpack.c.bf16 %v1236, %v1234
    %1238 = vrot.lane.b32.xlu0 %v987, 64
    %v1239 = vpop.permute.xlu0 %1238
    %v1242 = vsel %vm428, %v1237, 0
    %1244 = vmatprep.subr.bf16.mxu0 0
    %1245 = vmatpush1.bf16.msra.mxu0 %v1239
    %1246 = vmatprep.subr.bf16.mxu0 0
    %1247 = vmatpush1.bf16.msra.mxu0 0
    %1248 = vmatprep.subr.bf16.mxu0 0
    %1249 = vmatpush1.bf16.msra.mxu0 0
    %1250 = vmatprep.subr.bf16.mxu0 0
    %1251 = vmatpush1.bf16.msra.mxu0 0
    %1252 = vmatprep.subr.bf16.mxu0 0
    %1253 = vmatpush1.bf16.msra.mxu0 0
    %1254 = vmatprep.subr.bf16.mxu0 0
    %1255 = vmatpush1.bf16.msra.mxu0 0
    %1256 = vmatprep.subr.bf16.mxu0 0
    %1257 = vmatpush1.bf16.msra.mxu0 0
    %1258 = vmatprep.subr.bf16.mxu0 0
    %1259 = vmatpush1.bf16.msra.mxu0 0
    %1260 = vmatprep.subr.bf16.mxu0 0
    %1261 = vmatpush1.bf16.msra.mxu0 0
    %1262 = vmatprep.subr.bf16.mxu0 0
    %1263 = vmatpush1.bf16.msra.mxu0 0
    %1264 = vmatprep.subr.bf16.mxu0 0
    %1265 = vmatpush1.bf16.msra.mxu0 0
    %1266 = vmatprep.subr.bf16.mxu0 0
    %1267 = vmatpush1.bf16.msra.mxu0 0
    %1268 = vmatprep.subr.bf16.mxu0 0
    %1269 = vmatpush1.bf16.msra.mxu0 0
    %1270 = vmatprep.subr.bf16.mxu0 0
    %1271 = vmatpush1.bf16.msra.mxu0 0
    %1272 = vmatprep.subr.bf16.mxu0 0
    %1273 = vmatpush1.bf16.msra.mxu0 0
    %1274 = vmatprep.subr.bf16.mxu0 0
    %1275 = vmatpush1.bf16.msra.mxu0 0
    %1276 = vmatprep.mubr.bf16.mxu0 0
    %1277 = vmatmul.mubr.bf16.gmra.mrb[0].mxu0 %v1242
    %v1278 = vpop.f32.mrb[0].mxu0
    %v1279 = vadd.f32 0.0, %v1278
    %v1280 = vpop.f32.mrb[0].mxu0
    %v1281 = vpop.f32.mrb[0].mxu0
    %v1282 = vadd.f32 0.0, %v1281
    %v1283 = vpop.f32.mrb[0].mxu0
    %1284 = vdwg.mxu0
    %1285 = vrot.lane.b32.xlu0 %v907, 32
    %v1286 = vpop.permute.xlu0 %1285
    %1287 = vrot.lane.b32.xlu0 %v908, 32
    %v1288 = vpop.permute.xlu0 %1287
    %v1290 = vsel %vm372, %v1286, 0
    %v1293 = vsel %vm372, %v1288, 0
    %1295 = vmatprep.subr.bf16.mxu0 0
    %1296 = vmatpush1.bf16.xpose.msra.mxu0 %v1293
    %1297 = vmatprep.subr.bf16.mxu0 0
    %1298 = vmatpush1.bf16.xpose.msra.mxu0 0
    %1299 = vmatprep.subr.bf16.mxu0 0
    %1300 = vmatpush1.bf16.xpose.msra.mxu0 0
    %1301 = vmatprep.subr.bf16.mxu0 0
    %1302 = vmatpush1.bf16.xpose.msra.mxu0 0
    %1303 = vmatprep.subr.bf16.mxu0 0
    %1304 = vmatpush1.bf16.xpose.msra.mxu0 0
    %1305 = vmatprep.subr.bf16.mxu0 0
    %1306 = vmatpush1.bf16.xpose.msra.mxu0 0
    %1307 = vmatprep.subr.bf16.mxu0 0
    %1308 = vmatpush1.bf16.xpose.msra.mxu0 0
    %1309 = vmatprep.subr.bf16.mxu0 0
    %1310 = vmatpush1.bf16.xpose.msra.mxu0 0
    %1311 = vmatprep.subr.bf16.mxu0 0
    %1312 = vmatpush1.bf16.xpose.msra.mxu0 0
    %1313 = vmatprep.subr.bf16.mxu0 0
    %1314 = vmatpush1.bf16.xpose.msra.mxu0 0
    %1315 = vmatprep.subr.bf16.mxu0 0
    %1316 = vmatpush1.bf16.xpose.msra.mxu0 0
    %1317 = vmatprep.subr.bf16.mxu0 0
    %1318 = vmatpush1.bf16.xpose.msra.mxu0 0
    %1319 = vmatprep.subr.bf16.mxu0 0
    %1320 = vmatpush1.bf16.xpose.msra.mxu0 0
    %1321 = vmatprep.subr.bf16.mxu0 0
    %1322 = vmatpush1.bf16.xpose.msra.mxu0 0
    %1323 = vmatprep.subr.bf16.mxu0 0
    %1324 = vmatpush1.bf16.xpose.msra.mxu0 0
    %1325 = vmatprep.subr.bf16.mxu0 0
    %1326 = vmatpush1.bf16.xpose.msra.mxu0 0
    %1327 = vmatprep.mubr.bf16.mxu0 0
    %1328 = vmatmul.mubr.bf16.gmra.mrb[0].mxu0 %v1290
    %v1329 = vpop.f32.mrb[0].mxu0
    %v1330 = vadd.f32 0.0, %v1329
    %v1331 = vpop.f32.mrb[0].mxu0
    %v1332 = vpop.f32.mrb[0].mxu0
    %v1333 = vadd.f32 0.0, %v1332
    %v1334 = vpop.f32.mrb[0].mxu0
    %1335 = vdwg.mxu0
    %v1336 = vmul.f32 %v1330, 0.17677669
    %v1337 = vmul.f32 %v1333, 0.17677669
    %v1338 = vadd.f32 %v1336, %v961
    %v1339 = vadd.f32 %v1337, %v961
    %v1340 = vsel %vm428, %v1338, -inf
    %1341 = vmax.xlane.f32.xlu0 %v1340
    %v1342 = vpop.xlane.xlu0 %1341
    %v1343 = vsel %vm428, %v1339, -inf
    %1344 = vmax.xlane.f32.xlu0 %v1343
    %v1345 = vpop.xlane.xlu0 %1344
    %v1346 = vsub.f32 %v1338, %v1342
    %v1347 = vsub.f32 %v1339, %v1345
    %v1348 = vmul.f32 %v1346, 1.442695
    %v1349 = vpow.pop %v1348
    %v1350 = vmul.f32 %v1347, 1.442695
    %v1351 = vpow.pop %v1350
    %v1352 = vsel %vm428, %v1349, 0.0
    %1353 = vadd.xlane.f32.xlu0 %v1352
    %v1354 = vpop.xlane.xlu0 %1353
    %v1355 = vsel %vm428, %v1351, 0.0
    %1356 = vadd.xlane.f32.xlu0 %v1355
    %v1357 = vpop.xlane.xlu0 %1356
    %v1358 = vrcp.pop %v1354
    %v1359 = vmul.f32 %v1349, %v1358
    %v1360 = vrcp.pop %v1357
    %v1361 = vmul.f32 %v1351, %v1360
    %v1362 = vpack.c.bf16 %v1361, %v1359
    %1363 = vrot.lane.b32.xlu0 %v987, 32
    %v1364 = vpop.permute.xlu0 %1363
    %v1367 = vsel %vm428, %v1362, 0
    %1369 = vmatprep.subr.bf16.mxu0 0
    %1370 = vmatpush1.bf16.msra.mxu0 %v1364
    %1371 = vmatprep.subr.bf16.mxu0 0
    %1372 = vmatpush1.bf16.msra.mxu0 0
    %1373 = vmatprep.subr.bf16.mxu0 0
    %1374 = vmatpush1.bf16.msra.mxu0 0
    %1375 = vmatprep.subr.bf16.mxu0 0
    %1376 = vmatpush1.bf16.msra.mxu0 0
    %1377 = vmatprep.subr.bf16.mxu0 0
    %1378 = vmatpush1.bf16.msra.mxu0 0
    %1379 = vmatprep.subr.bf16.mxu0 0
    %1380 = vmatpush1.bf16.msra.mxu0 0
    %1381 = vmatprep.subr.bf16.mxu0 0
    %1382 = vmatpush1.bf16.msra.mxu0 0
    %1383 = vmatprep.subr.bf16.mxu0 0
    %1384 = vmatpush1.bf16.msra.mxu0 0
    %1385 = vmatprep.subr.bf16.mxu0 0
    %1386 = vmatpush1.bf16.msra.mxu0 0
    %1387 = vmatprep.subr.bf16.mxu0 0
    %1388 = vmatpush1.bf16.msra.mxu0 0
    %1389 = vmatprep.subr.bf16.mxu0 0
    %1390 = vmatpush1.bf16.msra.mxu0 0
    %1391 = vmatprep.subr.bf16.mxu0 0
    %1392 = vmatpush1.bf16.msra.mxu0 0
    %1393 = vmatprep.subr.bf16.mxu0 0
    %1394 = vmatpush1.bf16.msra.mxu0 0
    %1395 = vmatprep.subr.bf16.mxu0 0
    %1396 = vmatpush1.bf16.msra.mxu0 0
    %1397 = vmatprep.subr.bf16.mxu0 0
    %1398 = vmatpush1.bf16.msra.mxu0 0
    %1399 = vmatprep.subr.bf16.mxu0 0
    %1400 = vmatpush1.bf16.msra.mxu0 0
    %1401 = vmatprep.mubr.bf16.mxu0 0
    %1402 = vmatmul.mubr.bf16.gmra.mrb[0].mxu0 %v1367
    %v1403 = vpop.f32.mrb[0].mxu0
    %v1404 = vadd.f32 0.0, %v1403
    %v1405 = vpop.f32.mrb[0].mxu0
    %v1406 = vpop.f32.mrb[0].mxu0
    %v1407 = vadd.f32 0.0, %v1406
    %v1408 = vpop.f32.mrb[0].mxu0
    %1409 = vdwg.mxu0
    %1412 = vrot.lane.b32.xlu0 %v1154, 32
    %v1413 = vpop.permute.xlu0 %1412
    %1414 = vrot.lane.b32.xlu0 %v1157, 32
    %v1415 = vpop.permute.xlu0 %1414
    %1420 = vrot.lane.b32.xlu0 %v1279, 64
    %v1421 = vpop.permute.xlu0 %1420
    %1422 = vrot.lane.b32.xlu0 %v1282, 64
    %v1423 = vpop.permute.xlu0 %1422
    %1428 = vrot.lane.b32.xlu0 %v1404, 96
    %v1429 = vpop.permute.xlu0 %1428
    %1430 = vrot.lane.b32.xlu0 %v1407, 96
    %v1431 = vpop.permute.xlu0 %1430
    %v1434 = vsel %vm372, %v1026, %v1413
    %v1435 = vsel %vm372, %v1029, %v1415
    %v1436 = vsel %vm901, %v1434, %v1421
    %v1437 = vsel %vm901, %v1435, %v1423
    %v1438 = vsel %vm904, %v1436, %v1429
    %v1439 = vsel %vm904, %v1437, %v1431
    %v1440 = vld [vmem:[%s8] sm:$0xff]
    %v1441 = vld [vmem:[%s8 + $0x8] sm:$0xff]
    %v1442 = vld [vmem:[%s8 + $0x10] sm:$0xff]
    %v1443 = vld [vmem:[%s8 + $0x18] sm:$0xff]
    %v1444 = vld [vmem:[%s8 + $0x20] sm:$0xff]
    %v1445 = vld [vmem:[%s8 + $0x28] sm:$0xff]
    %v1446 = vld [vmem:[%s8 + $0x30] sm:$0xff]
    %v1447 = vld [vmem:[%s8 + $0x38] sm:$0xff]
    %v1448 = vld [vmem:[%s8 + $0x40] sm:$0xff]
    %v1449 = vld [vmem:[%s8 + $0x48] sm:$0xff]
    %v1450 = vld [vmem:[%s8 + $0x50] sm:$0xff]
    %v1451 = vld [vmem:[%s8 + $0x58] sm:$0xff]
    %v1452 = vld [vmem:[%s8 + $0x60] sm:$0xff]
    %v1453 = vld [vmem:[%s8 + $0x68] sm:$0xff]
    %v1454 = vld [vmem:[%s8 + $0x70] sm:$0xff]
    %v1455 = vld [vmem:[%s8 + $0x78] sm:$0xff]
    %v1456 = vpack.c.bf16 %v906, %v905
    %v1457 = vpack.c.bf16 %v1439, %v1438
    %v1458 = vpack.c.bf16 %v1441, %v1440
    %v1459 = vpack.c.bf16 %v1443, %v1442
    %v1460 = vpack.c.bf16 %v1445, %v1444
    %v1461 = vpack.c.bf16 %v1447, %v1446
    %v1462 = vpack.c.bf16 %v1449, %v1448
    %v1463 = vpack.c.bf16 %v1451, %v1450
    %v1464 = vpack.c.bf16 %v1453, %v1452
    %v1465 = vpack.c.bf16 %v1455, %v1454
    %v1466 = vld [vmem:[%s9] sm:$0x1]
    %v1468 = vlaneseq
    %v1469 = vshrl.u32 %v1468, 7
    %v1470 = vsub.s32 0, %v1469
    %v1471 = vrot.slane %v1466, %v1470
    %1473 = vmatprep.subr.bf16.mxu0 0
    %1474 = vmatpush1.bf16.msra.mxu0 %v1458
    %1475 = vmatprep.subr.bf16.mxu0 0
    %1476 = vmatpush1.bf16.msra.mxu0 %v1459
    %1477 = vmatprep.subr.bf16.mxu0 0
    %1478 = vmatpush1.bf16.msra.mxu0 %v1460
    %1479 = vmatprep.subr.bf16.mxu0 0
    %1480 = vmatpush1.bf16.msra.mxu0 %v1461
    %1481 = vmatprep.subr.bf16.mxu0 0
    %1482 = vmatpush1.bf16.msra.mxu0 %v1462
    %1483 = vmatprep.subr.bf16.mxu0 0
    %1484 = vmatpush1.bf16.msra.mxu0 %v1463
    %1485 = vmatprep.subr.bf16.mxu0 0
    %1486 = vmatpush1.bf16.msra.mxu0 %v1464
    %1487 = vmatprep.subr.bf16.mxu0 0
    %1488 = vmatpush1.bf16.msra.mxu0 %v1465
    %1489 = vmatprep.subr.bf16.mxu0 0
    %1490 = vmatpush1.bf16.msra.mxu0 0
    %1491 = vmatprep.subr.bf16.mxu0 0
    %1492 = vmatpush1.bf16.msra.mxu0 0
    %1493 = vmatprep.subr.bf16.mxu0 0
    %1494 = vmatpush1.bf16.msra.mxu0 0
    %1495 = vmatprep.subr.bf16.mxu0 0
    %1496 = vmatpush1.bf16.msra.mxu0 0
    %1497 = vmatprep.subr.bf16.mxu0 0
    %1498 = vmatpush1.bf16.msra.mxu0 0
    %1499 = vmatprep.subr.bf16.mxu0 0
    %1500 = vmatpush1.bf16.msra.mxu0 0
    %1501 = vmatprep.subr.bf16.mxu0 0
    %1502 = vmatpush1.bf16.msra.mxu0 0
    %1503 = vmatprep.subr.bf16.mxu0 0
    %1504 = vmatpush1.bf16.msra.mxu0 0
    %1505 = vmatprep.mubr.bf16.mxu0 0
    %1506 = vmatmul.mubr.bf16.gmra.mrb[0].mxu0 %v1456
    %v1507 = vpop.f32.mrb[0].mxu0
    %v1508 = vadd.f32 %v1471, %v1507
    %v1509 = vpop.f32.mrb[0].mxu0
    %v1510 = vpop.f32.mrb[0].mxu0
    %v1511 = vadd.f32 %v1471, %v1510
    %v1512 = vpop.f32.mrb[0].mxu0
    %1513 = vmatprep.mubr.bf16.mxu0 0
    %1514 = vmatmul.mubr.bf16.gmra.mrb[0].mxu0 %v1457
    %v1515 = vpop.f32.mrb[0].mxu0
    %v1516 = vadd.f32 %v1471, %v1515
    %v1517 = vpop.f32.mrb[0].mxu0
    %v1518 = vpop.f32.mrb[0].mxu0
    %v1519 = vadd.f32 %v1471, %v1518
    %v1520 = vpop.f32.mrb[0].mxu0
    %1521 = vdwg.mxu0
    %v1522 = vadd.f32 %v172, %v1508
    %v1523 = vadd.f32 %v173, %v1511
    %v1524 = vadd.f32 %v174, %v1516
    %v1525 = vadd.f32 %v175, %v1519
    %v1526 = vld [vmem:[%s10] sm:$0x1]
    %v1527 = vld [vmem:[%s11] sm:$0x1]
    %1528 = vadd.xlane.f32.xlu0 %v1522
    %v1529 = vpop.xlane.xlu0 %1528
    %1530 = vadd.xlane.f32.xlu0 %v1523
    %v1531 = vpop.xlane.xlu0 %1530
    %1532 = vadd.xlane.f32.xlu0 %v1524
    %v1533 = vpop.xlane.xlu0 %1532
    %1534 = vadd.xlane.f32.xlu0 %v1525
    %v1535 = vpop.xlane.xlu0 %1534
    %v1536 = vmul.f32 %v1529, %v119
    %v1537 = vmul.f32 %v1531, %v119
    %v1538 = vmul.f32 %v1533, %v119
    %v1539 = vmul.f32 %v1535, %v119
    %v1540 = vsub.f32 %v1522, %v1536
    %v1541 = vsub.f32 %v1523, %v1537
    %v1542 = vsub.f32 %v1524, %v1538
    %v1543 = vsub.f32 %v1525, %v1539
    %v1544 = vmul.f32 %v1540, %v1540
    %v1545 = vmul.f32 %v1541, %v1541
    %v1546 = vmul.f32 %v1542, %v1542
    %v1547 = vmul.f32 %v1543, %v1543
    %1548 = vadd.xlane.f32.xlu0 %v1544
    %v1549 = vpop.xlane.xlu0 %1548
    %1550 = vadd.xlane.f32.xlu0 %v1545
    %v1551 = vpop.xlane.xlu0 %1550
    %1552 = vadd.xlane.f32.xlu0 %v1546
    %v1553 = vpop.xlane.xlu0 %1552
    %1554 = vadd.xlane.f32.xlu0 %v1547
    %v1555 = vpop.xlane.xlu0 %1554
    %v1556 = vmul.f32 %v1549, %v119
    %v1557 = vmul.f32 %v1551, %v119
    %v1558 = vmul.f32 %v1553, %v119
    %v1559 = vmul.f32 %v1555, %v119
    %v1560 = vadd.f32 %v1556, 1e-12
    %v1561 = vadd.f32 %v1557, 1e-12
    %v1562 = vadd.f32 %v1558, 1e-12
    %v1563 = vadd.f32 %v1559, 1e-12
    %v1564 = vrsqrt.pop %v1560
    %v1565 = vrsqrt.pop %v1561
    %v1566 = vrsqrt.pop %v1562
    %v1567 = vrsqrt.pop %v1563
    %v1568 = vmul.f32 %v1540, %v1564
    %v1569 = vmul.f32 %v1541, %v1565
    %v1570 = vmul.f32 %v1542, %v1566
    %v1571 = vmul.f32 %v1543, %v1567
    %v1573 = vlaneseq
    %v1574 = vshrl.u32 %v1573, 7
    %v1575 = vsub.s32 0, %v1574
    %v1576 = vrot.slane %v1526, %v1575
    %v1578 = vmul.f32 %v1568, %v1576
    %v1579 = vmul.f32 %v1569, %v1576
    %v1580 = vmul.f32 %v1570, %v1576
    %v1581 = vmul.f32 %v1571, %v1576
    %v1583 = vlaneseq
    %v1584 = vshrl.u32 %v1583, 7
    %v1585 = vsub.s32 0, %v1584
    %v1586 = vrot.slane %v1527, %v1585
    %v1588 = vadd.f32 %v1578, %v1586
    %v1589 = vadd.f32 %v1579, %v1586
    %v1590 = vadd.f32 %v1580, %v1586
    %v1591 = vadd.f32 %v1581, %v1586
    %v1592 = vld [vmem:[#allocation5] sm:$0xff]
    %v1593 = vld [vmem:[#allocation5 + $0x8] sm:$0xff]
    %v1594 = vld [vmem:[#allocation5 + $0x10] sm:$0xff]
    %v1595 = vld [vmem:[#allocation5 + $0x18] sm:$0xff]
    %v1596 = vld [vmem:[#allocation5 + $0x20] sm:$0xff]
    %v1597 = vld [vmem:[#allocation5 + $0x28] sm:$0xff]
    %v1598 = vld [vmem:[#allocation5 + $0x30] sm:$0xff]
    %v1599 = vld [vmem:[#allocation5 + $0x38] sm:$0xff]
    %v1600 = vld [vmem:[#allocation5 + $0x40] sm:$0xff]
    %v1601 = vld [vmem:[#allocation5 + $0x48] sm:$0xff]
    %v1602 = vld [vmem:[#allocation5 + $0x50] sm:$0xff]
    %v1603 = vld [vmem:[#allocation5 + $0x58] sm:$0xff]
    %v1604 = vld [vmem:[#allocation5 + $0x60] sm:$0xff]
    %v1605 = vld [vmem:[#allocation5 + $0x68] sm:$0xff]
    %v1606 = vld [vmem:[#allocation5 + $0x70] sm:$0xff]
    %v1607 = vld [vmem:[#allocation5 + $0x78] sm:$0xff]
    %v1608 = vld [vmem:[#allocation5 + $0x80] sm:$0xff]
    %v1609 = vld [vmem:[#allocation5 + $0x88] sm:$0xff]
    %v1610 = vld [vmem:[#allocation5 + $0x90] sm:$0xff]
    %v1611 = vld [vmem:[#allocation5 + $0x98] sm:$0xff]
    %v1612 = vld [vmem:[#allocation5 + $0xa0] sm:$0xff]
    %v1613 = vld [vmem:[#allocation5 + $0xa8] sm:$0xff]
    %v1614 = vld [vmem:[#allocation5 + $0xb0] sm:$0xff]
    %v1615 = vld [vmem:[#allocation5 + $0xb8] sm:$0xff]
    %v1616 = vld [vmem:[#allocation5 + $0xc0] sm:$0xff]
    %v1617 = vld [vmem:[#allocation5 + $0xc8] sm:$0xff]
    %v1618 = vld [vmem:[#allocation5 + $0xd0] sm:$0xff]
    %v1619 = vld [vmem:[#allocation5 + $0xd8] sm:$0xff]
    %v1620 = vld [vmem:[#allocation5 + $0xe0] sm:$0xff]
    %v1621 = vld [vmem:[#allocation5 + $0xe8] sm:$0xff]
    %v1622 = vld [vmem:[#allocation5 + $0xf0] sm:$0xff]
    %v1623 = vld [vmem:[#allocation5 + $0xf8] sm:$0xff]
    %v1624 = vld [vmem:[#allocation5 + $0x100] sm:$0xff]
    %v1625 = vld [vmem:[#allocation5 + $0x108] sm:$0xff]
    %v1626 = vld [vmem:[#allocation5 + $0x110] sm:$0xff]
    %v1627 = vld [vmem:[#allocation5 + $0x118] sm:$0xff]
    %v1628 = vld [vmem:[#allocation5 + $0x120] sm:$0xff]
    %v1629 = vld [vmem:[#allocation5 + $0x128] sm:$0xff]
    %v1630 = vld [vmem:[#allocation5 + $0x130] sm:$0xff]
    %v1631 = vld [vmem:[#allocation5 + $0x138] sm:$0xff]
    %v1632 = vld [vmem:[#allocation5 + $0x140] sm:$0xff]
    %v1633 = vld [vmem:[#allocation5 + $0x148] sm:$0xff]
    %v1634 = vld [vmem:[#allocation5 + $0x150] sm:$0xff]
    %v1635 = vld [vmem:[#allocation5 + $0x158] sm:$0xff]
    %v1636 = vld [vmem:[#allocation5 + $0x160] sm:$0xff]
    %v1637 = vld [vmem:[#allocation5 + $0x168] sm:$0xff]
    %v1638 = vld [vmem:[#allocation5 + $0x170] sm:$0xff]
    %v1639 = vld [vmem:[#allocation5 + $0x178] sm:$0xff]
    %v1640 = vld [vmem:[#allocation5 + $0x180] sm:$0xff]
    %v1641 = vld [vmem:[#allocation5 + $0x188] sm:$0xff]
    %v1642 = vld [vmem:[#allocation5 + $0x190] sm:$0xff]
    %v1643 = vld [vmem:[#allocation5 + $0x198] sm:$0xff]
    %v1644 = vld [vmem:[#allocation5 + $0x1a0] sm:$0xff]
    %v1645 = vld [vmem:[#allocation5 + $0x1a8] sm:$0xff]
    %v1646 = vld [vmem:[#allocation5 + $0x1b0] sm:$0xff]
    %v1647 = vld [vmem:[#allocation5 + $0x1b8] sm:$0xff]
    %v1648 = vld [vmem:[#allocation5 + $0x1c0] sm:$0xff]
    %v1649 = vld [vmem:[#allocation5 + $0x1c8] sm:$0xff]
    %v1650 = vld [vmem:[#allocation5 + $0x1d0] sm:$0xff]
    %v1651 = vld [vmem:[#allocation5 + $0x1d8] sm:$0xff]
    %v1652 = vld [vmem:[#allocation5 + $0x1e0] sm:$0xff]
    %v1653 = vld [vmem:[#allocation5 + $0x1e8] sm:$0xff]
    %v1654 = vld [vmem:[#allocation5 + $0x1f0] sm:$0xff]
    %v1655 = vld [vmem:[#allocation5 + $0x1f8] sm:$0xff]
    %v1656 = vpack.c.bf16 %v1589, %v1588
    %v1657 = vpack.c.bf16 %v1591, %v1590
    %v1658 = vpack.c.bf16 %v1596, %v1592
    %v1659 = vpack.c.bf16 %v1597, %v1593
    %v1660 = vpack.c.bf16 %v1598, %v1594
    %v1661 = vpack.c.bf16 %v1599, %v1595
    %v1662 = vpack.c.bf16 %v1604, %v1600
    %v1663 = vpack.c.bf16 %v1605, %v1601
    %v1664 = vpack.c.bf16 %v1606, %v1602
    %v1665 = vpack.c.bf16 %v1607, %v1603
    %v1666 = vpack.c.bf16 %v1612, %v1608
    %v1667 = vpack.c.bf16 %v1613, %v1609
    %v1668 = vpack.c.bf16 %v1614, %v1610
    %v1669 = vpack.c.bf16 %v1615, %v1611
    %v1670 = vpack.c.bf16 %v1620, %v1616
    %v1671 = vpack.c.bf16 %v1621, %v1617
    %v1672 = vpack.c.bf16 %v1622, %v1618
    %v1673 = vpack.c.bf16 %v1623, %v1619
    %v1674 = vpack.c.bf16 %v1628, %v1624
    %v1675 = vpack.c.bf16 %v1629, %v1625
    %v1676 = vpack.c.bf16 %v1630, %v1626
    %v1677 = vpack.c.bf16 %v1631, %v1627
    %v1678 = vpack.c.bf16 %v1636, %v1632
    %v1679 = vpack.c.bf16 %v1637, %v1633
    %v1680 = vpack.c.bf16 %v1638, %v1634
    %v1681 = vpack.c.bf16 %v1639, %v1635
    %v1682 = vpack.c.bf16 %v1644, %v1640
    %v1683 = vpack.c.bf16 %v1645, %v1641
    %v1684 = vpack.c.bf16 %v1646, %v1642
    %v1685 = vpack.c.bf16 %v1647, %v1643
    %v1686 = vpack.c.bf16 %v1652, %v1648
    %v1687 = vpack.c.bf16 %v1653, %v1649
    %v1688 = vpack.c.bf16 %v1654, %v1650
    %v1689 = vpack.c.bf16 %v1655, %v1651
    %v1690 = vld [vmem:[%s13] sm:$0xf]
    %v1692 = vlaneseq
    %v1693 = vshrl.u32 %v1692, 7
    %v1694 = vsub.s32 0, %v1693
    %v1695 = vrot.slane %v1690, %v1694
    %v1696 = vlaneseq
    %v1697 = vshrl.u32 %v1696, 7
    %v1698 = vsub.s32 1, %v1697
    %v1699 = vrot.slane %v1690, %v1698
    %v1700 = vlaneseq
    %v1701 = vshrl.u32 %v1700, 7
    %v1702 = vsub.s32 2, %v1701
    %v1703 = vrot.slane %v1690, %v1702
    %v1704 = vlaneseq
    %v1705 = vshrl.u32 %v1704, 7
    %v1706 = vsub.s32 3, %v1705
    %v1707 = vrot.slane %v1690, %v1706
    %1712 = vmatprep.subr.bf16.mxu0 %v1659
    %1713 = vmatpush1.bf16.msra.mxu0 %v1658
    %1714 = vmatprep.subr.bf16.mxu0 %v1663
    %1715 = vmatpush1.bf16.msra.mxu0 %v1662
    %1716 = vmatprep.subr.bf16.mxu0 %v1667
    %1717 = vmatpush1.bf16.msra.mxu0 %v1666
    %1718 = vmatprep.subr.bf16.mxu0 %v1671
    %1719 = vmatpush1.bf16.msra.mxu0 %v1670
    %1720 = vmatprep.subr.bf16.mxu0 %v1675
    %1721 = vmatpush1.bf16.msra.mxu0 %v1674
    %1722 = vmatprep.subr.bf16.mxu0 %v1679
    %1723 = vmatpush1.bf16.msra.mxu0 %v1678
    %1724 = vmatprep.subr.bf16.mxu0 %v1683
    %1725 = vmatpush1.bf16.msra.mxu0 %v1682
    %1726 = vmatprep.subr.bf16.mxu0 %v1687
    %1727 = vmatpush1.bf16.msra.mxu0 %v1686
    %1728 = vmatprep.subr.bf16.mxu0 0
    %1729 = vmatpush1.bf16.msra.mxu0 0
    %1730 = vmatprep.subr.bf16.mxu0 0
    %1731 = vmatpush1.bf16.msra.mxu0 0
    %1732 = vmatprep.subr.bf16.mxu0 0
    %1733 = vmatpush1.bf16.msra.mxu0 0
    %1734 = vmatprep.subr.bf16.mxu0 0
    %1735 = vmatpush1.bf16.msra.mxu0 0
    %1736 = vmatprep.subr.bf16.mxu0 0
    %1737 = vmatpush1.bf16.msra.mxu0 0
    %1738 = vmatprep.subr.bf16.mxu0 0
    %1739 = vmatpush1.bf16.msra.mxu0 0
    %1740 = vmatprep.subr.bf16.mxu0 0
    %1741 = vmatpush1.bf16.msra.mxu0 0
    %1742 = vmatprep.subr.bf16.mxu0 0
    %1743 = vmatpush1.bf16.msra.mxu0 0
    %1744 = vmatprep.mubr.bf16.mxu0 0
    %1745 = vmatmul.mubr.bf16.gmra.mrb[0].mxu0 %v1656
    %v1746 = vpop.f32.mrb[0].mxu0
    %v1747 = vadd.f32 %v1695, %v1746
    %v1748 = vpop.f32.mrb[0].mxu0
    %v1749 = vadd.f32 %v1699, %v1748
    %v1750 = vpop.f32.mrb[0].mxu0
    %v1751 = vadd.f32 %v1695, %v1750
    %v1752 = vpop.f32.mrb[0].mxu0
    %v1753 = vadd.f32 %v1699, %v1752
    %1754 = vmatprep.mubr.bf16.mxu0 0
    %1755 = vmatmul.mubr.bf16.gmra.mrb[0].mxu0 %v1657
    %v1756 = vpop.f32.mrb[0].mxu0
    %v1757 = vadd.f32 %v1695, %v1756
    %v1758 = vpop.f32.mrb[0].mxu0
    %v1759 = vadd.f32 %v1699, %v1758
    %v1760 = vpop.f32.mrb[0].mxu0
    %v1761 = vadd.f32 %v1695, %v1760
    %v1762 = vpop.f32.mrb[0].mxu0
    %v1763 = vadd.f32 %v1699, %v1762
    %1764 = vdwg.mxu0
    %1765 = vmatprep.subr.bf16.mxu0 %v1661
    %1766 = vmatpush1.bf16.msra.mxu0 %v1660
    %1767 = vmatprep.subr.bf16.mxu0 %v1665
    %1768 = vmatpush1.bf16.msra.mxu0 %v1664
    %1769 = vmatprep.subr.bf16.mxu0 %v1669
    %1770 = vmatpush1.bf16.msra.mxu0 %v1668
    %1771 = vmatprep.subr.bf16.mxu0 %v1673
    %1772 = vmatpush1.bf16.msra.mxu0 %v1672
    %1773 = vmatprep.subr.bf16.mxu0 %v1677
    %1774 = vmatpush1.bf16.msra.mxu0 %v1676
    %1775 = vmatprep.subr.bf16.mxu0 %v1681
    %1776 = vmatpush1.bf16.msra.mxu0 %v1680
    %1777 = vmatprep.subr.bf16.mxu0 %v1685
    %1778 = vmatpush1.bf16.msra.mxu0 %v1684
    %1779 = vmatprep.subr.bf16.mxu0 %v1689
    %1780 = vmatpush1.bf16.msra.mxu0 %v1688
    %1781 = vmatprep.subr.bf16.mxu0 0
    %1782 = vmatpush1.bf16.msra.mxu0 0
    %1783 = vmatprep.subr.bf16.mxu0 0
    %1784 = vmatpush1.bf16.msra.mxu0 0
    %1785 = vmatprep.subr.bf16.mxu0 0
    %1786 = vmatpush1.bf16.msra.mxu0 0
    %1787 = vmatprep.subr.bf16.mxu0 0
    %1788 = vmatpush1.bf16.msra.mxu0 0
    %1789 = vmatprep.subr.bf16.mxu0 0
    %1790 = vmatpush1.bf16.msra.mxu0 0
    %1791 = vmatprep.subr.bf16.mxu0 0
    %1792 = vmatpush1.bf16.msra.mxu0 0
    %1793 = vmatprep.subr.bf16.mxu0 0
    %1794 = vmatpush1.bf16.msra.mxu0 0
    %1795 = vmatprep.subr.bf16.mxu0 0
    %1796 = vmatpush1.bf16.msra.mxu0 0
    %1797 = vmatprep.mubr.bf16.mxu0 0
    %1798 = vmatmul.mubr.bf16.gmra.mrb[0].mxu0 %v1656
    %v1799 = vpop.f32.mrb[0].mxu0
    %v1800 = vadd.f32 %v1703, %v1799
    %v1801 = vpop.f32.mrb[0].mxu0
    %v1802 = vadd.f32 %v1707, %v1801
    %v1803 = vpop.f32.mrb[0].mxu0
    %v1804 = vadd.f32 %v1703, %v1803
    %v1805 = vpop.f32.mrb[0].mxu0
    %v1806 = vadd.f32 %v1707, %v1805
    %1807 = vmatprep.mubr.bf16.mxu0 0
    %1808 = vmatmul.mubr.bf16.gmra.mrb[0].mxu0 %v1657
    %v1809 = vpop.f32.mrb[0].mxu0
    %v1810 = vadd.f32 %v1703, %v1809
    %v1811 = vpop.f32.mrb[0].mxu0
    %v1812 = vadd.f32 %v1707, %v1811
    %v1813 = vpop.f32.mrb[0].mxu0
    %v1814 = vadd.f32 %v1703, %v1813
    %v1815 = vpop.f32.mrb[0].mxu0
    %v1816 = vadd.f32 %v1707, %v1815
    %1817 = vdwg.mxu0
    %v1818 = vmul.f32 %v1747, 0.5
    %v1819 = vmul.f32 %v1749, 0.5
    %v1820 = vmul.f32 %v1800, 0.5
    %v1821 = vmul.f32 %v1802, 0.5
    %v1822 = vmul.f32 %v1751, 0.5
    %v1823 = vmul.f32 %v1753, 0.5
    %v1824 = vmul.f32 %v1804, 0.5
    %v1825 = vmul.f32 %v1806, 0.5
    %v1826 = vmul.f32 %v1757, 0.5
    %v1827 = vmul.f32 %v1759, 0.5
    %v1828 = vmul.f32 %v1810, 0.5
    %v1829 = vmul.f32 %v1812, 0.5
    %v1830 = vmul.f32 %v1761, 0.5
    %v1831 = vmul.f32 %v1763, 0.5
    %v1832 = vmul.f32 %v1814, 0.5
    %v1833 = vmul.f32 %v1816, 0.5
    %v1834 = vmul.f32 %v1747, 0.044715
    %v1835 = vmul.f32 %v1749, 0.044715
    %v1836 = vmul.f32 %v1800, 0.044715
    %v1837 = vmul.f32 %v1802, 0.044715
    %v1838 = vmul.f32 %v1751, 0.044715
    %v1839 = vmul.f32 %v1753, 0.044715
    %v1840 = vmul.f32 %v1804, 0.044715
    %v1841 = vmul.f32 %v1806, 0.044715
    %v1842 = vmul.f32 %v1757, 0.044715
    %v1843 = vmul.f32 %v1759, 0.044715
    %v1844 = vmul.f32 %v1810, 0.044715
    %v1845 = vmul.f32 %v1812, 0.044715
    %v1846 = vmul.f32 %v1761, 0.044715
    %v1847 = vmul.f32 %v1763, 0.044715
    %v1848 = vmul.f32 %v1814, 0.044715
    %v1849 = vmul.f32 %v1816, 0.044715
    %v1850 = vmul.f32 %v1834, %v1747
    %v1851 = vmul.f32 %v1835, %v1749
    %v1852 = vmul.f32 %v1836, %v1800
    %v1853 = vmul.f32 %v1837, %v1802
    %v1854 = vmul.f32 %v1838, %v1751
    %v1855 = vmul.f32 %v1839, %v1753
    %v1856 = vmul.f32 %v1840, %v1804
    %v1857 = vmul.f32 %v1841, %v1806
    %v1858 = vmul.f32 %v1842, %v1757
    %v1859 = vmul.f32 %v1843, %v1759
    %v1860 = vmul.f32 %v1844, %v1810
    %v1861 = vmul.f32 %v1845, %v1812
    %v1862 = vmul.f32 %v1846, %v1761
    %v1863 = vmul.f32 %v1847, %v1763
    %v1864 = vmul.f32 %v1848, %v1814
    %v1865 = vmul.f32 %v1849, %v1816
    %v1866 = vmul.f32 %v1850, %v1747
    %v1867 = vmul.f32 %v1851, %v1749
    %v1868 = vmul.f32 %v1852, %v1800
    %v1869 = vmul.f32 %v1853, %v1802
    %v1870 = vmul.f32 %v1854, %v1751
    %v1871 = vmul.f32 %v1855, %v1753
    %v1872 = vmul.f32 %v1856, %v1804
    %v1873 = vmul.f32 %v1857, %v1806
    %v1874 = vmul.f32 %v1858, %v1757
    %v1875 = vmul.f32 %v1859, %v1759
    %v1876 = vmul.f32 %v1860, %v1810
    %v1877 = vmul.f32 %v1861, %v1812
    %v1878 = vmul.f32 %v1862, %v1761
    %v1879 = vmul.f32 %v1863, %v1763
    %v1880 = vmul.f32 %v1864, %v1814
    %v1881 = vmul.f32 %v1865, %v1816
    %v1882 = vadd.f32 %v1747, %v1866
    %v1883 = vadd.f32 %v1749, %v1867
    %v1884 = vadd.f32 %v1800, %v1868
    %v1885 = vadd.f32 %v1802, %v1869
    %v1886 = vadd.f32 %v1751, %v1870
    %v1887 = vadd.f32 %v1753, %v1871
    %v1888 = vadd.f32 %v1804, %v1872
    %v1889 = vadd.f32 %v1806, %v1873
    %v1890 = vadd.f32 %v1757, %v1874
    %v1891 = vadd.f32 %v1759, %v1875
    %v1892 = vadd.f32 %v1810, %v1876
    %v1893 = vadd.f32 %v1812, %v1877
    %v1894 = vadd.f32 %v1761, %v1878
    %v1895 = vadd.f32 %v1763, %v1879
    %v1896 = vadd.f32 %v1814, %v1880
    %v1897 = vadd.f32 %v1816, %v1881
    %v1898 = vmul.f32 %v1882, 0.7978846
    %v1899 = vmul.f32 %v1883, 0.7978846
    %v1900 = vmul.f32 %v1884, 0.7978846
    %v1901 = vmul.f32 %v1885, 0.7978846
    %v1902 = vmul.f32 %v1886, 0.7978846
    %v1903 = vmul.f32 %v1887, 0.7978846
    %v1904 = vmul.f32 %v1888, 0.7978846
    %v1905 = vmul.f32 %v1889, 0.7978846
    %v1906 = vmul.f32 %v1890, 0.7978846
    %v1907 = vmul.f32 %v1891, 0.7978846
    %v1908 = vmul.f32 %v1892, 0.7978846
    %v1909 = vmul.f32 %v1893, 0.7978846
    %v1910 = vmul.f32 %v1894, 0.7978846
    %v1911 = vmul.f32 %v1895, 0.7978846
    %v1912 = vmul.f32 %v1896, 0.7978846
    %v1913 = vmul.f32 %v1897, 0.7978846
    %v1914 = vtanh.pop %v1898
    %v1915 = vtanh.pop %v1899
    %v1916 = vtanh.pop %v1900
    %v1917 = vtanh.pop %v1901
    %v1918 = vtanh.pop %v1902
    %v1919 = vtanh.pop %v1903
    %v1920 = vtanh.pop %v1904
    %v1921 = vtanh.pop %v1905
    %v1922 = vtanh.pop %v1906
    %v1923 = vtanh.pop %v1907
    %v1924 = vtanh.pop %v1908
    %v1925 = vtanh.pop %v1909
    %v1926 = vtanh.pop %v1910
    %v1927 = vtanh.pop %v1911
    %v1928 = vtanh.pop %v1912
    %v1929 = vtanh.pop %v1913
    %v1930 = vadd.f32 %v1914, 1.0
    %v1931 = vadd.f32 %v1915, 1.0
    %v1932 = vadd.f32 %v1916, 1.0
    %v1933 = vadd.f32 %v1917, 1.0
    %v1934 = vadd.f32 %v1918, 1.0
    %v1935 = vadd.f32 %v1919, 1.0
    %v1936 = vadd.f32 %v1920, 1.0
    %v1937 = vadd.f32 %v1921, 1.0
    %v1938 = vadd.f32 %v1922, 1.0
    %v1939 = vadd.f32 %v1923, 1.0
    %v1940 = vadd.f32 %v1924, 1.0
    %v1941 = vadd.f32 %v1925, 1.0
    %v1942 = vadd.f32 %v1926, 1.0
    %v1943 = vadd.f32 %v1927, 1.0
    %v1944 = vadd.f32 %v1928, 1.0
    %v1945 = vadd.f32 %v1929, 1.0
    %v1946 = vmul.f32 %v1818, %v1930
    %v1947 = vmul.f32 %v1819, %v1931
    %v1948 = vmul.f32 %v1820, %v1932
    %v1949 = vmul.f32 %v1821, %v1933
    %v1950 = vmul.f32 %v1822, %v1934
    %v1951 = vmul.f32 %v1823, %v1935
    %v1952 = vmul.f32 %v1824, %v1936
    %v1953 = vmul.f32 %v1825, %v1937
    %v1954 = vmul.f32 %v1826, %v1938
    %v1955 = vmul.f32 %v1827, %v1939
    %v1956 = vmul.f32 %v1828, %v1940
    %v1957 = vmul.f32 %v1829, %v1941
    %v1958 = vmul.f32 %v1830, %v1942
    %v1959 = vmul.f32 %v1831, %v1943
    %v1960 = vmul.f32 %v1832, %v1944
    %v1961 = vmul.f32 %v1833, %v1945
    %v1962 = vld [vmem:[#allocation7] sm:$0xff]
    %v1963 = vld [vmem:[#allocation7 + $0x8] sm:$0xff]
    %v1964 = vld [vmem:[#allocation7 + $0x10] sm:$0xff]
    %v1965 = vld [vmem:[#allocation7 + $0x18] sm:$0xff]
    %v1966 = vld [vmem:[#allocation7 + $0x20] sm:$0xff]
    %v1967 = vld [vmem:[#allocation7 + $0x28] sm:$0xff]
    %v1968 = vld [vmem:[#allocation7 + $0x30] sm:$0xff]
    %v1969 = vld [vmem:[#allocation7 + $0x38] sm:$0xff]
    %v1970 = vld [vmem:[#allocation7 + $0x40] sm:$0xff]
    %v1971 = vld [vmem:[#allocation7 + $0x48] sm:$0xff]
    %v1972 = vld [vmem:[#allocation7 + $0x50] sm:$0xff]
    %v1973 = vld [vmem:[#allocation7 + $0x58] sm:$0xff]
    %v1974 = vld [vmem:[#allocation7 + $0x60] sm:$0xff]
    %v1975 = vld [vmem:[#allocation7 + $0x68] sm:$0xff]
    %v1976 = vld [vmem:[#allocation7 + $0x70] sm:$0xff]
    %v1977 = vld [vmem:[#allocation7 + $0x78] sm:$0xff]
    %v1978 = vld [vmem:[#allocation7 + $0x80] sm:$0xff]
    %v1979 = vld [vmem:[#allocation7 + $0x88] sm:$0xff]
    %v1980 = vld [vmem:[#allocation7 + $0x90] sm:$0xff]
    %v1981 = vld [vmem:[#allocation7 + $0x98] sm:$0xff]
    %v1982 = vld [vmem:[#allocation7 + $0xa0] sm:$0xff]
    %v1983 = vld [vmem:[#allocation7 + $0xa8] sm:$0xff]
    %v1984 = vld [vmem:[#allocation7 + $0xb0] sm:$0xff]
    %v1985 = vld [vmem:[#allocation7 + $0xb8] sm:$0xff]
    %v1986 = vld [vmem:[#allocation7 + $0xc0] sm:$0xff]
    %v1987 = vld [vmem:[#allocation7 + $0xc8] sm:$0xff]
    %v1988 = vld [vmem:[#allocation7 + $0xd0] sm:$0xff]
    %v1989 = vld [vmem:[#allocation7 + $0xd8] sm:$0xff]
    %v1990 = vld [vmem:[#allocation7 + $0xe0] sm:$0xff]
    %v1991 = vld [vmem:[#allocation7 + $0xe8] sm:$0xff]
    %v1992 = vld [vmem:[#allocation7 + $0xf0] sm:$0xff]
    %v1993 = vld [vmem:[#allocation7 + $0xf8] sm:$0xff]
    %v1994 = vld [vmem:[#allocation7 + $0x100] sm:$0xff]
    %v1995 = vld [vmem:[#allocation7 + $0x108] sm:$0xff]
    %v1996 = vld [vmem:[#allocation7 + $0x110] sm:$0xff]
    %v1997 = vld [vmem:[#allocation7 + $0x118] sm:$0xff]
    %v1998 = vld [vmem:[#allocation7 + $0x120] sm:$0xff]
    %v1999 = vld [vmem:[#allocation7 + $0x128] sm:$0xff]
    %v2000 = vld [vmem:[#allocation7 + $0x130] sm:$0xff]
    %v2001 = vld [vmem:[#allocation7 + $0x138] sm:$0xff]
    %v2002 = vld [vmem:[#allocation7 + $0x140] sm:$0xff]
    %v2003 = vld [vmem:[#allocation7 + $0x148] sm:$0xff]
    %v2004 = vld [vmem:[#allocation7 + $0x150] sm:$0xff]
    %v2005 = vld [vmem:[#allocation7 + $0x158] sm:$0xff]
    %v2006 = vld [vmem:[#allocation7 + $0x160] sm:$0xff]
    %v2007 = vld [vmem:[#allocation7 + $0x168] sm:$0xff]
    %v2008 = vld [vmem:[#allocation7 + $0x170] sm:$0xff]
    %v2009 = vld [vmem:[#allocation7 + $0x178] sm:$0xff]
    %v2010 = vld [vmem:[#allocation7 + $0x180] sm:$0xff]
    %v2011 = vld [vmem:[#allocation7 + $0x188] sm:$0xff]
    %v2012 = vld [vmem:[#allocation7 + $0x190] sm:$0xff]
    %v2013 = vld [vmem:[#allocation7 + $0x198] sm:$0xff]
    %v2014 = vld [vmem:[#allocation7 + $0x1a0] sm:$0xff]
    %v2015 = vld [vmem:[#allocation7 + $0x1a8] sm:$0xff]
    %v2016 = vld [vmem:[#allocation7 + $0x1b0] sm:$0xff]
    %v2017 = vld [vmem:[#allocation7 + $0x1b8] sm:$0xff]
    %v2018 = vld [vmem:[#allocation7 + $0x1c0] sm:$0xff]
    %v2019 = vld [vmem:[#allocation7 + $0x1c8] sm:$0xff]
    %v2020 = vld [vmem:[#allocation7 + $0x1d0] sm:$0xff]
    %v2021 = vld [vmem:[#allocation7 + $0x1d8] sm:$0xff]
    %v2022 = vld [vmem:[#allocation7 + $0x1e0] sm:$0xff]
    %v2023 = vld [vmem:[#allocation7 + $0x1e8] sm:$0xff]
    %v2024 = vld [vmem:[#allocation7 + $0x1f0] sm:$0xff]
    %v2025 = vld [vmem:[#allocation7 + $0x1f8] sm:$0xff]
    %v2026 = vpack.c.bf16 %v1950, %v1946
    %v2027 = vpack.c.bf16 %v1951, %v1947
    %v2028 = vpack.c.bf16 %v1952, %v1948
    %v2029 = vpack.c.bf16 %v1953, %v1949
    %v2030 = vpack.c.bf16 %v1958, %v1954
    %v2031 = vpack.c.bf16 %v1959, %v1955
    %v2032 = vpack.c.bf16 %v1960, %v1956
    %v2033 = vpack.c.bf16 %v1961, %v1957
    %v2034 = vpack.c.bf16 %v1963, %v1962
    %v2035 = vpack.c.bf16 %v1965, %v1964
    %v2036 = vpack.c.bf16 %v1967, %v1966
    %v2037 = vpack.c.bf16 %v1969, %v1968
    %v2038 = vpack.c.bf16 %v1971, %v1970
    %v2039 = vpack.c.bf16 %v1973, %v1972
    %v2040 = vpack.c.bf16 %v1975, %v1974
    %v2041 = vpack.c.bf16 %v1977, %v1976
    %v2042 = vpack.c.bf16 %v1979, %v1978
    %v2043 = vpack.c.bf16 %v1981, %v1980
    %v2044 = vpack.c.bf16 %v1983, %v1982
    %v2045 = vpack.c.bf16 %v1985, %v1984
    %v2046 = vpack.c.bf16 %v1987, %v1986
    %v2047 = vpack.c.bf16 %v1989, %v1988
    %v2048 = vpack.c.bf16 %v1991, %v1990
    %v2049 = vpack.c.bf16 %v1993, %v1992
    %v2050 = vpack.c.bf16 %v1995, %v1994
    %v2051 = vpack.c.bf16 %v1997, %v1996
    %v2052 = vpack.c.bf16 %v1999, %v1998
    %v2053 = vpack.c.bf16 %v2001, %v2000
    %v2054 = vpack.c.bf16 %v2003, %v2002
    %v2055 = vpack.c.bf16 %v2005, %v2004
    %v2056 = vpack.c.bf16 %v2007, %v2006
    %v2057 = vpack.c.bf16 %v2009, %v2008
    %v2058 = vpack.c.bf16 %v2011, %v2010
    %v2059 = vpack.c.bf16 %v2013, %v2012
    %v2060 = vpack.c.bf16 %v2015, %v2014
    %v2061 = vpack.c.bf16 %v2017, %v2016
    %v2062 = vpack.c.bf16 %v2019, %v2018
    %v2063 = vpack.c.bf16 %v2021, %v2020
    %v2064 = vpack.c.bf16 %v2023, %v2022
    %v2065 = vpack.c.bf16 %v2025, %v2024
    %v2066 = vld [vmem:[%s15] sm:$0x1]
    %v2068 = vlaneseq
    %v2069 = vshrl.u32 %v2068, 7
    %v2070 = vsub.s32 0, %v2069
    %v2071 = vrot.slane %v2066, %v2070
    %2073 = vmatprep.subr.bf16.mxu0 0
    %2074 = vmatpush1.bf16.msra.mxu0 %v2034
    %2075 = vmatprep.subr.bf16.mxu0 0
    %2076 = vmatpush1.bf16.msra.mxu0 %v2035
    %2077 = vmatprep.subr.bf16.mxu0 0
    %2078 = vmatpush1.bf16.msra.mxu0 %v2036
    %2079 = vmatprep.subr.bf16.mxu0 0
    %2080 = vmatpush1.bf16.msra.mxu0 %v2037
    %2081 = vmatprep.subr.bf16.mxu0 0
    %2082 = vmatpush1.bf16.msra.mxu0 %v2038
    %2083 = vmatprep.subr.bf16.mxu0 0
    %2084 = vmatpush1.bf16.msra.mxu0 %v2039
    %2085 = vmatprep.subr.bf16.mxu0 0
    %2086 = vmatpush1.bf16.msra.mxu0 %v2040
    %2087 = vmatprep.subr.bf16.mxu0 0
    %2088 = vmatpush1.bf16.msra.mxu0 %v2041
    %2089 = vmatprep.subr.bf16.mxu0 0
    %2090 = vmatpush1.bf16.msra.mxu0 %v2042
    %2091 = vmatprep.subr.bf16.mxu0 0
    %2092 = vmatpush1.bf16.msra.mxu0 %v2043
    %2093 = vmatprep.subr.bf16.mxu0 0
    %2094 = vmatpush1.bf16.msra.mxu0 %v2044
    %2095 = vmatprep.subr.bf16.mxu0 0
    %2096 = vmatpush1.bf16.msra.mxu0 %v2045
    %2097 = vmatprep.subr.bf16.mxu0 0
    %2098 = vmatpush1.bf16.msra.mxu0 %v2046
    %2099 = vmatprep.subr.bf16.mxu0 0
    %2100 = vmatpush1.bf16.msra.mxu0 %v2047
    %2101 = vmatprep.subr.bf16.mxu0 0
    %2102 = vmatpush1.bf16.msra.mxu0 %v2048
    %2103 = vmatprep.subr.bf16.mxu0 0
    %2104 = vmatpush1.bf16.msra.mxu0 %v2049
    %2105 = vmatprep.mubr.bf16.mxu0 %v2027
    %2106 = vmatmul.mubr.bf16.gmra.mrb[0].mxu0 %v2026
    %v2107 = vpop.f32.mrb[0].mxu0
    %v2108 = vadd.f32 %v2071, %v2107
    %v2109 = vpop.f32.mrb[0].mxu0
    %v2110 = vpop.f32.mrb[0].mxu0
    %v2111 = vadd.f32 %v2071, %v2110
    %v2112 = vpop.f32.mrb[0].mxu0
    %2113 = vmatprep.mubr.bf16.mxu0 %v2031
    %2114 = vmatmul.mubr.bf16.gmra.mrb[0].mxu0 %v2030
    %v2115 = vpop.f32.mrb[0].mxu0
    %v2116 = vadd.f32 %v2071, %v2115
    %v2117 = vpop.f32.mrb[0].mxu0
    %v2118 = vpop.f32.mrb[0].mxu0
    %v2119 = vadd.f32 %v2071, %v2118
    %v2120 = vpop.f32.mrb[0].mxu0
    %2121 = vdwg.mxu0
    %2122 = vmatprep.subr.bf16.mxu0 0
    %2123 = vmatpush1.bf16.msra.mxu0 %v2050
    %2124 = vmatprep.subr.bf16.mxu0 0
    %2125 = vmatpush1.bf16.msra.mxu0 %v2051
    %2126 = vmatprep.subr.bf16.mxu0 0
    %2127 = vmatpush1.bf16.msra.mxu0 %v2052
    %2128 = vmatprep.subr.bf16.mxu0 0
    %2129 = vmatpush1.bf16.msra.mxu0 %v2053
    %2130 = vmatprep.subr.bf16.mxu0 0
    %2131 = vmatpush1.bf16.msra.mxu0 %v2054
    %2132 = vmatprep.subr.bf16.mxu0 0
    %2133 = vmatpush1.bf16.msra.mxu0 %v2055
    %2134 = vmatprep.subr.bf16.mxu0 0
    %2135 = vmatpush1.bf16.msra.mxu0 %v2056
    %2136 = vmatprep.subr.bf16.mxu0 0
    %2137 = vmatpush1.bf16.msra.mxu0 %v2057
    %2138 = vmatprep.subr.bf16.mxu0 0
    %2139 = vmatpush1.bf16.msra.mxu0 %v2058
    %2140 = vmatprep.subr.bf16.mxu0 0
    %2141 = vmatpush1.bf16.msra.mxu0 %v2059
    %2142 = vmatprep.subr.bf16.mxu0 0
    %2143 = vmatpush1.bf16.msra.mxu0 %v2060
    %2144 = vmatprep.subr.bf16.mxu0 0
    %2145 = vmatpush1.bf16.msra.mxu0 %v2061
    %2146 = vmatprep.subr.bf16.mxu0 0
    %2147 = vmatpush1.bf16.msra.mxu0 %v2062
    %2148 = vmatprep.subr.bf16.mxu0 0
    %2149 = vmatpush1.bf16.msra.mxu0 %v2063
    %2150 = vmatprep.subr.bf16.mxu0 0
    %2151 = vmatpush1.bf16.msra.mxu0 %v2064
    %2152 = vmatprep.subr.bf16.mxu0 0
    %2153 = vmatpush1.bf16.msra.mxu0 %v2065
    %2154 = vmatprep.mubr.bf16.mxu0 %v2029
    %2155 = vmatmul.mubr.bf16.gmra.mrb[0].mxu0 %v2028
    %v2156 = vpop.f32.mrb[0].mxu0
    %v2157 = vadd.f32 %v2108, %v2156
    %v2158 = vpop.f32.mrb[0].mxu0
    %v2159 = vpop.f32.mrb[0].mxu0
    %v2160 = vadd.f32 %v2111, %v2159
    %v2161 = vpop.f32.mrb[0].mxu0
    %2162 = vmatprep.mubr.bf16.mxu0 %v2033
    %2163 = vmatmul.mubr.bf16.gmra.mrb[0].mxu0 %v2032
    %v2164 = vpop.f32.mrb[0].mxu0
    %v2165 = vadd.f32 %v2116, %v2164
    %v2166 = vpop.f32.mrb[0].mxu0
    %v2167 = vpop.f32.mrb[0].mxu0
    %v2168 = vadd.f32 %v2119, %v2167
    %v2169 = vpop.f32.mrb[0].mxu0
    %2170 = vdwg.mxu0
    %v2171 = vadd.f32 %v1588, %v2157
    %v2172 = vadd.f32 %v1589, %v2160
    %v2173 = vadd.f32 %v1590, %v2165
    %v2174 = vadd.f32 %v1591, %v2168
    %v2175 = vld [vmem:[%s16] sm:$0x1]
    %v2176 = vld [vmem:[%s17] sm:$0x1]
    %2177 = vadd.xlane.f32.xlu0 %v2171
    %v2178 = vpop.xlane.xlu0 %2177
    %2179 = vadd.xlane.f32.xlu0 %v2172
    %v2180 = vpop.xlane.xlu0 %2179
    %2181 = vadd.xlane.f32.xlu0 %v2173
    %v2182 = vpop.xlane.xlu0 %2181
    %2183 = vadd.xlane.f32.xlu0 %v2174
    %v2184 = vpop.xlane.xlu0 %2183
    %v2185 = vmul.f32 %v2178, %v119
    %v2186 = vmul.f32 %v2180, %v119
    %v2187 = vmul.f32 %v2182, %v119
    %v2188 = vmul.f32 %v2184, %v119
    %v2189 = vsub.f32 %v2171, %v2185
    %v2190 = vsub.f32 %v2172, %v2186
    %v2191 = vsub.f32 %v2173, %v2187
    %v2192 = vsub.f32 %v2174, %v2188
    %v2193 = vmul.f32 %v2189, %v2189
    %v2194 = vmul.f32 %v2190, %v2190
    %v2195 = vmul.f32 %v2191, %v2191
    %v2196 = vmul.f32 %v2192, %v2192
    %2197 = vadd.xlane.f32.xlu0 %v2193
    %v2198 = vpop.xlane.xlu0 %2197
    %2199 = vadd.xlane.f32.xlu0 %v2194
    %v2200 = vpop.xlane.xlu0 %2199
    %2201 = vadd.xlane.f32.xlu0 %v2195
    %v2202 = vpop.xlane.xlu0 %2201
    %2203 = vadd.xlane.f32.xlu0 %v2196
    %v2204 = vpop.xlane.xlu0 %2203
    %v2205 = vmul.f32 %v2198, %v119
    %v2206 = vmul.f32 %v2200, %v119
    %v2207 = vmul.f32 %v2202, %v119
    %v2208 = vmul.f32 %v2204, %v119
    %v2209 = vadd.f32 %v2205, 1e-12
    %v2210 = vadd.f32 %v2206, 1e-12
    %v2211 = vadd.f32 %v2207, 1e-12
    %v2212 = vadd.f32 %v2208, 1e-12
    %v2213 = vrsqrt.pop %v2209
    %v2214 = vrsqrt.pop %v2210
    %v2215 = vrsqrt.pop %v2211
    %v2216 = vrsqrt.pop %v2212
    %v2217 = vmul.f32 %v2189, %v2213
    %v2218 = vmul.f32 %v2190, %v2214
    %v2219 = vmul.f32 %v2191, %v2215
    %v2220 = vmul.f32 %v2192, %v2216
    %v2222 = vlaneseq
    %v2223 = vshrl.u32 %v2222, 7
    %v2224 = vsub.s32 0, %v2223
    %v2225 = vrot.slane %v2175, %v2224
    %v2227 = vmul.f32 %v2217, %v2225
    %v2228 = vmul.f32 %v2218, %v2225
    %v2229 = vmul.f32 %v2219, %v2225
    %v2230 = vmul.f32 %v2220, %v2225
    %v2232 = vlaneseq
    %v2233 = vshrl.u32 %v2232, 7
    %v2234 = vsub.s32 0, %v2233
    %v2235 = vrot.slane %v2176, %v2234
    %v2237 = vadd.f32 %v2227, %v2235
    %v2238 = vadd.f32 %v2228, %v2235
    %v2239 = vadd.f32 %v2229, %v2235
    %v2240 = vadd.f32 %v2230, %v2235
    %s2241 = scalar_lea.vmem [#allocation2], 384
    %v2242 = vld [vmem:[%s2241] sm:$0xff]
    %v2243 = vld [vmem:[%s2241 + $0x8] sm:$0xff]
    %v2244 = vld [vmem:[%s2241 + $0x10] sm:$0xff]
    %v2245 = vld [vmem:[%s2241 + $0x18] sm:$0xff]
    %v2246 = vld [vmem:[%s2241 + $0x20] sm:$0xff]
    %v2247 = vld [vmem:[%s2241 + $0x28] sm:$0xff]
    %v2248 = vld [vmem:[%s2241 + $0x30] sm:$0xff]
    %v2249 = vld [vmem:[%s2241 + $0x38] sm:$0xff]
    %v2250 = vld [vmem:[%s2241 + $0x40] sm:$0xff]
    %v2251 = vld [vmem:[%s2241 + $0x48] sm:$0xff]
    %v2252 = vld [vmem:[%s2241 + $0x50] sm:$0xff]
    %v2253 = vld [vmem:[%s2241 + $0x58] sm:$0xff]
    %v2254 = vld [vmem:[%s2241 + $0x60] sm:$0xff]
    %v2255 = vld [vmem:[%s2241 + $0x68] sm:$0xff]
    %v2256 = vld [vmem:[%s2241 + $0x70] sm:$0xff]
    %v2257 = vld [vmem:[%s2241 + $0x78] sm:$0xff]
    %v2258 = vld [vmem:[%s2241 + $0x80] sm:$0xff]
    %v2259 = vld [vmem:[%s2241 + $0x88] sm:$0xff]
    %v2260 = vld [vmem:[%s2241 + $0x90] sm:$0xff]
    %v2261 = vld [vmem:[%s2241 + $0x98] sm:$0xff]
    %v2262 = vld [vmem:[%s2241 + $0xa0] sm:$0xff]
    %v2263 = vld [vmem:[%s2241 + $0xa8] sm:$0xff]
    %v2264 = vld [vmem:[%s2241 + $0xb0] sm:$0xff]
    %v2265 = vld [vmem:[%s2241 + $0xb8] sm:$0xff]
    %v2266 = vld [vmem:[%s2241 + $0xc0] sm:$0xff]
    %v2267 = vld [vmem:[%s2241 + $0xc8] sm:$0xff]
    %v2268 = vld [vmem:[%s2241 + $0xd0] sm:$0xff]
    %v2269 = vld [vmem:[%s2241 + $0xd8] sm:$0xff]
    %v2270 = vld [vmem:[%s2241 + $0xe0] sm:$0xff]
    %v2271 = vld [vmem:[%s2241 + $0xe8] sm:$0xff]
    %v2272 = vld [vmem:[%s2241 + $0xf0] sm:$0xff]
    %v2273 = vld [vmem:[%s2241 + $0xf8] sm:$0xff]
    %v2274 = vld [vmem:[%s2241 + $0x100] sm:$0xff]
    %v2275 = vld [vmem:[%s2241 + $0x108] sm:$0xff]
    %v2276 = vld [vmem:[%s2241 + $0x110] sm:$0xff]
    %v2277 = vld [vmem:[%s2241 + $0x118] sm:$0xff]
    %v2278 = vld [vmem:[%s2241 + $0x120] sm:$0xff]
    %v2279 = vld [vmem:[%s2241 + $0x128] sm:$0xff]
    %v2280 = vld [vmem:[%s2241 + $0x130] sm:$0xff]
    %v2281 = vld [vmem:[%s2241 + $0x138] sm:$0xff]
    %v2282 = vld [vmem:[%s2241 + $0x140] sm:$0xff]
    %v2283 = vld [vmem:[%s2241 + $0x148] sm:$0xff]
    %v2284 = vld [vmem:[%s2241 + $0x150] sm:$0xff]
    %v2285 = vld [vmem:[%s2241 + $0x158] sm:$0xff]
    %v2286 = vld [vmem:[%s2241 + $0x160] sm:$0xff]
    %v2287 = vld [vmem:[%s2241 + $0x168] sm:$0xff]
    %v2288 = vld [vmem:[%s2241 + $0x170] sm:$0xff]
    %v2289 = vld [vmem:[%s2241 + $0x178] sm:$0xff]
    %v2290 = vpack.c.bf16 %v2238, %v2237
    %v2291 = vpack.c.bf16 %v2240, %v2239
    %v2292 = vpack.c.bf16 %v2245, %v2242
    %v2293 = vpack.c.bf16 %v2246, %v2243
    %v2294 = vpack.c.bf16 %v2247, %v2244
    %v2295 = vpack.c.bf16 %v2251, %v2248
    %v2296 = vpack.c.bf16 %v2252, %v2249
    %v2297 = vpack.c.bf16 %v2253, %v2250
    %v2298 = vpack.c.bf16 %v2257, %v2254
    %v2299 = vpack.c.bf16 %v2258, %v2255
    %v2300 = vpack.c.bf16 %v2259, %v2256
    %v2301 = vpack.c.bf16 %v2263, %v2260
    %v2302 = vpack.c.bf16 %v2264, %v2261
    %v2303 = vpack.c.bf16 %v2265, %v2262
    %v2304 = vpack.c.bf16 %v2269, %v2266
    %v2305 = vpack.c.bf16 %v2270, %v2267
    %v2306 = vpack.c.bf16 %v2271, %v2268
    %v2307 = vpack.c.bf16 %v2275, %v2272
    %v2308 = vpack.c.bf16 %v2276, %v2273
    %v2309 = vpack.c.bf16 %v2277, %v2274
    %v2310 = vpack.c.bf16 %v2281, %v2278
    %v2311 = vpack.c.bf16 %v2282, %v2279
    %v2312 = vpack.c.bf16 %v2283, %v2280
    %v2313 = vpack.c.bf16 %v2287, %v2284
    %v2314 = vpack.c.bf16 %v2288, %v2285
    %v2315 = vpack.c.bf16 %v2289, %v2286
    %s2316 = scalar_lea.vmem %s7, 3
    %v2317 = vld [vmem:[%s2316] sm:$0x7]
    %v2319 = vlaneseq
    %v2320 = vshrl.u32 %v2319, 7
    %v2321 = vsub.s32 0, %v2320
    %v2322 = vrot.slane %v2317, %v2321
    %v2323 = vlaneseq
    %v2324 = vshrl.u32 %v2323, 7
    %v2325 = vsub.s32 1, %v2324
    %v2326 = vrot.slane %v2317, %v2325
    %v2327 = vlaneseq
    %v2328 = vshrl.u32 %v2327, 7
    %v2329 = vsub.s32 2, %v2328
    %v2330 = vrot.slane %v2317, %v2329
    %2334 = vmatprep.subr.bf16.mxu0 %v2293
    %2335 = vmatpush1.bf16.msra.mxu0 %v2292
    %2336 = vmatprep.subr.bf16.mxu0 %v2296
    %2337 = vmatpush1.bf16.msra.mxu0 %v2295
    %2338 = vmatprep.subr.bf16.mxu0 %v2299
    %2339 = vmatpush1.bf16.msra.mxu0 %v2298
    %2340 = vmatprep.subr.bf16.mxu0 %v2302
    %2341 = vmatpush1.bf16.msra.mxu0 %v2301
    %2342 = vmatprep.subr.bf16.mxu0 %v2305
    %2343 = vmatpush1.bf16.msra.mxu0 %v2304
    %2344 = vmatprep.subr.bf16.mxu0 %v2308
    %2345 = vmatpush1.bf16.msra.mxu0 %v2307
    %2346 = vmatprep.subr.bf16.mxu0 %v2311
    %2347 = vmatpush1.bf16.msra.mxu0 %v2310
    %2348 = vmatprep.subr.bf16.mxu0 %v2314
    %2349 = vmatpush1.bf16.msra.mxu0 %v2313
    %2350 = vmatprep.subr.bf16.mxu0 0
    %2351 = vmatpush1.bf16.msra.mxu0 0
    %2352 = vmatprep.subr.bf16.mxu0 0
    %2353 = vmatpush1.bf16.msra.mxu0 0
    %2354 = vmatprep.subr.bf16.mxu0 0
    %2355 = vmatpush1.bf16.msra.mxu0 0
    %2356 = vmatprep.subr.bf16.mxu0 0
    %2357 = vmatpush1.bf16.msra.mxu0 0
    %2358 = vmatprep.subr.bf16.mxu0 0
    %2359 = vmatpush1.bf16.msra.mxu0 0
    %2360 = vmatprep.subr.bf16.mxu0 0
    %2361 = vmatpush1.bf16.msra.mxu0 0
    %2362 = vmatprep.subr.bf16.mxu0 0
    %2363 = vmatpush1.bf16.msra.mxu0 0
    %2364 = vmatprep.subr.bf16.mxu0 0
    %2365 = vmatpush1.bf16.msra.mxu0 0
    %2366 = vmatprep.mubr.bf16.mxu0 0
    %2367 = vmatmul.mubr.bf16.gmra.mrb[0].mxu0 %v2290
    %v2368 = vpop.f32.mrb[0].mxu0
    %v2369 = vadd.f32 %v2322, %v2368
    %v2370 = vpop.f32.mrb[0].mxu0
    %v2371 = vadd.f32 %v2326, %v2370
    %v2372 = vpop.f32.mrb[0].mxu0
    %v2373 = vadd.f32 %v2322, %v2372
    %v2374 = vpop.f32.mrb[0].mxu0
    %v2375 = vadd.f32 %v2326, %v2374
    %2376 = vmatprep.mubr.bf16.mxu0 0
    %2377 = vmatmul.mubr.bf16.gmra.mrb[0].mxu0 %v2291
    %v2378 = vpop.f32.mrb[0].mxu0
    %v2379 = vadd.f32 %v2322, %v2378
    %v2380 = vpop.f32.mrb[0].mxu0
    %v2381 = vadd.f32 %v2326, %v2380
    %v2382 = vpop.f32.mrb[0].mxu0
    %v2383 = vadd.f32 %v2322, %v2382
    %v2384 = vpop.f32.mrb[0].mxu0
    %v2385 = vadd.f32 %v2326, %v2384
    %2386 = vdwg.mxu0
    %2387 = vmatprep.subr.bf16.mxu0 0
    %2388 = vmatpush1.bf16.msra.mxu0 %v2294
    %2389 = vmatprep.subr.bf16.mxu0 0
    %2390 = vmatpush1.bf16.msra.mxu0 %v2297
    %2391 = vmatprep.subr.bf16.mxu0 0
    %2392 = vmatpush1.bf16.msra.mxu0 %v2300
    %2393 = vmatprep.subr.bf16.mxu0 0
    %2394 = vmatpush1.bf16.msra.mxu0 %v2303
    %2395 = vmatprep.subr.bf16.mxu0 0
    %2396 = vmatpush1.bf16.msra.mxu0 %v2306
    %2397 = vmatprep.subr.bf16.mxu0 0
    %2398 = vmatpush1.bf16.msra.mxu0 %v2309
    %2399 = vmatprep.subr.bf16.mxu0 0
    %2400 = vmatpush1.bf16.msra.mxu0 %v2312
    %2401 = vmatprep.subr.bf16.mxu0 0
    %2402 = vmatpush1.bf16.msra.mxu0 %v2315
    %2403 = vmatprep.subr.bf16.mxu0 0
    %2404 = vmatpush1.bf16.msra.mxu0 0
    %2405 = vmatprep.subr.bf16.mxu0 0
    %2406 = vmatpush1.bf16.msra.mxu0 0
    %2407 = vmatprep.subr.bf16.mxu0 0
    %2408 = vmatpush1.bf16.msra.mxu0 0
    %2409 = vmatprep.subr.bf16.mxu0 0
    %2410 = vmatpush1.bf16.msra.mxu0 0
    %2411 = vmatprep.subr.bf16.mxu0 0
    %2412 = vmatpush1.bf16.msra.mxu0 0
    %2413 = vmatprep.subr.bf16.mxu0 0
    %2414 = vmatpush1.bf16.msra.mxu0 0
    %2415 = vmatprep.subr.bf16.mxu0 0
    %2416 = vmatpush1.bf16.msra.mxu0 0
    %2417 = vmatprep.subr.bf16.mxu0 0
    %2418 = vmatpush1.bf16.msra.mxu0 0
    %2419 = vmatprep.mubr.bf16.mxu0 0
    %2420 = vmatmul.mubr.bf16.gmra.mrb[0].mxu0 %v2290
    %v2421 = vpop.f32.mrb[0].mxu0
    %v2422 = vadd.f32 %v2330, %v2421
    %v2423 = vpop.f32.mrb[0].mxu0
    %v2424 = vpop.f32.mrb[0].mxu0
    %v2425 = vadd.f32 %v2330, %v2424
    %v2426 = vpop.f32.mrb[0].mxu0
    %2427 = vmatprep.mubr.bf16.mxu0 0
    %2428 = vmatmul.mubr.bf16.gmra.mrb[0].mxu0 %v2291
    %v2429 = vpop.f32.mrb[0].mxu0
    %v2430 = vadd.f32 %v2330, %v2429
    %v2431 = vpop.f32.mrb[0].mxu0
    %v2432 = vpop.f32.mrb[0].mxu0
    %v2433 = vadd.f32 %v2330, %v2432
    %v2434 = vpop.f32.mrb[0].mxu0
    %2435 = vdwg.mxu0
    %v2436 = vpack.c.bf16 %v2373, %v2369
    %v2437 = vpack.c.bf16 %v2375, %v2371
    %v2439 = vsel %vm372, %v2436, 0
    %v2442 = vsel %vm372, %v2437, 0
    %2444 = vmatprep.subr.bf16.mxu0 0
    %2445 = vmatpush1.bf16.xpose.msra.mxu0 %v2442
    %2446 = vmatprep.subr.bf16.mxu0 0
    %2447 = vmatpush1.bf16.xpose.msra.mxu0 0
    %2448 = vmatprep.subr.bf16.mxu0 0
    %2449 = vmatpush1.bf16.xpose.msra.mxu0 0
    %2450 = vmatprep.subr.bf16.mxu0 0
    %2451 = vmatpush1.bf16.xpose.msra.mxu0 0
    %2452 = vmatprep.subr.bf16.mxu0 0
    %2453 = vmatpush1.bf16.xpose.msra.mxu0 0
    %2454 = vmatprep.subr.bf16.mxu0 0
    %2455 = vmatpush1.bf16.xpose.msra.mxu0 0
    %2456 = vmatprep.subr.bf16.mxu0 0
    %2457 = vmatpush1.bf16.xpose.msra.mxu0 0
    %2458 = vmatprep.subr.bf16.mxu0 0
    %2459 = vmatpush1.bf16.xpose.msra.mxu0 0
    %2460 = vmatprep.subr.bf16.mxu0 0
    %2461 = vmatpush1.bf16.xpose.msra.mxu0 0
    %2462 = vmatprep.subr.bf16.mxu0 0
    %2463 = vmatpush1.bf16.xpose.msra.mxu0 0
    %2464 = vmatprep.subr.bf16.mxu0 0
    %2465 = vmatpush1.bf16.xpose.msra.mxu0 0
    %2466 = vmatprep.subr.bf16.mxu0 0
    %2467 = vmatpush1.bf16.xpose.msra.mxu0 0
    %2468 = vmatprep.subr.bf16.mxu0 0
    %2469 = vmatpush1.bf16.xpose.msra.mxu0 0
    %2470 = vmatprep.subr.bf16.mxu0 0
    %2471 = vmatpush1.bf16.xpose.msra.mxu0 0
    %2472 = vmatprep.subr.bf16.mxu0 0
    %2473 = vmatpush1.bf16.xpose.msra.mxu0 0
    %2474 = vmatprep.subr.bf16.mxu0 0
    %2475 = vmatpush1.bf16.xpose.msra.mxu0 0
    %2476 = vmatprep.mubr.bf16.mxu0 0
    %2477 = vmatmul.mubr.bf16.gmra.mrb[0].mxu0 %v2439
    %v2478 = vpop.f32.mrb[0].mxu0
    %v2479 = vadd.f32 0.0, %v2478
    %v2480 = vpop.f32.mrb[0].mxu0
    %v2481 = vpop.f32.mrb[0].mxu0
    %v2482 = vadd.f32 0.0, %v2481
    %v2483 = vpop.f32.mrb[0].mxu0
    %2484 = vdwg.mxu0
    %v2485 = vmul.f32 %v2479, 0.17677669
    %v2486 = vmul.f32 %v2482, 0.17677669
    %v2487 = vadd.f32 %v2485, %v425
    %v2488 = vadd.f32 %v2486, %v425
    %v2489 = vsel %vm428, %v2487, -inf
    %2490 = vmax.xlane.f32.xlu0 %v2489
    %v2491 = vpop.xlane.xlu0 %2490
    %v2492 = vsel %vm428, %v2488, -inf
    %2493 = vmax.xlane.f32.xlu0 %v2492
    %v2494 = vpop.xlane.xlu0 %2493
    %v2495 = vsub.f32 %v2487, %v2491
    %v2496 = vsub.f32 %v2488, %v2494
    %v2497 = vmul.f32 %v2495, 1.442695
    %v2498 = vpow.pop %v2497
    %v2499 = vmul.f32 %v2496, 1.442695
    %v2500 = vpow.pop %v2499
    %v2501 = vsel %vm428, %v2498, 0.0
    %2502 = vadd.xlane.f32.xlu0 %v2501
    %v2503 = vpop.xlane.xlu0 %2502
    %v2504 = vsel %vm428, %v2500, 0.0
    %2505 = vadd.xlane.f32.xlu0 %v2504
    %v2506 = vpop.xlane.xlu0 %2505
    %v2507 = vrcp.pop %v2503
    %v2508 = vmul.f32 %v2498, %v2507
    %v2509 = vrcp.pop %v2506
    %v2510 = vmul.f32 %v2500, %v2509
    %v2511 = vpack.c.bf16 %v2510, %v2508
    %v2512 = vpack.c.bf16 %v2425, %v2422
    %v2514 = vsel %vm428, %v2511, 0
    %2516 = vmatprep.subr.bf16.mxu0 0
    %2517 = vmatpush1.bf16.msra.mxu0 %v2512
    %2518 = vmatprep.subr.bf16.mxu0 0
    %2519 = vmatpush1.bf16.msra.mxu0 0
    %2520 = vmatprep.subr.bf16.mxu0 0
    %2521 = vmatpush1.bf16.msra.mxu0 0
    %2522 = vmatprep.subr.bf16.mxu0 0
    %2523 = vmatpush1.bf16.msra.mxu0 0
    %2524 = vmatprep.subr.bf16.mxu0 0
    %2525 = vmatpush1.bf16.msra.mxu0 0
    %2526 = vmatprep.subr.bf16.mxu0 0
    %2527 = vmatpush1.bf16.msra.mxu0 0
    %2528 = vmatprep.subr.bf16.mxu0 0
    %2529 = vmatpush1.bf16.msra.mxu0 0
    %2530 = vmatprep.subr.bf16.mxu0 0
    %2531 = vmatpush1.bf16.msra.mxu0 0
    %2532 = vmatprep.subr.bf16.mxu0 0
    %2533 = vmatpush1.bf16.msra.mxu0 0
    %2534 = vmatprep.subr.bf16.mxu0 0
    %2535 = vmatpush1.bf16.msra.mxu0 0
    %2536 = vmatprep.subr.bf16.mxu0 0
    %2537 = vmatpush1.bf16.msra.mxu0 0
    %2538 = vmatprep.subr.bf16.mxu0 0
    %2539 = vmatpush1.bf16.msra.mxu0 0
    %2540 = vmatprep.subr.bf16.mxu0 0
    %2541 = vmatpush1.bf16.msra.mxu0 0
    %2542 = vmatprep.subr.bf16.mxu0 0
    %2543 = vmatpush1.bf16.msra.mxu0 0
    %2544 = vmatprep.subr.bf16.mxu0 0
    %2545 = vmatpush1.bf16.msra.mxu0 0
    %2546 = vmatprep.subr.bf16.mxu0 0
    %2547 = vmatpush1.bf16.msra.mxu0 0
    %2548 = vmatprep.mubr.bf16.mxu0 0
    %2549 = vmatmul.mubr.bf16.gmra.mrb[0].mxu0 %v2514
    %v2550 = vpop.f32.mrb[0].mxu0
    %v2551 = vadd.f32 0.0, %v2550
    %v2552 = vpop.f32.mrb[0].mxu0
    %v2553 = vpop.f32.mrb[0].mxu0
    %v2554 = vadd.f32 0.0, %v2553
    %v2555 = vpop.f32.mrb[0].mxu0
    %2556 = vdwg.mxu0
    %2558 = vrot.lane.b32.xlu0 %v2436, 96
    %v2559 = vpop.permute.xlu0 %2558
    %2561 = vrot.lane.b32.xlu0 %v2437, 96
    %v2562 = vpop.permute.xlu0 %2561
    %v2564 = vsel %vm372, %v2559, 0
    %v2567 = vsel %vm372, %v2562, 0
    %2569 = vmatprep.subr.bf16.mxu0 0
    %2570 = vmatpush1.bf16.xpose.msra.mxu0 %v2567
    %2571 = vmatprep.subr.bf16.mxu0 0
    %2572 = vmatpush1.bf16.xpose.msra.mxu0 0
    %2573 = vmatprep.subr.bf16.mxu0 0
    %2574 = vmatpush1.bf16.xpose.msra.mxu0 0
    %2575 = vmatprep.subr.bf16.mxu0 0
    %2576 = vmatpush1.bf16.xpose.msra.mxu0 0
    %2577 = vmatprep.subr.bf16.mxu0 0
    %2578 = vmatpush1.bf16.xpose.msra.mxu0 0
    %2579 = vmatprep.subr.bf16.mxu0 0
    %2580 = vmatpush1.bf16.xpose.msra.mxu0 0
    %2581 = vmatprep.subr.bf16.mxu0 0
    %2582 = vmatpush1.bf16.xpose.msra.mxu0 0
    %2583 = vmatprep.subr.bf16.mxu0 0
    %2584 = vmatpush1.bf16.xpose.msra.mxu0 0
    %2585 = vmatprep.subr.bf16.mxu0 0
    %2586 = vmatpush1.bf16.xpose.msra.mxu0 0
    %2587 = vmatprep.subr.bf16.mxu0 0
    %2588 = vmatpush1.bf16.xpose.msra.mxu0 0
    %2589 = vmatprep.subr.bf16.mxu0 0
    %2590 = vmatpush1.bf16.xpose.msra.mxu0 0
    %2591 = vmatprep.subr.bf16.mxu0 0
    %2592 = vmatpush1.bf16.xpose.msra.mxu0 0
    %2593 = vmatprep.subr.bf16.mxu0 0
    %2594 = vmatpush1.bf16.xpose.msra.mxu0 0
    %2595 = vmatprep.subr.bf16.mxu0 0
    %2596 = vmatpush1.bf16.xpose.msra.mxu0 0
    %2597 = vmatprep.subr.bf16.mxu0 0
    %2598 = vmatpush1.bf16.xpose.msra.mxu0 0
    %2599 = vmatprep.subr.bf16.mxu0 0
    %2600 = vmatpush1.bf16.xpose.msra.mxu0 0
    %2601 = vmatprep.mubr.bf16.mxu0 0
    %2602 = vmatmul.mubr.bf16.gmra.mrb[0].mxu0 %v2564
    %v2603 = vpop.f32.mrb[0].mxu0
    %v2604 = vadd.f32 0.0, %v2603
    %v2605 = vpop.f32.mrb[0].mxu0
    %v2606 = vpop.f32.mrb[0].mxu0
    %v2607 = vadd.f32 0.0, %v2606
    %v2608 = vpop.f32.mrb[0].mxu0
    %2609 = vdwg.mxu0
    %v2610 = vmul.f32 %v2604, 0.17677669
    %v2611 = vmul.f32 %v2607, 0.17677669
    %v2612 = vadd.f32 %v2610, %v425
    %v2613 = vadd.f32 %v2611, %v425
    %v2614 = vsel %vm428, %v2612, -inf
    %2615 = vmax.xlane.f32.xlu0 %v2614
    %v2616 = vpop.xlane.xlu0 %2615
    %v2617 = vsel %vm428, %v2613, -inf
    %2618 = vmax.xlane.f32.xlu0 %v2617
    %v2619 = vpop.xlane.xlu0 %2618
    %v2620 = vsub.f32 %v2612, %v2616
    %v2621 = vsub.f32 %v2613, %v2619
    %v2622 = vmul.f32 %v2620, 1.442695
    %v2623 = vpow.pop %v2622
    %v2624 = vmul.f32 %v2621, 1.442695
    %v2625 = vpow.pop %v2624
    %v2626 = vsel %vm428, %v2623, 0.0
    %2627 = vadd.xlane.f32.xlu0 %v2626
    %v2628 = vpop.xlane.xlu0 %2627
    %v2629 = vsel %vm428, %v2625, 0.0
    %2630 = vadd.xlane.f32.xlu0 %v2629
    %v2631 = vpop.xlane.xlu0 %2630
    %v2632 = vrcp.pop %v2628
    %v2633 = vmul.f32 %v2623, %v2632
    %v2634 = vrcp.pop %v2631
    %v2635 = vmul.f32 %v2625, %v2634
    %v2636 = vpack.c.bf16 %v2635, %v2633
    %2638 = vrot.lane.b32.xlu0 %v2512, 96
    %v2639 = vpop.permute.xlu0 %2638
    %v2642 = vsel %vm428, %v2636, 0
    %2644 = vmatprep.subr.bf16.mxu0 0
    %2645 = vmatpush1.bf16.msra.mxu0 %v2639
    %2646 = vmatprep.subr.bf16.mxu0 0
    %2647 = vmatpush1.bf16.msra.mxu0 0
    %2648 = vmatprep.subr.bf16.mxu0 0
    %2649 = vmatpush1.bf16.msra.mxu0 0
    %2650 = vmatprep.subr.bf16.mxu0 0
    %2651 = vmatpush1.bf16.msra.mxu0 0
    %2652 = vmatprep.subr.bf16.mxu0 0
    %2653 = vmatpush1.bf16.msra.mxu0 0
    %2654 = vmatprep.subr.bf16.mxu0 0
    %2655 = vmatpush1.bf16.msra.mxu0 0
    %2656 = vmatprep.subr.bf16.mxu0 0
    %2657 = vmatpush1.bf16.msra.mxu0 0
    %2658 = vmatprep.subr.bf16.mxu0 0
    %2659 = vmatpush1.bf16.msra.mxu0 0
    %2660 = vmatprep.subr.bf16.mxu0 0
    %2661 = vmatpush1.bf16.msra.mxu0 0
    %2662 = vmatprep.subr.bf16.mxu0 0
    %2663 = vmatpush1.bf16.msra.mxu0 0
    %2664 = vmatprep.subr.bf16.mxu0 0
    %2665 = vmatpush1.bf16.msra.mxu0 0
    %2666 = vmatprep.subr.bf16.mxu0 0
    %2667 = vmatpush1.bf16.msra.mxu0 0
    %2668 = vmatprep.subr.bf16.mxu0 0
    %2669 = vmatpush1.bf16.msra.mxu0 0
    %2670 = vmatprep.subr.bf16.mxu0 0
    %2671 = vmatpush1.bf16.msra.mxu0 0
    %2672 = vmatprep.subr.bf16.mxu0 0
    %2673 = vmatpush1.bf16.msra.mxu0 0
    %2674 = vmatprep.subr.bf16.mxu0 0
    %2675 = vmatpush1.bf16.msra.mxu0 0
    %2676 = vmatprep.mubr.bf16.mxu0 0
    %2677 = vmatmul.mubr.bf16.gmra.mrb[0].mxu0 %v2642
    %v2678 = vpop.f32.mrb[0].mxu0
    %v2679 = vadd.f32 0.0, %v2678
    %v2680 = vpop.f32.mrb[0].mxu0
    %v2681 = vpop.f32.mrb[0].mxu0
    %v2682 = vadd.f32 0.0, %v2681
    %v2683 = vpop.f32.mrb[0].mxu0
    %2684 = vdwg.mxu0
    %2685 = vrot.lane.b32.xlu0 %v2436, 64
    %v2686 = vpop.permute.xlu0 %2685
    %2687 = vrot.lane.b32.xlu0 %v2437, 64
    %v2688 = vpop.permute.xlu0 %2687
    %v2690 = vsel %vm372, %v2686, 0
    %v2693 = vsel %vm372, %v2688, 0
    %2695 = vmatprep.subr.bf16.mxu0 0
    %2696 = vmatpush1.bf16.xpose.msra.mxu0 %v2693
    %2697 = vmatprep.subr.bf16.mxu0 0
    %2698 = vmatpush1.bf16.xpose.msra.mxu0 0
    %2699 = vmatprep.subr.bf16.mxu0 0
    %2700 = vmatpush1.bf16.xpose.msra.mxu0 0
    %2701 = vmatprep.subr.bf16.mxu0 0
    %2702 = vmatpush1.bf16.xpose.msra.mxu0 0
    %2703 = vmatprep.subr.bf16.mxu0 0
    %2704 = vmatpush1.bf16.xpose.msra.mxu0 0
    %2705 = vmatprep.subr.bf16.mxu0 0
    %2706 = vmatpush1.bf16.xpose.msra.mxu0 0
    %2707 = vmatprep.subr.bf16.mxu0 0
    %2708 = vmatpush1.bf16.xpose.msra.mxu0 0
    %2709 = vmatprep.subr.bf16.mxu0 0
    %2710 = vmatpush1.bf16.xpose.msra.mxu0 0
    %2711 = vmatprep.subr.bf16.mxu0 0
    %2712 = vmatpush1.bf16.xpose.msra.mxu0 0
    %2713 = vmatprep.subr.bf16.mxu0 0
    %2714 = vmatpush1.bf16.xpose.msra.mxu0 0
    %2715 = vmatprep.subr.bf16.mxu0 0
    %2716 = vmatpush1.bf16.xpose.msra.mxu0 0
    %2717 = vmatprep.subr.bf16.mxu0 0
    %2718 = vmatpush1.bf16.xpose.msra.mxu0 0
    %2719 = vmatprep.subr.bf16.mxu0 0
    %2720 = vmatpush1.bf16.xpose.msra.mxu0 0
    %2721 = vmatprep.subr.bf16.mxu0 0
    %2722 = vmatpush1.bf16.xpose.msra.mxu0 0
    %2723 = vmatprep.subr.bf16.mxu0 0
    %2724 = vmatpush1.bf16.xpose.msra.mxu0 0
    %2725 = vmatprep.subr.bf16.mxu0 0
    %2726 = vmatpush1.bf16.xpose.msra.mxu0 0
    %2727 = vmatprep.mubr.bf16.mxu0 0
    %2728 = vmatmul.mubr.bf16.gmra.mrb[0].mxu0 %v2690
    %v2729 = vpop.f32.mrb[0].mxu0
    %v2730 = vadd.f32 0.0, %v2729
    %v2731 = vpop.f32.mrb[0].mxu0
    %v2732 = vpop.f32.mrb[0].mxu0
    %v2733 = vadd.f32 0.0, %v2732
    %v2734 = vpop.f32.mrb[0].mxu0
    %2735 = vdwg.mxu0
    %v2736 = vmul.f32 %v2730, 0.17677669
    %v2737 = vmul.f32 %v2733, 0.17677669
    %v2738 = vadd.f32 %v2736, %v425
    %v2739 = vadd.f32 %v2737, %v425
    %v2740 = vsel %vm428, %v2738, -inf
    %2741 = vmax.xlane.f32.xlu0 %v2740
    %v2742 = vpop.xlane.xlu0 %2741
    %v2743 = vsel %vm428, %v2739, -inf
    %2744 = vmax.xlane.f32.xlu0 %v2743
    %v2745 = vpop.xlane.xlu0 %2744
    %v2746 = vsub.f32 %v2738, %v2742
    %v2747 = vsub.f32 %v2739, %v2745
    %v2748 = vmul.f32 %v2746, 1.442695
    %v2749 = vpow.pop %v2748
    %v2750 = vmul.f32 %v2747, 1.442695
    %v2751 = vpow.pop %v2750
    %v2752 = vsel %vm428, %v2749, 0.0
    %2753 = vadd.xlane.f32.xlu0 %v2752
    %v2754 = vpop.xlane.xlu0 %2753
    %v2755 = vsel %vm428, %v2751, 0.0
    %2756 = vadd.xlane.f32.xlu0 %v2755
    %v2757 = vpop.xlane.xlu0 %2756
    %v2758 = vrcp.pop %v2754
    %v2759 = vmul.f32 %v2749, %v2758
    %v2760 = vrcp.pop %v2757
    %v2761 = vmul.f32 %v2751, %v2760
    %v2762 = vpack.c.bf16 %v2761, %v2759
    %2763 = vrot.lane.b32.xlu0 %v2512, 64
    %v2764 = vpop.permute.xlu0 %2763
    %v2767 = vsel %vm428, %v2762, 0
    %2769 = vmatprep.subr.bf16.mxu0 0
    %2770 = vmatpush1.bf16.msra.mxu0 %v2764
    %2771 = vmatprep.subr.bf16.mxu0 0
    %2772 = vmatpush1.bf16.msra.mxu0 0
    %2773 = vmatprep.subr.bf16.mxu0 0
    %2774 = vmatpush1.bf16.msra.mxu0 0
    %2775 = vmatprep.subr.bf16.mxu0 0
    %2776 = vmatpush1.bf16.msra.mxu0 0
    %2777 = vmatprep.subr.bf16.mxu0 0
    %2778 = vmatpush1.bf16.msra.mxu0 0
    %2779 = vmatprep.subr.bf16.mxu0 0
    %2780 = vmatpush1.bf16.msra.mxu0 0
    %2781 = vmatprep.subr.bf16.mxu0 0
    %2782 = vmatpush1.bf16.msra.mxu0 0
    %2783 = vmatprep.subr.bf16.mxu0 0
    %2784 = vmatpush1.bf16.msra.mxu0 0
    %2785 = vmatprep.subr.bf16.mxu0 0
    %2786 = vmatpush1.bf16.msra.mxu0 0
    %2787 = vmatprep.subr.bf16.mxu0 0
    %2788 = vmatpush1.bf16.msra.mxu0 0
    %2789 = vmatprep.subr.bf16.mxu0 0
    %2790 = vmatpush1.bf16.msra.mxu0 0
    %2791 = vmatprep.subr.bf16.mxu0 0
    %2792 = vmatpush1.bf16.msra.mxu0 0
    %2793 = vmatprep.subr.bf16.mxu0 0
    %2794 = vmatpush1.bf16.msra.mxu0 0
    %2795 = vmatprep.subr.bf16.mxu0 0
    %2796 = vmatpush1.bf16.msra.mxu0 0
    %2797 = vmatprep.subr.bf16.mxu0 0
    %2798 = vmatpush1.bf16.msra.mxu0 0
    %2799 = vmatprep.subr.bf16.mxu0 0
    %2800 = vmatpush1.bf16.msra.mxu0 0
    %2801 = vmatprep.mubr.bf16.mxu0 0
    %2802 = vmatmul.mubr.bf16.gmra.mrb[0].mxu0 %v2767
    %v2803 = vpop.f32.mrb[0].mxu0
    %v2804 = vadd.f32 0.0, %v2803
    %v2805 = vpop.f32.mrb[0].mxu0
    %v2806 = vpop.f32.mrb[0].mxu0
    %v2807 = vadd.f32 0.0, %v2806
    %v2808 = vpop.f32.mrb[0].mxu0
    %2809 = vdwg.mxu0
    %2810 = vrot.lane.b32.xlu0 %v2436, 32
    %v2811 = vpop.permute.xlu0 %2810
    %2812 = vrot.lane.b32.xlu0 %v2437, 32
    %v2813 = vpop.permute.xlu0 %2812
    %v2815 = vsel %vm372, %v2811, 0
    %v2818 = vsel %vm372, %v2813, 0
    %2820 = vmatprep.subr.bf16.mxu0 0
    %2821 = vmatpush1.bf16.xpose.msra.mxu0 %v2818
    %2822 = vmatprep.subr.bf16.mxu0 0
    %2823 = vmatpush1.bf16.xpose.msra.mxu0 0
    %2824 = vmatprep.subr.bf16.mxu0 0
    %2825 = vmatpush1.bf16.xpose.msra.mxu0 0
    %2826 = vmatprep.subr.bf16.mxu0 0
    %2827 = vmatpush1.bf16.xpose.msra.mxu0 0
    %2828 = vmatprep.subr.bf16.mxu0 0
    %2829 = vmatpush1.bf16.xpose.msra.mxu0 0
    %2830 = vmatprep.subr.bf16.mxu0 0
    %2831 = vmatpush1.bf16.xpose.msra.mxu0 0
    %2832 = vmatprep.subr.bf16.mxu0 0
    %2833 = vmatpush1.bf16.xpose.msra.mxu0 0
    %2834 = vmatprep.subr.bf16.mxu0 0
    %2835 = vmatpush1.bf16.xpose.msra.mxu0 0
    %2836 = vmatprep.subr.bf16.mxu0 0
    %2837 = vmatpush1.bf16.xpose.msra.mxu0 0
    %2838 = vmatprep.subr.bf16.mxu0 0
    %2839 = vmatpush1.bf16.xpose.msra.mxu0 0
    %2840 = vmatprep.subr.bf16.mxu0 0
    %2841 = vmatpush1.bf16.xpose.msra.mxu0 0
    %2842 = vmatprep.subr.bf16.mxu0 0
    %2843 = vmatpush1.bf16.xpose.msra.mxu0 0
    %2844 = vmatprep.subr.bf16.mxu0 0
    %2845 = vmatpush1.bf16.xpose.msra.mxu0 0
    %2846 = vmatprep.subr.bf16.mxu0 0
    %2847 = vmatpush1.bf16.xpose.msra.mxu0 0
    %2848 = vmatprep.subr.bf16.mxu0 0
    %2849 = vmatpush1.bf16.xpose.msra.mxu0 0
    %2850 = vmatprep.subr.bf16.mxu0 0
    %2851 = vmatpush1.bf16.xpose.msra.mxu0 0
    %2852 = vmatprep.mubr.bf16.mxu0 0
    %2853 = vmatmul.mubr.bf16.gmra.mrb[0].mxu0 %v2815
    %v2854 = vpop.f32.mrb[0].mxu0
    %v2855 = vadd.f32 0.0, %v2854
    %v2856 = vpop.f32.mrb[0].mxu0
    %v2857 = vpop.f32.mrb[0].mxu0
    %v2858 = vadd.f32 0.0, %v2857
    %v2859 = vpop.f32.mrb[0].mxu0
    %2860 = vdwg.mxu0
    %v2861 = vmul.f32 %v2855, 0.17677669
    %v2862 = vmul.f32 %v2858, 0.17677669
    %v2863 = vadd.f32 %v2861, %v425
    %v2864 = vadd.f32 %v2862, %v425
    %v2865 = vsel %vm428, %v2863, -inf
    %2866 = vmax.xlane.f32.xlu0 %v2865
    %v2867 = vpop.xlane.xlu0 %2866
    %v2868 = vsel %vm428, %v2864, -inf
    %2869 = vmax.xlane.f32.xlu0 %v2868
    %v2870 = vpop.xlane.xlu0 %2869
    %v2871 = vsub.f32 %v2863, %v2867
    %v2872 = vsub.f32 %v2864, %v2870
    %v2873 = vmul.f32 %v2871, 1.442695
    %v2874 = vpow.pop %v2873
    %v2875 = vmul.f32 %v2872, 1.442695
    %v2876 = vpow.pop %v2875
    %v2877 = vsel %vm428, %v2874, 0.0
    %2878 = vadd.xlane.f32.xlu0 %v2877
    %v2879 = vpop.xlane.xlu0 %2878
    %v2880 = vsel %vm428, %v2876, 0.0
    %2881 = vadd.xlane.f32.xlu0 %v2880
    %v2882 = vpop.xlane.xlu0 %2881
    %v2883 = vrcp.pop %v2879
    %v2884 = vmul.f32 %v2874, %v2883
    %v2885 = vrcp.pop %v2882
    %v2886 = vmul.f32 %v2876, %v2885
    %v2887 = vpack.c.bf16 %v2886, %v2884
    %2888 = vrot.lane.b32.xlu0 %v2512, 32
    %v2889 = vpop.permute.xlu0 %2888
    %v2892 = vsel %vm428, %v2887, 0
    %2894 = vmatprep.subr.bf16.mxu0 0
    %2895 = vmatpush1.bf16.msra.mxu0 %v2889
    %2896 = vmatprep.subr.bf16.mxu0 0
    %2897 = vmatpush1.bf16.msra.mxu0 0
    %2898 = vmatprep.subr.bf16.mxu0 0
    %2899 = vmatpush1.bf16.msra.mxu0 0
    %2900 = vmatprep.subr.bf16.mxu0 0
    %2901 = vmatpush1.bf16.msra.mxu0 0
    %2902 = vmatprep.subr.bf16.mxu0 0
    %2903 = vmatpush1.bf16.msra.mxu0 0
    %2904 = vmatprep.subr.bf16.mxu0 0
    %2905 = vmatpush1.bf16.msra.mxu0 0
    %2906 = vmatprep.subr.bf16.mxu0 0
    %2907 = vmatpush1.bf16.msra.mxu0 0
    %2908 = vmatprep.subr.bf16.mxu0 0
    %2909 = vmatpush1.bf16.msra.mxu0 0
    %2910 = vmatprep.subr.bf16.mxu0 0
    %2911 = vmatpush1.bf16.msra.mxu0 0
    %2912 = vmatprep.subr.bf16.mxu0 0
    %2913 = vmatpush1.bf16.msra.mxu0 0
    %2914 = vmatprep.subr.bf16.mxu0 0
    %2915 = vmatpush1.bf16.msra.mxu0 0
    %2916 = vmatprep.subr.bf16.mxu0 0
    %2917 = vmatpush1.bf16.msra.mxu0 0
    %2918 = vmatprep.subr.bf16.mxu0 0
    %2919 = vmatpush1.bf16.msra.mxu0 0
    %2920 = vmatprep.subr.bf16.mxu0 0
    %2921 = vmatpush1.bf16.msra.mxu0 0
    %2922 = vmatprep.subr.bf16.mxu0 0
    %2923 = vmatpush1.bf16.msra.mxu0 0
    %2924 = vmatprep.subr.bf16.mxu0 0
    %2925 = vmatpush1.bf16.msra.mxu0 0
    %2926 = vmatprep.mubr.bf16.mxu0 0
    %2927 = vmatmul.mubr.bf16.gmra.mrb[0].mxu0 %v2892
    %v2928 = vpop.f32.mrb[0].mxu0
    %v2929 = vadd.f32 0.0, %v2928
    %v2930 = vpop.f32.mrb[0].mxu0
    %v2931 = vpop.f32.mrb[0].mxu0
    %v2932 = vadd.f32 0.0, %v2931
    %v2933 = vpop.f32.mrb[0].mxu0
    %2934 = vdwg.mxu0
    %2937 = vrot.lane.b32.xlu0 %v2679, 32
    %v2938 = vpop.permute.xlu0 %2937
    %2939 = vrot.lane.b32.xlu0 %v2682, 32
    %v2940 = vpop.permute.xlu0 %2939
    %2945 = vrot.lane.b32.xlu0 %v2804, 64
    %v2946 = vpop.permute.xlu0 %2945
    %2947 = vrot.lane.b32.xlu0 %v2807, 64
    %v2948 = vpop.permute.xlu0 %2947
    %2953 = vrot.lane.b32.xlu0 %v2929, 96
    %v2954 = vpop.permute.xlu0 %2953
    %2955 = vrot.lane.b32.xlu0 %v2932, 96
    %v2956 = vpop.permute.xlu0 %2955
    %v2959 = vsel %vm372, %v2551, %v2938
    %v2960 = vsel %vm372, %v2554, %v2940
    %v2961 = vsel %vm901, %v2959, %v2946
    %v2962 = vsel %vm901, %v2960, %v2948
    %v2963 = vsel %vm904, %v2961, %v2954
    %v2964 = vsel %vm904, %v2962, %v2956
    %v2965 = vpack.c.bf16 %v2383, %v2379
    %v2966 = vpack.c.bf16 %v2385, %v2381
    %v2968 = vsel %vm372, %v2965, 0
    %v2971 = vsel %vm372, %v2966, 0
    %2973 = vmatprep.subr.bf16.mxu0 0
    %2974 = vmatpush1.bf16.xpose.msra.mxu0 %v2971
    %2975 = vmatprep.subr.bf16.mxu0 0
    %2976 = vmatpush1.bf16.xpose.msra.mxu0 0
    %2977 = vmatprep.subr.bf16.mxu0 0
    %2978 = vmatpush1.bf16.xpose.msra.mxu0 0
    %2979 = vmatprep.subr.bf16.mxu0 0
    %2980 = vmatpush1.bf16.xpose.msra.mxu0 0
    %2981 = vmatprep.subr.bf16.mxu0 0
    %2982 = vmatpush1.bf16.xpose.msra.mxu0 0
    %2983 = vmatprep.subr.bf16.mxu0 0
    %2984 = vmatpush1.bf16.xpose.msra.mxu0 0
    %2985 = vmatprep.subr.bf16.mxu0 0
    %2986 = vmatpush1.bf16.xpose.msra.mxu0 0
    %2987 = vmatprep.subr.bf16.mxu0 0
    %2988 = vmatpush1.bf16.xpose.msra.mxu0 0
    %2989 = vmatprep.subr.bf16.mxu0 0
    %2990 = vmatpush1.bf16.xpose.msra.mxu0 0
    %2991 = vmatprep.subr.bf16.mxu0 0
    %2992 = vmatpush1.bf16.xpose.msra.mxu0 0
    %2993 = vmatprep.subr.bf16.mxu0 0
    %2994 = vmatpush1.bf16.xpose.msra.mxu0 0
    %2995 = vmatprep.subr.bf16.mxu0 0
    %2996 = vmatpush1.bf16.xpose.msra.mxu0 0
    %2997 = vmatprep.subr.bf16.mxu0 0
    %2998 = vmatpush1.bf16.xpose.msra.mxu0 0
    %2999 = vmatprep.subr.bf16.mxu0 0
    %3000 = vmatpush1.bf16.xpose.msra.mxu0 0
    %3001 = vmatprep.subr.bf16.mxu0 0
    %3002 = vmatpush1.bf16.xpose.msra.mxu0 0
    %3003 = vmatprep.subr.bf16.mxu0 0
    %3004 = vmatpush1.bf16.xpose.msra.mxu0 0
    %3005 = vmatprep.mubr.bf16.mxu0 0
    %3006 = vmatmul.mubr.bf16.gmra.mrb[0].mxu0 %v2968
    %v3007 = vpop.f32.mrb[0].mxu0
    %v3008 = vadd.f32 0.0, %v3007
    %v3009 = vpop.f32.mrb[0].mxu0
    %v3010 = vpop.f32.mrb[0].mxu0
    %v3011 = vadd.f32 0.0, %v3010
    %v3012 = vpop.f32.mrb[0].mxu0
    %3013 = vdwg.mxu0
    %v3014 = vmul.f32 %v3008, 0.17677669
    %v3015 = vmul.f32 %v3011, 0.17677669
    %v3016 = vadd.f32 %v3014, %v961
    %v3017 = vadd.f32 %v3015, %v961
    %v3018 = vsel %vm428, %v3016, -inf
    %3019 = vmax.xlane.f32.xlu0 %v3018
    %v3020 = vpop.xlane.xlu0 %3019
    %v3021 = vsel %vm428, %v3017, -inf
    %3022 = vmax.xlane.f32.xlu0 %v3021
    %v3023 = vpop.xlane.xlu0 %3022
    %v3024 = vsub.f32 %v3016, %v3020
    %v3025 = vsub.f32 %v3017, %v3023
    %v3026 = vmul.f32 %v3024, 1.442695
    %v3027 = vpow.pop %v3026
    %v3028 = vmul.f32 %v3025, 1.442695
    %v3029 = vpow.pop %v3028
    %v3030 = vsel %vm428, %v3027, 0.0
    %3031 = vadd.xlane.f32.xlu0 %v3030
    %v3032 = vpop.xlane.xlu0 %3031
    %v3033 = vsel %vm428, %v3029, 0.0
    %3034 = vadd.xlane.f32.xlu0 %v3033
    %v3035 = vpop.xlane.xlu0 %3034
    %v3036 = vrcp.pop %v3032
    %v3037 = vmul.f32 %v3027, %v3036
    %v3038 = vrcp.pop %v3035
    %v3039 = vmul.f32 %v3029, %v3038
    %v3040 = vpack.c.bf16 %v3039, %v3037
    %v3041 = vpack.c.bf16 %v2433, %v2430
    %v3043 = vsel %vm428, %v3040, 0
    %3045 = vmatprep.subr.bf16.mxu0 0
    %3046 = vmatpush1.bf16.msra.mxu0 %v3041
    %3047 = vmatprep.subr.bf16.mxu0 0
    %3048 = vmatpush1.bf16.msra.mxu0 0
    %3049 = vmatprep.subr.bf16.mxu0 0
    %3050 = vmatpush1.bf16.msra.mxu0 0
    %3051 = vmatprep.subr.bf16.mxu0 0
    %3052 = vmatpush1.bf16.msra.mxu0 0
    %3053 = vmatprep.subr.bf16.mxu0 0
    %3054 = vmatpush1.bf16.msra.mxu0 0
    %3055 = vmatprep.subr.bf16.mxu0 0
    %3056 = vmatpush1.bf16.msra.mxu0 0
    %3057 = vmatprep.subr.bf16.mxu0 0
    %3058 = vmatpush1.bf16.msra.mxu0 0
    %3059 = vmatprep.subr.bf16.mxu0 0
    %3060 = vmatpush1.bf16.msra.mxu0 0
    %3061 = vmatprep.subr.bf16.mxu0 0
    %3062 = vmatpush1.bf16.msra.mxu0 0
    %3063 = vmatprep.subr.bf16.mxu0 0
    %3064 = vmatpush1.bf16.msra.mxu0 0
    %3065 = vmatprep.subr.bf16.mxu0 0
    %3066 = vmatpush1.bf16.msra.mxu0 0
    %3067 = vmatprep.subr.bf16.mxu0 0
    %3068 = vmatpush1.bf16.msra.mxu0 0
    %3069 = vmatprep.subr.bf16.mxu0 0
    %3070 = vmatpush1.bf16.msra.mxu0 0
    %3071 = vmatprep.subr.bf16.mxu0 0
    %3072 = vmatpush1.bf16.msra.mxu0 0
    %3073 = vmatprep.subr.bf16.mxu0 0
    %3074 = vmatpush1.bf16.msra.mxu0 0
    %3075 = vmatprep.subr.bf16.mxu0 0
    %3076 = vmatpush1.bf16.msra.mxu0 0
    %3077 = vmatprep.mubr.bf16.mxu0 0
    %3078 = vmatmul.mubr.bf16.gmra.mrb[0].mxu0 %v3043
    %v3079 = vpop.f32.mrb[0].mxu0
    %v3080 = vadd.f32 0.0, %v3079
    %v3081 = vpop.f32.mrb[0].mxu0
    %v3082 = vpop.f32.mrb[0].mxu0
    %v3083 = vadd.f32 0.0, %v3082
    %v3084 = vpop.f32.mrb[0].mxu0
    %3085 = vdwg.mxu0
    %3087 = vrot.lane.b32.xlu0 %v2965, 96
    %v3088 = vpop.permute.xlu0 %3087
    %3090 = vrot.lane.b32.xlu0 %v2966, 96
    %v3091 = vpop.permute.xlu0 %3090
    %v3093 = vsel %vm372, %v3088, 0
    %v3096 = vsel %vm372, %v3091, 0
    %3098 = vmatprep.subr.bf16.mxu0 0
    %3099 = vmatpush1.bf16.xpose.msra.mxu0 %v3096
    %3100 = vmatprep.subr.bf16.mxu0 0
    %3101 = vmatpush1.bf16.xpose.msra.mxu0 0
    %3102 = vmatprep.subr.bf16.mxu0 0
    %3103 = vmatpush1.bf16.xpose.msra.mxu0 0
    %3104 = vmatprep.subr.bf16.mxu0 0
    %3105 = vmatpush1.bf16.xpose.msra.mxu0 0
    %3106 = vmatprep.subr.bf16.mxu0 0
    %3107 = vmatpush1.bf16.xpose.msra.mxu0 0
    %3108 = vmatprep.subr.bf16.mxu0 0
    %3109 = vmatpush1.bf16.xpose.msra.mxu0 0
    %3110 = vmatprep.subr.bf16.mxu0 0
    %3111 = vmatpush1.bf16.xpose.msra.mxu0 0
    %3112 = vmatprep.subr.bf16.mxu0 0
    %3113 = vmatpush1.bf16.xpose.msra.mxu0 0
    %3114 = vmatprep.subr.bf16.mxu0 0
    %3115 = vmatpush1.bf16.xpose.msra.mxu0 0
    %3116 = vmatprep.subr.bf16.mxu0 0
    %3117 = vmatpush1.bf16.xpose.msra.mxu0 0
    %3118 = vmatprep.subr.bf16.mxu0 0
    %3119 = vmatpush1.bf16.xpose.msra.mxu0 0
    %3120 = vmatprep.subr.bf16.mxu0 0
    %3121 = vmatpush1.bf16.xpose.msra.mxu0 0
    %3122 = vmatprep.subr.bf16.mxu0 0
    %3123 = vmatpush1.bf16.xpose.msra.mxu0 0
    %3124 = vmatprep.subr.bf16.mxu0 0
    %3125 = vmatpush1.bf16.xpose.msra.mxu0 0
    %3126 = vmatprep.subr.bf16.mxu0 0
    %3127 = vmatpush1.bf16.xpose.msra.mxu0 0
    %3128 = vmatprep.subr.bf16.mxu0 0
    %3129 = vmatpush1.bf16.xpose.msra.mxu0 0
    %3130 = vmatprep.mubr.bf16.mxu0 0
    %3131 = vmatmul.mubr.bf16.gmra.mrb[0].mxu0 %v3093
    %v3132 = vpop.f32.mrb[0].mxu0
    %v3133 = vadd.f32 0.0, %v3132
    %v3134 = vpop.f32.mrb[0].mxu0
    %v3135 = vpop.f32.mrb[0].mxu0
    %v3136 = vadd.f32 0.0, %v3135
    %v3137 = vpop.f32.mrb[0].mxu0
    %3138 = vdwg.mxu0
    %v3139 = vmul.f32 %v3133, 0.17677669
    %v3140 = vmul.f32 %v3136, 0.17677669
    %v3141 = vadd.f32 %v3139, %v961
    %v3142 = vadd.f32 %v3140, %v961
    %v3143 = vsel %vm428, %v3141, -inf
    %3144 = vmax.xlane.f32.xlu0 %v3143
    %v3145 = vpop.xlane.xlu0 %3144
    %v3146 = vsel %vm428, %v3142, -inf
    %3147 = vmax.xlane.f32.xlu0 %v3146
    %v3148 = vpop.xlane.xlu0 %3147
    %v3149 = vsub.f32 %v3141, %v3145
    %v3150 = vsub.f32 %v3142, %v3148
    %v3151 = vmul.f32 %v3149, 1.442695
    %v3152 = vpow.pop %v3151
    %v3153 = vmul.f32 %v3150, 1.442695
    %v3154 = vpow.pop %v3153
    %v3155 = vsel %vm428, %v3152, 0.0
    %3156 = vadd.xlane.f32.xlu0 %v3155
    %v3157 = vpop.xlane.xlu0 %3156
    %v3158 = vsel %vm428, %v3154, 0.0
    %3159 = vadd.xlane.f32.xlu0 %v3158
    %v3160 = vpop.xlane.xlu0 %3159
    %v3161 = vrcp.pop %v3157
    %v3162 = vmul.f32 %v3152, %v3161
    %v3163 = vrcp.pop %v3160
    %v3164 = vmul.f32 %v3154, %v3163
    %v3165 = vpack.c.bf16 %v3164, %v3162
    %3167 = vrot.lane.b32.xlu0 %v3041, 96
    %v3168 = vpop.permute.xlu0 %3167
    %v3171 = vsel %vm428, %v3165, 0
    %3173 = vmatprep.subr.bf16.mxu0 0
    %3174 = vmatpush1.bf16.msra.mxu0 %v3168
    %3175 = vmatprep.subr.bf16.mxu0 0
    %3176 = vmatpush1.bf16.msra.mxu0 0
    %3177 = vmatprep.subr.bf16.mxu0 0
    %3178 = vmatpush1.bf16.msra.mxu0 0
    %3179 = vmatprep.subr.bf16.mxu0 0
    %3180 = vmatpush1.bf16.msra.mxu0 0
    %3181 = vmatprep.subr.bf16.mxu0 0
    %3182 = vmatpush1.bf16.msra.mxu0 0
    %3183 = vmatprep.subr.bf16.mxu0 0
    %3184 = vmatpush1.bf16.msra.mxu0 0
    %3185 = vmatprep.subr.bf16.mxu0 0
    %3186 = vmatpush1.bf16.msra.mxu0 0
    %3187 = vmatprep.subr.bf16.mxu0 0
    %3188 = vmatpush1.bf16.msra.mxu0 0
    %3189 = vmatprep.subr.bf16.mxu0 0
    %3190 = vmatpush1.bf16.msra.mxu0 0
    %3191 = vmatprep.subr.bf16.mxu0 0
    %3192 = vmatpush1.bf16.msra.mxu0 0
    %3193 = vmatprep.subr.bf16.mxu0 0
    %3194 = vmatpush1.bf16.msra.mxu0 0
    %3195 = vmatprep.subr.bf16.mxu0 0
    %3196 = vmatpush1.bf16.msra.mxu0 0
    %3197 = vmatprep.subr.bf16.mxu0 0
    %3198 = vmatpush1.bf16.msra.mxu0 0
    %3199 = vmatprep.subr.bf16.mxu0 0
    %3200 = vmatpush1.bf16.msra.mxu0 0
    %3201 = vmatprep.subr.bf16.mxu0 0
    %3202 = vmatpush1.bf16.msra.mxu0 0
    %3203 = vmatprep.subr.bf16.mxu0 0
    %3204 = vmatpush1.bf16.msra.mxu0 0
    %3205 = vmatprep.mubr.bf16.mxu0 0
    %3206 = vmatmul.mubr.bf16.gmra.mrb[0].mxu0 %v3171
    %v3207 = vpop.f32.mrb[0].mxu0
    %v3208 = vadd.f32 0.0, %v3207
    %v3209 = vpop.f32.mrb[0].mxu0
    %v3210 = vpop.f32.mrb[0].mxu0
    %v3211 = vadd.f32 0.0, %v3210
    %v3212 = vpop.f32.mrb[0].mxu0
    %3213 = vdwg.mxu0
    %3214 = vrot.lane.b32.xlu0 %v2965, 64
    %v3215 = vpop.permute.xlu0 %3214
    %3216 = vrot.lane.b32.xlu0 %v2966, 64
    %v3217 = vpop.permute.xlu0 %3216
    %v3219 = vsel %vm372, %v3215, 0
    %v3222 = vsel %vm372, %v3217, 0
    %3224 = vmatprep.subr.bf16.mxu0 0
    %3225 = vmatpush1.bf16.xpose.msra.mxu0 %v3222
    %3226 = vmatprep.subr.bf16.mxu0 0
    %3227 = vmatpush1.bf16.xpose.msra.mxu0 0
    %3228 = vmatprep.subr.bf16.mxu0 0
    %3229 = vmatpush1.bf16.xpose.msra.mxu0 0
    %3230 = vmatprep.subr.bf16.mxu0 0
    %3231 = vmatpush1.bf16.xpose.msra.mxu0 0
    %3232 = vmatprep.subr.bf16.mxu0 0
    %3233 = vmatpush1.bf16.xpose.msra.mxu0 0
    %3234 = vmatprep.subr.bf16.mxu0 0
    %3235 = vmatpush1.bf16.xpose.msra.mxu0 0
    %3236 = vmatprep.subr.bf16.mxu0 0
    %3237 = vmatpush1.bf16.xpose.msra.mxu0 0
    %3238 = vmatprep.subr.bf16.mxu0 0
    %3239 = vmatpush1.bf16.xpose.msra.mxu0 0
    %3240 = vmatprep.subr.bf16.mxu0 0
    %3241 = vmatpush1.bf16.xpose.msra.mxu0 0
    %3242 = vmatprep.subr.bf16.mxu0 0
    %3243 = vmatpush1.bf16.xpose.msra.mxu0 0
    %3244 = vmatprep.subr.bf16.mxu0 0
    %3245 = vmatpush1.bf16.xpose.msra.mxu0 0
    %3246 = vmatprep.subr.bf16.mxu0 0
    %3247 = vmatpush1.bf16.xpose.msra.mxu0 0
    %3248 = vmatprep.subr.bf16.mxu0 0
    %3249 = vmatpush1.bf16.xpose.msra.mxu0 0
    %3250 = vmatprep.subr.bf16.mxu0 0
    %3251 = vmatpush1.bf16.xpose.msra.mxu0 0
    %3252 = vmatprep.subr.bf16.mxu0 0
    %3253 = vmatpush1.bf16.xpose.msra.mxu0 0
    %3254 = vmatprep.subr.bf16.mxu0 0
    %3255 = vmatpush1.bf16.xpose.msra.mxu0 0
    %3256 = vmatprep.mubr.bf16.mxu0 0
    %3257 = vmatmul.mubr.bf16.gmra.mrb[0].mxu0 %v3219
    %v3258 = vpop.f32.mrb[0].mxu0
    %v3259 = vadd.f32 0.0, %v3258
    %v3260 = vpop.f32.mrb[0].mxu0
    %v3261 = vpop.f32.mrb[0].mxu0
    %v3262 = vadd.f32 0.0, %v3261
    %v3263 = vpop.f32.mrb[0].mxu0
    %3264 = vdwg.mxu0
    %v3265 = vmul.f32 %v3259, 0.17677669
    %v3266 = vmul.f32 %v3262, 0.17677669
    %v3267 = vadd.f32 %v3265, %v961
    %v3268 = vadd.f32 %v3266, %v961
    %v3269 = vsel %vm428, %v3267, -inf
    %3270 = vmax.xlane.f32.xlu0 %v3269
    %v3271 = vpop.xlane.xlu0 %3270
    %v3272 = vsel %vm428, %v3268, -inf
    %3273 = vmax.xlane.f32.xlu0 %v3272
    %v3274 = vpop.xlane.xlu0 %3273
    %v3275 = vsub.f32 %v3267, %v3271
    %v3276 = vsub.f32 %v3268, %v3274
    %v3277 = vmul.f32 %v3275, 1.442695
    %v3278 = vpow.pop %v3277
    %v3279 = vmul.f32 %v3276, 1.442695
    %v3280 = vpow.pop %v3279
    %v3281 = vsel %vm428, %v3278, 0.0
    %3282 = vadd.xlane.f32.xlu0 %v3281
    %v3283 = vpop.xlane.xlu0 %3282
    %v3284 = vsel %vm428, %v3280, 0.0
    %3285 = vadd.xlane.f32.xlu0 %v3284
    %v3286 = vpop.xlane.xlu0 %3285
    %v3287 = vrcp.pop %v3283
    %v3288 = vmul.f32 %v3278, %v3287
    %v3289 = vrcp.pop %v3286
    %v3290 = vmul.f32 %v3280, %v3289
    %v3291 = vpack.c.bf16 %v3290, %v3288
    %3292 = vrot.lane.b32.xlu0 %v3041, 64
    %v3293 = vpop.permute.xlu0 %3292
    %v3296 = vsel %vm428, %v3291, 0
    %3298 = vmatprep.subr.bf16.mxu0 0
    %3299 = vmatpush1.bf16.msra.mxu0 %v3293
    %3300 = vmatprep.subr.bf16.mxu0 0
    %3301 = vmatpush1.bf16.msra.mxu0 0
    %3302 = vmatprep.subr.bf16.mxu0 0
    %3303 = vmatpush1.bf16.msra.mxu0 0
    %3304 = vmatprep.subr.bf16.mxu0 0
    %3305 = vmatpush1.bf16.msra.mxu0 0
    %3306 = vmatprep.subr.bf16.mxu0 0
    %3307 = vmatpush1.bf16.msra.mxu0 0
    %3308 = vmatprep.subr.bf16.mxu0 0
    %3309 = vmatpush1.bf16.msra.mxu0 0
    %3310 = vmatprep.subr.bf16.mxu0 0
    %3311 = vmatpush1.bf16.msra.mxu0 0
    %3312 = vmatprep.subr.bf16.mxu0 0
    %3313 = vmatpush1.bf16.msra.mxu0 0
    %3314 = vmatprep.subr.bf16.mxu0 0
    %3315 = vmatpush1.bf16.msra.mxu0 0
    %3316 = vmatprep.subr.bf16.mxu0 0
    %3317 = vmatpush1.bf16.msra.mxu0 0
    %3318 = vmatprep.subr.bf16.mxu0 0
    %3319 = vmatpush1.bf16.msra.mxu0 0
    %3320 = vmatprep.subr.bf16.mxu0 0
    %3321 = vmatpush1.bf16.msra.mxu0 0
    %3322 = vmatprep.subr.bf16.mxu0 0
    %3323 = vmatpush1.bf16.msra.mxu0 0
    %3324 = vmatprep.subr.bf16.mxu0 0
    %3325 = vmatpush1.bf16.msra.mxu0 0
    %3326 = vmatprep.subr.bf16.mxu0 0
    %3327 = vmatpush1.bf16.msra.mxu0 0
    %3328 = vmatprep.subr.bf16.mxu0 0
    %3329 = vmatpush1.bf16.msra.mxu0 0
    %3330 = vmatprep.mubr.bf16.mxu0 0
    %3331 = vmatmul.mubr.bf16.gmra.mrb[0].mxu0 %v3296
    %v3332 = vpop.f32.mrb[0].mxu0
    %v3333 = vadd.f32 0.0, %v3332
    %v3334 = vpop.f32.mrb[0].mxu0
    %v3335 = vpop.f32.mrb[0].mxu0
    %v3336 = vadd.f32 0.0, %v3335
    %v3337 = vpop.f32.mrb[0].mxu0
    %3338 = vdwg.mxu0
    %3339 = vrot.lane.b32.xlu0 %v2965, 32
    %v3340 = vpop.permute.xlu0 %3339
    %3341 = vrot.lane.b32.xlu0 %v2966, 32
    %v3342 = vpop.permute.xlu0 %3341
    %v3344 = vsel %vm372, %v3340, 0
    %v3347 = vsel %vm372, %v3342, 0
    %3349 = vmatprep.subr.bf16.mxu0 0
    %3350 = vmatpush1.bf16.xpose.msra.mxu0 %v3347
    %3351 = vmatprep.subr.bf16.mxu0 0
    %3352 = vmatpush1.bf16.xpose.msra.mxu0 0
    %3353 = vmatprep.subr.bf16.mxu0 0
    %3354 = vmatpush1.bf16.xpose.msra.mxu0 0
    %3355 = vmatprep.subr.bf16.mxu0 0
    %3356 = vmatpush1.bf16.xpose.msra.mxu0 0
    %3357 = vmatprep.subr.bf16.mxu0 0
    %3358 = vmatpush1.bf16.xpose.msra.mxu0 0
    %3359 = vmatprep.subr.bf16.mxu0 0
    %3360 = vmatpush1.bf16.xpose.msra.mxu0 0
    %3361 = vmatprep.subr.bf16.mxu0 0
    %3362 = vmatpush1.bf16.xpose.msra.mxu0 0
    %3363 = vmatprep.subr.bf16.mxu0 0
    %3364 = vmatpush1.bf16.xpose.msra.mxu0 0
    %3365 = vmatprep.subr.bf16.mxu0 0
    %3366 = vmatpush1.bf16.xpose.msra.mxu0 0
    %3367 = vmatprep.subr.bf16.mxu0 0
    %3368 = vmatpush1.bf16.xpose.msra.mxu0 0
    %3369 = vmatprep.subr.bf16.mxu0 0
    %3370 = vmatpush1.bf16.xpose.msra.mxu0 0
    %3371 = vmatprep.subr.bf16.mxu0 0
    %3372 = vmatpush1.bf16.xpose.msra.mxu0 0
    %3373 = vmatprep.subr.bf16.mxu0 0
    %3374 = vmatpush1.bf16.xpose.msra.mxu0 0
    %3375 = vmatprep.subr.bf16.mxu0 0
    %3376 = vmatpush1.bf16.xpose.msra.mxu0 0
    %3377 = vmatprep.subr.bf16.mxu0 0
    %3378 = vmatpush1.bf16.xpose.msra.mxu0 0
    %3379 = vmatprep.subr.bf16.mxu0 0
    %3380 = vmatpush1.bf16.xpose.msra.mxu0 0
    %3381 = vmatprep.mubr.bf16.mxu0 0
    %3382 = vmatmul.mubr.bf16.gmra.mrb[0].mxu0 %v3344
    %v3383 = vpop.f32.mrb[0].mxu0
    %v3384 = vadd.f32 0.0, %v3383
    %v3385 = vpop.f32.mrb[0].mxu0
    %v3386 = vpop.f32.mrb[0].mxu0
    %v3387 = vadd.f32 0.0, %v3386
    %v3388 = vpop.f32.mrb[0].mxu0
    %3389 = vdwg.mxu0
    %v3390 = vmul.f32 %v3384, 0.17677669
    %v3391 = vmul.f32 %v3387, 0.17677669
    %v3392 = vadd.f32 %v3390, %v961
    %v3393 = vadd.f32 %v3391, %v961
    %v3394 = vsel %vm428, %v3392, -inf
    %3395 = vmax.xlane.f32.xlu0 %v3394
    %v3396 = vpop.xlane.xlu0 %3395
    %v3397 = vsel %vm428, %v3393, -inf
    %3398 = vmax.xlane.f32.xlu0 %v3397
    %v3399 = vpop.xlane.xlu0 %3398
    %v3400 = vsub.f32 %v3392, %v3396
    %v3401 = vsub.f32 %v3393, %v3399
    %v3402 = vmul.f32 %v3400, 1.442695
    %v3403 = vpow.pop %v3402
    %v3404 = vmul.f32 %v3401, 1.442695
    %v3405 = vpow.pop %v3404
    %v3406 = vsel %vm428, %v3403, 0.0
    %3407 = vadd.xlane.f32.xlu0 %v3406
    %v3408 = vpop.xlane.xlu0 %3407
    %v3409 = vsel %vm428, %v3405, 0.0
    %3410 = vadd.xlane.f32.xlu0 %v3409
    %v3411 = vpop.xlane.xlu0 %3410
    %v3412 = vrcp.pop %v3408
    %v3413 = vmul.f32 %v3403, %v3412
    %v3414 = vrcp.pop %v3411
    %v3415 = vmul.f32 %v3405, %v3414
    %v3416 = vpack.c.bf16 %v3415, %v3413
    %3417 = vrot.lane.b32.xlu0 %v3041, 32
    %v3418 = vpop.permute.xlu0 %3417
    %v3421 = vsel %vm428, %v3416, 0
    %3423 = vmatprep.subr.bf16.mxu0 0
    %3424 = vmatpush1.bf16.msra.mxu0 %v3418
    %3425 = vmatprep.subr.bf16.mxu0 0
    %3426 = vmatpush1.bf16.msra.mxu0 0
    %3427 = vmatprep.subr.bf16.mxu0 0
    %3428 = vmatpush1.bf16.msra.mxu0 0
    %3429 = vmatprep.subr.bf16.mxu0 0
    %3430 = vmatpush1.bf16.msra.mxu0 0
    %3431 = vmatprep.subr.bf16.mxu0 0
    %3432 = vmatpush1.bf16.msra.mxu0 0
    %3433 = vmatprep.subr.bf16.mxu0 0
    %3434 = vmatpush1.bf16.msra.mxu0 0
    %3435 = vmatprep.subr.bf16.mxu0 0
    %3436 = vmatpush1.bf16.msra.mxu0 0
    %3437 = vmatprep.subr.bf16.mxu0 0
    %3438 = vmatpush1.bf16.msra.mxu0 0
    %3439 = vmatprep.subr.bf16.mxu0 0
    %3440 = vmatpush1.bf16.msra.mxu0 0
    %3441 = vmatprep.subr.bf16.mxu0 0
    %3442 = vmatpush1.bf16.msra.mxu0 0
    %3443 = vmatprep.subr.bf16.mxu0 0
    %3444 = vmatpush1.bf16.msra.mxu0 0
    %3445 = vmatprep.subr.bf16.mxu0 0
    %3446 = vmatpush1.bf16.msra.mxu0 0
    %3447 = vmatprep.subr.bf16.mxu0 0
    %3448 = vmatpush1.bf16.msra.mxu0 0
    %3449 = vmatprep.subr.bf16.mxu0 0
    %3450 = vmatpush1.bf16.msra.mxu0 0
    %3451 = vmatprep.subr.bf16.mxu0 0
    %3452 = vmatpush1.bf16.msra.mxu0 0
    %3453 = vmatprep.subr.bf16.mxu0 0
    %3454 = vmatpush1.bf16.msra.mxu0 0
    %3455 = vmatprep.mubr.bf16.mxu0 0
    %3456 = vmatmul.mubr.bf16.gmra.mrb[0].mxu0 %v3421
    %v3457 = vpop.f32.mrb[0].mxu0
    %v3458 = vadd.f32 0.0, %v3457
    %v3459 = vpop.f32.mrb[0].mxu0
    %v3460 = vpop.f32.mrb[0].mxu0
    %v3461 = vadd.f32 0.0, %v3460
    %v3462 = vpop.f32.mrb[0].mxu0
    %3463 = vdwg.mxu0
    %3466 = vrot.lane.b32.xlu0 %v3208, 32
    %v3467 = vpop.permute.xlu0 %3466
    %3468 = vrot.lane.b32.xlu0 %v3211, 32
    %v3469 = vpop.permute.xlu0 %3468
    %3474 = vrot.lane.b32.xlu0 %v3333, 64
    %v3475 = vpop.permute.xlu0 %3474
    %3476 = vrot.lane.b32.xlu0 %v3336, 64
    %v3477 = vpop.permute.xlu0 %3476
    %3482 = vrot.lane.b32.xlu0 %v3458, 96
    %v3483 = vpop.permute.xlu0 %3482
    %3484 = vrot.lane.b32.xlu0 %v3461, 96
    %v3485 = vpop.permute.xlu0 %3484
    %v3488 = vsel %vm372, %v3080, %v3467
    %v3489 = vsel %vm372, %v3083, %v3469
    %v3490 = vsel %vm901, %v3488, %v3475
    %v3491 = vsel %vm901, %v3489, %v3477
    %v3492 = vsel %vm904, %v3490, %v3483
    %v3493 = vsel %vm904, %v3491, %v3485
    %s3494 = scalar_lea.vmem %s8, 128
    %v3495 = vld [vmem:[%s3494] sm:$0xff]
    %v3496 = vld [vmem:[%s3494 + $0x8] sm:$0xff]
    %v3497 = vld [vmem:[%s3494 + $0x10] sm:$0xff]
    %v3498 = vld [vmem:[%s3494 + $0x18] sm:$0xff]
    %v3499 = vld [vmem:[%s3494 + $0x20] sm:$0xff]
    %v3500 = vld [vmem:[%s3494 + $0x28] sm:$0xff]
    %v3501 = vld [vmem:[%s3494 + $0x30] sm:$0xff]
    %v3502 = vld [vmem:[%s3494 + $0x38] sm:$0xff]
    %v3503 = vld [vmem:[%s3494 + $0x40] sm:$0xff]
    %v3504 = vld [vmem:[%s3494 + $0x48] sm:$0xff]
    %v3505 = vld [vmem:[%s3494 + $0x50] sm:$0xff]
    %v3506 = vld [vmem:[%s3494 + $0x58] sm:$0xff]
    %v3507 = vld [vmem:[%s3494 + $0x60] sm:$0xff]
    %v3508 = vld [vmem:[%s3494 + $0x68] sm:$0xff]
    %v3509 = vld [vmem:[%s3494 + $0x70] sm:$0xff]
    %v3510 = vld [vmem:[%s3494 + $0x78] sm:$0xff]
    %v3511 = vpack.c.bf16 %v2964, %v2963
    %v3512 = vpack.c.bf16 %v3493, %v3492
    %v3513 = vpack.c.bf16 %v3496, %v3495
    %v3514 = vpack.c.bf16 %v3498, %v3497
    %v3515 = vpack.c.bf16 %v3500, %v3499
    %v3516 = vpack.c.bf16 %v3502, %v3501
    %v3517 = vpack.c.bf16 %v3504, %v3503
    %v3518 = vpack.c.bf16 %v3506, %v3505
    %v3519 = vpack.c.bf16 %v3508, %v3507
    %v3520 = vpack.c.bf16 %v3510, %v3509
    %s3521 = scalar_lea.vmem %s9, 1
    %v3522 = vld [vmem:[%s3521] sm:$0x1]
    %v3524 = vlaneseq
    %v3525 = vshrl.u32 %v3524, 7
    %v3526 = vsub.s32 0, %v3525
    %v3527 = vrot.slane %v3522, %v3526
    %3529 = vmatprep.subr.bf16.mxu0 0
    %3530 = vmatpush1.bf16.msra.mxu0 %v3513
    %3531 = vmatprep.subr.bf16.mxu0 0
    %3532 = vmatpush1.bf16.msra.mxu0 %v3514
    %3533 = vmatprep.subr.bf16.mxu0 0
    %3534 = vmatpush1.bf16.msra.mxu0 %v3515
    %3535 = vmatprep.subr.bf16.mxu0 0
    %3536 = vmatpush1.bf16.msra.mxu0 %v3516
    %3537 = vmatprep.subr.bf16.mxu0 0
    %3538 = vmatpush1.bf16.msra.mxu0 %v3517
    %3539 = vmatprep.subr.bf16.mxu0 0
    %3540 = vmatpush1.bf16.msra.mxu0 %v3518
    %3541 = vmatprep.subr.bf16.mxu0 0
    %3542 = vmatpush1.bf16.msra.mxu0 %v3519
    %3543 = vmatprep.subr.bf16.mxu0 0
    %3544 = vmatpush1.bf16.msra.mxu0 %v3520
    %3545 = vmatprep.subr.bf16.mxu0 0
    %3546 = vmatpush1.bf16.msra.mxu0 0
    %3547 = vmatprep.subr.bf16.mxu0 0
    %3548 = vmatpush1.bf16.msra.mxu0 0
    %3549 = vmatprep.subr.bf16.mxu0 0
    %3550 = vmatpush1.bf16.msra.mxu0 0
    %3551 = vmatprep.subr.bf16.mxu0 0
    %3552 = vmatpush1.bf16.msra.mxu0 0
    %3553 = vmatprep.subr.bf16.mxu0 0
    %3554 = vmatpush1.bf16.msra.mxu0 0
    %3555 = vmatprep.subr.bf16.mxu0 0
    %3556 = vmatpush1.bf16.msra.mxu0 0
    %3557 = vmatprep.subr.bf16.mxu0 0
    %3558 = vmatpush1.bf16.msra.mxu0 0
    %3559 = vmatprep.subr.bf16.mxu0 0
    %3560 = vmatpush1.bf16.msra.mxu0 0
    %3561 = vmatprep.mubr.bf16.mxu0 0
    %3562 = vmatmul.mubr.bf16.gmra.mrb[0].mxu0 %v3511
    %v3563 = vpop.f32.mrb[0].mxu0
    %v3564 = vadd.f32 %v3527, %v3563
    %v3565 = vpop.f32.mrb[0].mxu0
    %v3566 = vpop.f32.mrb[0].mxu0
    %v3567 = vadd.f32 %v3527, %v3566
    %v3568 = vpop.f32.mrb[0].mxu0
    %3569 = vmatprep.mubr.bf16.mxu0 0
    %3570 = vmatmul.mubr.bf16.gmra.mrb[0].mxu0 %v3512
    %v3571 = vpop.f32.mrb[0].mxu0
    %v3572 = vadd.f32 %v3527, %v3571
    %v3573 = vpop.f32.mrb[0].mxu0
    %v3574 = vpop.f32.mrb[0].mxu0
    %v3575 = vadd.f32 %v3527, %v3574
    %v3576 = vpop.f32.mrb[0].mxu0
    %3577 = vdwg.mxu0
    %v3578 = vadd.f32 %v2237, %v3564
    %v3579 = vadd.f32 %v2238, %v3567
    %v3580 = vadd.f32 %v2239, %v3572
    %v3581 = vadd.f32 %v2240, %v3575
    %s3582 = scalar_lea.vmem %s10, 1
    %v3583 = vld [vmem:[%s3582] sm:$0x1]
    %s3584 = scalar_lea.vmem %s11, 1
    %v3585 = vld [vmem:[%s3584] sm:$0x1]
    %3586 = vadd.xlane.f32.xlu0 %v3578
    %v3587 = vpop.xlane.xlu0 %3586
    %3588 = vadd.xlane.f32.xlu0 %v3579
    %v3589 = vpop.xlane.xlu0 %3588
    %3590 = vadd.xlane.f32.xlu0 %v3580
    %v3591 = vpop.xlane.xlu0 %3590
    %3592 = vadd.xlane.f32.xlu0 %v3581
    %v3593 = vpop.xlane.xlu0 %3592
    %v3594 = vmul.f32 %v3587, %v119
    %v3595 = vmul.f32 %v3589, %v119
    %v3596 = vmul.f32 %v3591, %v119
    %v3597 = vmul.f32 %v3593, %v119
    %v3598 = vsub.f32 %v3578, %v3594
    %v3599 = vsub.f32 %v3579, %v3595
    %v3600 = vsub.f32 %v3580, %v3596
    %v3601 = vsub.f32 %v3581, %v3597
    %v3602 = vmul.f32 %v3598, %v3598
    %v3603 = vmul.f32 %v3599, %v3599
    %v3604 = vmul.f32 %v3600, %v3600
    %v3605 = vmul.f32 %v3601, %v3601
    %3606 = vadd.xlane.f32.xlu0 %v3602
    %v3607 = vpop.xlane.xlu0 %3606
    %3608 = vadd.xlane.f32.xlu0 %v3603
    %v3609 = vpop.xlane.xlu0 %3608
    %3610 = vadd.xlane.f32.xlu0 %v3604
    %v3611 = vpop.xlane.xlu0 %3610
    %3612 = vadd.xlane.f32.xlu0 %v3605
    %v3613 = vpop.xlane.xlu0 %3612
    %v3614 = vmul.f32 %v3607, %v119
    %v3615 = vmul.f32 %v3609, %v119
    %v3616 = vmul.f32 %v3611, %v119
    %v3617 = vmul.f32 %v3613, %v119
    %v3618 = vadd.f32 %v3614, 1e-12
    %v3619 = vadd.f32 %v3615, 1e-12
    %v3620 = vadd.f32 %v3616, 1e-12
    %v3621 = vadd.f32 %v3617, 1e-12
    %v3622 = vrsqrt.pop %v3618
    %v3623 = vrsqrt.pop %v3619
    %v3624 = vrsqrt.pop %v3620
    %v3625 = vrsqrt.pop %v3621
    %v3626 = vmul.f32 %v3598, %v3622
    %v3627 = vmul.f32 %v3599, %v3623
    %v3628 = vmul.f32 %v3600, %v3624
    %v3629 = vmul.f32 %v3601, %v3625
    %v3631 = vlaneseq
    %v3632 = vshrl.u32 %v3631, 7
    %v3633 = vsub.s32 0, %v3632
    %v3634 = vrot.slane %v3583, %v3633
    %v3636 = vmul.f32 %v3626, %v3634
    %v3637 = vmul.f32 %v3627, %v3634
    %v3638 = vmul.f32 %v3628, %v3634
    %v3639 = vmul.f32 %v3629, %v3634
    %v3641 = vlaneseq
    %v3642 = vshrl.u32 %v3641, 7
    %v3643 = vsub.s32 0, %v3642
    %v3644 = vrot.slane %v3585, %v3643
    %v3646 = vadd.f32 %v3636, %v3644
    %v3647 = vadd.f32 %v3637, %v3644
    %v3648 = vadd.f32 %v3638, %v3644
    %v3649 = vadd.f32 %v3639, %v3644
    %s3650 = scalar_lea.vmem [#allocation5], 512
    %v3651 = vld [vmem:[%s3650] sm:$0xff]
    %v3652 = vld [vmem:[%s3650 + $0x8] sm:$0xff]
    %v3653 = vld [vmem:[%s3650 + $0x10] sm:$0xff]
    %v3654 = vld [vmem:[%s3650 + $0x18] sm:$0xff]
    %v3655 = vld [vmem:[%s3650 + $0x20] sm:$0xff]
    %v3656 = vld [vmem:[%s3650 + $0x28] sm:$0xff]
    %v3657 = vld [vmem:[%s3650 + $0x30] sm:$0xff]
    %v3658 = vld [vmem:[%s3650 + $0x38] sm:$0xff]
    %v3659 = vld [vmem:[%s3650 + $0x40] sm:$0xff]
    %v3660 = vld [vmem:[%s3650 + $0x48] sm:$0xff]
    %v3661 = vld [vmem:[%s3650 + $0x50] sm:$0xff]
    %v3662 = vld [vmem:[%s3650 + $0x58] sm:$0xff]
    %v3663 = vld [vmem:[%s3650 + $0x60] sm:$0xff]
    %v3664 = vld [vmem:[%s3650 + $0x68] sm:$0xff]
    %v3665 = vld [vmem:[%s3650 + $0x70] sm:$0xff]
    %v3666 = vld [vmem:[%s3650 + $0x78] sm:$0xff]
    %v3667 = vld [vmem:[%s3650 + $0x80] sm:$0xff]
    %v3668 = vld [vmem:[%s3650 + $0x88] sm:$0xff]
    %v3669 = vld [vmem:[%s3650 + $0x90] sm:$0xff]
    %v3670 = vld [vmem:[%s3650 + $0x98] sm:$0xff]
    %v3671 = vld [vmem:[%s3650 + $0xa0] sm:$0xff]
    %v3672 = vld [vmem:[%s3650 + $0xa8] sm:$0xff]
    %v3673 = vld [vmem:[%s3650 + $0xb0] sm:$0xff]
    %v3674 = vld [vmem:[%s3650 + $0xb8] sm:$0xff]
    %v3675 = vld [vmem:[%s3650 + $0xc0] sm:$0xff]
    %v3676 = vld [vmem:[%s3650 + $0xc8] sm:$0xff]
    %v3677 = vld [vmem:[%s3650 + $0xd0] sm:$0xff]
    %v3678 = vld [vmem:[%s3650 + $0xd8] sm:$0xff]
    %v3679 = vld [vmem:[%s3650 + $0xe0] sm:$0xff]
    %v3680 = vld [vmem:[%s3650 + $0xe8] sm:$0xff]
    %v3681 = vld [vmem:[%s3650 + $0xf0] sm:$0xff]
    %v3682 = vld [vmem:[%s3650 + $0xf8] sm:$0xff]
    %v3683 = vld [vmem:[%s3650 + $0x100] sm:$0xff]
    %v3684 = vld [vmem:[%s3650 + $0x108] sm:$0xff]
    %v3685 = vld [vmem:[%s3650 + $0x110] sm:$0xff]
    %v3686 = vld [vmem:[%s3650 + $0x118] sm:$0xff]
    %v3687 = vld [vmem:[%s3650 + $0x120] sm:$0xff]
    %v3688 = vld [vmem:[%s3650 + $0x128] sm:$0xff]
    %v3689 = vld [vmem:[%s3650 + $0x130] sm:$0xff]
    %v3690 = vld [vmem:[%s3650 + $0x138] sm:$0xff]
    %v3691 = vld [vmem:[%s3650 + $0x140] sm:$0xff]
    %v3692 = vld [vmem:[%s3650 + $0x148] sm:$0xff]
    %v3693 = vld [vmem:[%s3650 + $0x150] sm:$0xff]
    %v3694 = vld [vmem:[%s3650 + $0x158] sm:$0xff]
    %v3695 = vld [vmem:[%s3650 + $0x160] sm:$0xff]
    %v3696 = vld [vmem:[%s3650 + $0x168] sm:$0xff]
    %v3697 = vld [vmem:[%s3650 + $0x170] sm:$0xff]
    %v3698 = vld [vmem:[%s3650 + $0x178] sm:$0xff]
    %v3699 = vld [vmem:[%s3650 + $0x180] sm:$0xff]
    %v3700 = vld [vmem:[%s3650 + $0x188] sm:$0xff]
    %v3701 = vld [vmem:[%s3650 + $0x190] sm:$0xff]
    %v3702 = vld [vmem:[%s3650 + $0x198] sm:$0xff]
    %v3703 = vld [vmem:[%s3650 + $0x1a0] sm:$0xff]
    %v3704 = vld [vmem:[%s3650 + $0x1a8] sm:$0xff]
    %v3705 = vld [vmem:[%s3650 + $0x1b0] sm:$0xff]
    %v3706 = vld [vmem:[%s3650 + $0x1b8] sm:$0xff]
    %v3707 = vld [vmem:[%s3650 + $0x1c0] sm:$0xff]
    %v3708 = vld [vmem:[%s3650 + $0x1c8] sm:$0xff]
    %v3709 = vld [vmem:[%s3650 + $0x1d0] sm:$0xff]
    %v3710 = vld [vmem:[%s3650 + $0x1d8] sm:$0xff]
    %v3711 = vld [vmem:[%s3650 + $0x1e0] sm:$0xff]
    %v3712 = vld [vmem:[%s3650 + $0x1e8] sm:$0xff]
    %v3713 = vld [vmem:[%s3650 + $0x1f0] sm:$0xff]
    %v3714 = vld [vmem:[%s3650 + $0x1f8] sm:$0xff]
    %v3715 = vpack.c.bf16 %v3647, %v3646
    %v3716 = vpack.c.bf16 %v3649, %v3648
    %v3717 = vpack.c.bf16 %v3655, %v3651
    %v3718 = vpack.c.bf16 %v3656, %v3652
    %v3719 = vpack.c.bf16 %v3657, %v3653
    %v3720 = vpack.c.bf16 %v3658, %v3654
    %v3721 = vpack.c.bf16 %v3663, %v3659
    %v3722 = vpack.c.bf16 %v3664, %v3660
    %v3723 = vpack.c.bf16 %v3665, %v3661
    %v3724 = vpack.c.bf16 %v3666, %v3662
    %v3725 = vpack.c.bf16 %v3671, %v3667
    %v3726 = vpack.c.bf16 %v3672, %v3668
    %v3727 = vpack.c.bf16 %v3673, %v3669
    %v3728 = vpack.c.bf16 %v3674, %v3670
    %v3729 = vpack.c.bf16 %v3679, %v3675
    %v3730 = vpack.c.bf16 %v3680, %v3676
    %v3731 = vpack.c.bf16 %v3681, %v3677
    %v3732 = vpack.c.bf16 %v3682, %v3678
    %v3733 = vpack.c.bf16 %v3687, %v3683
    %v3734 = vpack.c.bf16 %v3688, %v3684
    %v3735 = vpack.c.bf16 %v3689, %v3685
    %v3736 = vpack.c.bf16 %v3690, %v3686
    %v3737 = vpack.c.bf16 %v3695, %v3691
    %v3738 = vpack.c.bf16 %v3696, %v3692
    %v3739 = vpack.c.bf16 %v3697, %v3693
    %v3740 = vpack.c.bf16 %v3698, %v3694
    %v3741 = vpack.c.bf16 %v3703, %v3699
    %v3742 = vpack.c.bf16 %v3704, %v3700
    %v3743 = vpack.c.bf16 %v3705, %v3701
    %v3744 = vpack.c.bf16 %v3706, %v3702
    %v3745 = vpack.c.bf16 %v3711, %v3707
    %v3746 = vpack.c.bf16 %v3712, %v3708
    %v3747 = vpack.c.bf16 %v3713, %v3709
    %v3748 = vpack.c.bf16 %v3714, %v3710
    %s3749 = scalar_lea.vmem %s13, 4
    %v3750 = vld [vmem:[%s3749] sm:$0xf]
    %v3752 = vlaneseq
    %v3753 = vshrl.u32 %v3752, 7
    %v3754 = vsub.s32 0, %v3753
    %v3755 = vrot.slane %v3750, %v3754
    %v3756 = vlaneseq
    %v3757 = vshrl.u32 %v3756, 7
    %v3758 = vsub.s32 1, %v3757
    %v3759 = vrot.slane %v3750, %v3758
    %v3760 = vlaneseq
    %v3761 = vshrl.u32 %v3760, 7
    %v3762 = vsub.s32 2, %v3761
    %v3763 = vrot.slane %v3750, %v3762
    %v3764 = vlaneseq
    %v3765 = vshrl.u32 %v3764, 7
    %v3766 = vsub.s32 3, %v3765
    %v3767 = vrot.slane %v3750, %v3766
    %3772 = vmatprep.subr.bf16.mxu0 %v3718
    %3773 = vmatpush1.bf16.msra.mxu0 %v3717
    %3774 = vmatprep.subr.bf16.mxu0 %v3722
    %3775 = vmatpush1.bf16.msra.mxu0 %v3721
    %3776 = vmatprep.subr.bf16.mxu0 %v3726
    %3777 = vmatpush1.bf16.msra.mxu0 %v3725
    %3778 = vmatprep.subr.bf16.mxu0 %v3730
    %3779 = vmatpush1.bf16.msra.mxu0 %v3729
    %3780 = vmatprep.subr.bf16.mxu0 %v3734
    %3781 = vmatpush1.bf16.msra.mxu0 %v3733
    %3782 = vmatprep.subr.bf16.mxu0 %v3738
    %3783 = vmatpush1.bf16.msra.mxu0 %v3737
    %3784 = vmatprep.subr.bf16.mxu0 %v3742
    %3785 = vmatpush1.bf16.msra.mxu0 %v3741
    %3786 = vmatprep.subr.bf16.mxu0 %v3746
    %3787 = vmatpush1.bf16.msra.mxu0 %v3745
    %3788 = vmatprep.subr.bf16.mxu0 0
    %3789 = vmatpush1.bf16.msra.mxu0 0
    %3790 = vmatprep.subr.bf16.mxu0 0
    %3791 = vmatpush1.bf16.msra.mxu0 0
    %3792 = vmatprep.subr.bf16.mxu0 0
    %3793 = vmatpush1.bf16.msra.mxu0 0
    %3794 = vmatprep.subr.bf16.mxu0 0
    %3795 = vmatpush1.bf16.msra.mxu0 0
    %3796 = vmatprep.subr.bf16.mxu0 0
    %3797 = vmatpush1.bf16.msra.mxu0 0
    %3798 = vmatprep.subr.bf16.mxu0 0
    %3799 = vmatpush1.bf16.msra.mxu0 0
    %3800 = vmatprep.subr.bf16.mxu0 0
    %3801 = vmatpush1.bf16.msra.mxu0 0
    %3802 = vmatprep.subr.bf16.mxu0 0
    %3803 = vmatpush1.bf16.msra.mxu0 0
    %3804 = vmatprep.mubr.bf16.mxu0 0
    %3805 = vmatmul.mubr.bf16.gmra.mrb[0].mxu0 %v3715
    %v3806 = vpop.f32.mrb[0].mxu0
    %v3807 = vadd.f32 %v3755, %v3806
    %v3808 = vpop.f32.mrb[0].mxu0
    %v3809 = vadd.f32 %v3759, %v3808
    %v3810 = vpop.f32.mrb[0].mxu0
    %v3811 = vadd.f32 %v3755, %v3810
    %v3812 = vpop.f32.mrb[0].mxu0
    %v3813 = vadd.f32 %v3759, %v3812
    %3814 = vmatprep.mubr.bf16.mxu0 0
    %3815 = vmatmul.mubr.bf16.gmra.mrb[0].mxu0 %v3716
    %v3816 = vpop.f32.mrb[0].mxu0
    %v3817 = vadd.f32 %v3755, %v3816
    %v3818 = vpop.f32.mrb[0].mxu0
    %v3819 = vadd.f32 %v3759, %v3818
    %v3820 = vpop.f32.mrb[0].mxu0
    %v3821 = vadd.f32 %v3755, %v3820
    %v3822 = vpop.f32.mrb[0].mxu0
    %v3823 = vadd.f32 %v3759, %v3822
    %3824 = vdwg.mxu0
    %3825 = vmatprep.subr.bf16.mxu0 %v3720
    %3826 = vmatpush1.bf16.msra.mxu0 %v3719
    %3827 = vmatprep.subr.bf16.mxu0 %v3724
    %3828 = vmatpush1.bf16.msra.mxu0 %v3723
    %3829 = vmatprep.subr.bf16.mxu0 %v3728
    %3830 = vmatpush1.bf16.msra.mxu0 %v3727
    %3831 = vmatprep.subr.bf16.mxu0 %v3732
    %3832 = vmatpush1.bf16.msra.mxu0 %v3731
    %3833 = vmatprep.subr.bf16.mxu0 %v3736
    %3834 = vmatpush1.bf16.msra.mxu0 %v3735
    %3835 = vmatprep.subr.bf16.mxu0 %v3740
    %3836 = vmatpush1.bf16.msra.mxu0 %v3739
    %3837 = vmatprep.subr.bf16.mxu0 %v3744
    %3838 = vmatpush1.bf16.msra.mxu0 %v3743
    %3839 = vmatprep.subr.bf16.mxu0 %v3748
    %3840 = vmatpush1.bf16.msra.mxu0 %v3747
    %3841 = vmatprep.subr.bf16.mxu0 0
    %3842 = vmatpush1.bf16.msra.mxu0 0
    %3843 = vmatprep.subr.bf16.mxu0 0
    %3844 = vmatpush1.bf16.msra.mxu0 0
    %3845 = vmatprep.subr.bf16.mxu0 0
    %3846 = vmatpush1.bf16.msra.mxu0 0
    %3847 = vmatprep.subr.bf16.mxu0 0
    %3848 = vmatpush1.bf16.msra.mxu0 0
    %3849 = vmatprep.subr.bf16.mxu0 0
    %3850 = vmatpush1.bf16.msra.mxu0 0
    %3851 = vmatprep.subr.bf16.mxu0 0
    %3852 = vmatpush1.bf16.msra.mxu0 0
    %3853 = vmatprep.subr.bf16.mxu0 0
    %3854 = vmatpush1.bf16.msra.mxu0 0
    %3855 = vmatprep.subr.bf16.mxu0 0
    %3856 = vmatpush1.bf16.msra.mxu0 0
    %3857 = vmatprep.mubr.bf16.mxu0 0
    %3858 = vmatmul.mubr.bf16.gmra.mrb[0].mxu0 %v3715
    %v3859 = vpop.f32.mrb[0].mxu0
    %v3860 = vadd.f32 %v3763, %v3859
    %v3861 = vpop.f32.mrb[0].mxu0
    %v3862 = vadd.f32 %v3767, %v3861
    %v3863 = vpop.f32.mrb[0].mxu0
    %v3864 = vadd.f32 %v3763, %v3863
    %v3865 = vpop.f32.mrb[0].mxu0
    %v3866 = vadd.f32 %v3767, %v3865
    %3867 = vmatprep.mubr.bf16.mxu0 0
    %3868 = vmatmul.mubr.bf16.gmra.mrb[0].mxu0 %v3716
    %v3869 = vpop.f32.mrb[0].mxu0
    %v3870 = vadd.f32 %v3763, %v3869
    %v3871 = vpop.f32.mrb[0].mxu0
    %v3872 = vadd.f32 %v3767, %v3871
    %v3873 = vpop.f32.mrb[0].mxu0
    %v3874 = vadd.f32 %v3763, %v3873
    %v3875 = vpop.f32.mrb[0].mxu0
    %v3876 = vadd.f32 %v3767, %v3875
    %3877 = vdwg.mxu0
    %v3878 = vmul.f32 %v3807, 0.5
    %v3879 = vmul.f32 %v3809, 0.5
    %v3880 = vmul.f32 %v3860, 0.5
    %v3881 = vmul.f32 %v3862, 0.5
    %v3882 = vmul.f32 %v3811, 0.5
    %v3883 = vmul.f32 %v3813, 0.5
    %v3884 = vmul.f32 %v3864, 0.5
    %v3885 = vmul.f32 %v3866, 0.5
    %v3886 = vmul.f32 %v3817, 0.5
    %v3887 = vmul.f32 %v3819, 0.5
    %v3888 = vmul.f32 %v3870, 0.5
    %v3889 = vmul.f32 %v3872, 0.5
    %v3890 = vmul.f32 %v3821, 0.5
    %v3891 = vmul.f32 %v3823, 0.5
    %v3892 = vmul.f32 %v3874, 0.5
    %v3893 = vmul.f32 %v3876, 0.5
    %v3894 = vmul.f32 %v3807, 0.044715
    %v3895 = vmul.f32 %v3809, 0.044715
    %v3896 = vmul.f32 %v3860, 0.044715
    %v3897 = vmul.f32 %v3862, 0.044715
    %v3898 = vmul.f32 %v3811, 0.044715
    %v3899 = vmul.f32 %v3813, 0.044715
    %v3900 = vmul.f32 %v3864, 0.044715
    %v3901 = vmul.f32 %v3866, 0.044715
    %v3902 = vmul.f32 %v3817, 0.044715
    %v3903 = vmul.f32 %v3819, 0.044715
    %v3904 = vmul.f32 %v3870, 0.044715
    %v3905 = vmul.f32 %v3872, 0.044715
    %v3906 = vmul.f32 %v3821, 0.044715
    %v3907 = vmul.f32 %v3823, 0.044715
    %v3908 = vmul.f32 %v3874, 0.044715
    %v3909 = vmul.f32 %v3876, 0.044715
    %v3910 = vmul.f32 %v3894, %v3807
    %v3911 = vmul.f32 %v3895, %v3809
    %v3912 = vmul.f32 %v3896, %v3860
    %v3913 = vmul.f32 %v3897, %v3862
    %v3914 = vmul.f32 %v3898, %v3811
    %v3915 = vmul.f32 %v3899, %v3813
    %v3916 = vmul.f32 %v3900, %v3864
    %v3917 = vmul.f32 %v3901, %v3866
    %v3918 = vmul.f32 %v3902, %v3817
    %v3919 = vmul.f32 %v3903, %v3819
    %v3920 = vmul.f32 %v3904, %v3870
    %v3921 = vmul.f32 %v3905, %v3872
    %v3922 = vmul.f32 %v3906, %v3821
    %v3923 = vmul.f32 %v3907, %v3823
    %v3924 = vmul.f32 %v3908, %v3874
    %v3925 = vmul.f32 %v3909, %v3876
    %v3926 = vmul.f32 %v3910, %v3807
    %v3927 = vmul.f32 %v3911, %v3809
    %v3928 = vmul.f32 %v3912, %v3860
    %v3929 = vmul.f32 %v3913, %v3862
    %v3930 = vmul.f32 %v3914, %v3811
    %v3931 = vmul.f32 %v3915, %v3813
    %v3932 = vmul.f32 %v3916, %v3864
    %v3933 = vmul.f32 %v3917, %v3866
    %v3934 = vmul.f32 %v3918, %v3817
    %v3935 = vmul.f32 %v3919, %v3819
    %v3936 = vmul.f32 %v3920, %v3870
    %v3937 = vmul.f32 %v3921, %v3872
    %v3938 = vmul.f32 %v3922, %v3821
    %v3939 = vmul.f32 %v3923, %v3823
    %v3940 = vmul.f32 %v3924, %v3874
    %v3941 = vmul.f32 %v3925, %v3876
    %v3942 = vadd.f32 %v3807, %v3926
    %v3943 = vadd.f32 %v3809, %v3927
    %v3944 = vadd.f32 %v3860, %v3928
    %v3945 = vadd.f32 %v3862, %v3929
    %v3946 = vadd.f32 %v3811, %v3930
    %v3947 = vadd.f32 %v3813, %v3931
    %v3948 = vadd.f32 %v3864, %v3932
    %v3949 = vadd.f32 %v3866, %v3933
    %v3950 = vadd.f32 %v3817, %v3934
    %v3951 = vadd.f32 %v3819, %v3935
    %v3952 = vadd.f32 %v3870, %v3936
    %v3953 = vadd.f32 %v3872, %v3937
    %v3954 = vadd.f32 %v3821, %v3938
    %v3955 = vadd.f32 %v3823, %v3939
    %v3956 = vadd.f32 %v3874, %v3940
    %v3957 = vadd.f32 %v3876, %v3941
    %v3958 = vmul.f32 %v3942, 0.7978846
    %v3959 = vmul.f32 %v3943, 0.7978846
    %v3960 = vmul.f32 %v3944, 0.7978846
    %v3961 = vmul.f32 %v3945, 0.7978846
    %v3962 = vmul.f32 %v3946, 0.7978846
    %v3963 = vmul.f32 %v3947, 0.7978846
    %v3964 = vmul.f32 %v3948, 0.7978846
    %v3965 = vmul.f32 %v3949, 0.7978846
    %v3966 = vmul.f32 %v3950, 0.7978846
    %v3967 = vmul.f32 %v3951, 0.7978846
    %v3968 = vmul.f32 %v3952, 0.7978846
    %v3969 = vmul.f32 %v3953, 0.7978846
    %v3970 = vmul.f32 %v3954, 0.7978846
    %v3971 = vmul.f32 %v3955, 0.7978846
    %v3972 = vmul.f32 %v3956, 0.7978846
    %v3973 = vmul.f32 %v3957, 0.7978846
    %v3974 = vtanh.pop %v3958
    %v3975 = vtanh.pop %v3959
    %v3976 = vtanh.pop %v3960
    %v3977 = vtanh.pop %v3961
    %v3978 = vtanh.pop %v3962
    %v3979 = vtanh.pop %v3963
    %v3980 = vtanh.pop %v3964
    %v3981 = vtanh.pop %v3965
    %v3982 = vtanh.pop %v3966
    %v3983 = vtanh.pop %v3967
    %v3984 = vtanh.pop %v3968
    %v3985 = vtanh.pop %v3969
    %v3986 = vtanh.pop %v3970
    %v3987 = vtanh.pop %v3971
    %v3988 = vtanh.pop %v3972
    %v3989 = vtanh.pop %v3973
    %v3990 = vadd.f32 %v3974, 1.0
    %v3991 = vadd.f32 %v3975, 1.0
    %v3992 = vadd.f32 %v3976, 1.0
    %v3993 = vadd.f32 %v3977, 1.0
    %v3994 = vadd.f32 %v3978, 1.0
    %v3995 = vadd.f32 %v3979, 1.0
    %v3996 = vadd.f32 %v3980, 1.0
    %v3997 = vadd.f32 %v3981, 1.0
    %v3998 = vadd.f32 %v3982, 1.0
    %v3999 = vadd.f32 %v3983, 1.0
    %v4000 = vadd.f32 %v3984, 1.0
    %v4001 = vadd.f32 %v3985, 1.0
    %v4002 = vadd.f32 %v3986, 1.0
    %v4003 = vadd.f32 %v3987, 1.0
    %v4004 = vadd.f32 %v3988, 1.0
    %v4005 = vadd.f32 %v3989, 1.0
    %v4006 = vmul.f32 %v3878, %v3990
    %v4007 = vmul.f32 %v3879, %v3991
    %v4008 = vmul.f32 %v3880, %v3992
    %v4009 = vmul.f32 %v3881, %v3993
    %v4010 = vmul.f32 %v3882, %v3994
    %v4011 = vmul.f32 %v3883, %v3995
    %v4012 = vmul.f32 %v3884, %v3996
    %v4013 = vmul.f32 %v3885, %v3997
    %v4014 = vmul.f32 %v3886, %v3998
    %v4015 = vmul.f32 %v3887, %v3999
    %v4016 = vmul.f32 %v3888, %v4000
    %v4017 = vmul.f32 %v3889, %v4001
    %v4018 = vmul.f32 %v3890, %v4002
    %v4019 = vmul.f32 %v3891, %v4003
    %v4020 = vmul.f32 %v3892, %v4004
    %v4021 = vmul.f32 %v3893, %v4005
    %s4022 = scalar_lea.vmem [#allocation7], 512
    %v4023 = vld [vmem:[%s4022] sm:$0xff]
    %v4024 = vld [vmem:[%s4022 + $0x8] sm:$0xff]
    %v4025 = vld [vmem:[%s4022 + $0x10] sm:$0xff]
    %v4026 = vld [vmem:[%s4022 + $0x18] sm:$0xff]
    %v4027 = vld [vmem:[%s4022 + $0x20] sm:$0xff]
    %v4028 = vld [vmem:[%s4022 + $0x28] sm:$0xff]
    %v4029 = vld [vmem:[%s4022 + $0x30] sm:$0xff]
    %v4030 = vld [vmem:[%s4022 + $0x38] sm:$0xff]
    %v4031 = vld [vmem:[%s4022 + $0x40] sm:$0xff]
    %v4032 = vld [vmem:[%s4022 + $0x48] sm:$0xff]
    %v4033 = vld [vmem:[%s4022 + $0x50] sm:$0xff]
    %v4034 = vld [vmem:[%s4022 + $0x58] sm:$0xff]
    %v4035 = vld [vmem:[%s4022 + $0x60] sm:$0xff]
    %v4036 = vld [vmem:[%s4022 + $0x68] sm:$0xff]
    %v4037 = vld [vmem:[%s4022 + $0x70] sm:$0xff]
    %v4038 = vld [vmem:[%s4022 + $0x78] sm:$0xff]
    %v4039 = vld [vmem:[%s4022 + $0x80] sm:$0xff]
    %v4040 = vld [vmem:[%s4022 + $0x88] sm:$0xff]
    %v4041 = vld [vmem:[%s4022 + $0x90] sm:$0xff]
    %v4042 = vld [vmem:[%s4022 + $0x98] sm:$0xff]
    %v4043 = vld [vmem:[%s4022 + $0xa0] sm:$0xff]
    %v4044 = vld [vmem:[%s4022 + $0xa8] sm:$0xff]
    %v4045 = vld [vmem:[%s4022 + $0xb0] sm:$0xff]
    %v4046 = vld [vmem:[%s4022 + $0xb8] sm:$0xff]
    %v4047 = vld [vmem:[%s4022 + $0xc0] sm:$0xff]
    %v4048 = vld [vmem:[%s4022 + $0xc8] sm:$0xff]
    %v4049 = vld [vmem:[%s4022 + $0xd0] sm:$0xff]
    %v4050 = vld [vmem:[%s4022 + $0xd8] sm:$0xff]
    %v4051 = vld [vmem:[%s4022 + $0xe0] sm:$0xff]
    %v4052 = vld [vmem:[%s4022 + $0xe8] sm:$0xff]
    %v4053 = vld [vmem:[%s4022 + $0xf0] sm:$0xff]
    %v4054 = vld [vmem:[%s4022 + $0xf8] sm:$0xff]
    %v4055 = vld [vmem:[%s4022 + $0x100] sm:$0xff]
    %v4056 = vld [vmem:[%s4022 + $0x108] sm:$0xff]
    %v4057 = vld [vmem:[%s4022 + $0x110] sm:$0xff]
    %v4058 = vld [vmem:[%s4022 + $0x118] sm:$0xff]
    %v4059 = vld [vmem:[%s4022 + $0x120] sm:$0xff]
    %v4060 = vld [vmem:[%s4022 + $0x128] sm:$0xff]
    %v4061 = vld [vmem:[%s4022 + $0x130] sm:$0xff]
    %v4062 = vld [vmem:[%s4022 + $0x138] sm:$0xff]
    %v4063 = vld [vmem:[%s4022 + $0x140] sm:$0xff]
    %v4064 = vld [vmem:[%s4022 + $0x148] sm:$0xff]
    %v4065 = vld [vmem:[%s4022 + $0x150] sm:$0xff]
    %v4066 = vld [vmem:[%s4022 + $0x158] sm:$0xff]
    %v4067 = vld [vmem:[%s4022 + $0x160] sm:$0xff]
    %v4068 = vld [vmem:[%s4022 + $0x168] sm:$0xff]
    %v4069 = vld [vmem:[%s4022 + $0x170] sm:$0xff]
    %v4070 = vld [vmem:[%s4022 + $0x178] sm:$0xff]
    %v4071 = vld [vmem:[%s4022 + $0x180] sm:$0xff]
    %v4072 = vld [vmem:[%s4022 + $0x188] sm:$0xff]
    %v4073 = vld [vmem:[%s4022 + $0x190] sm:$0xff]
    %v4074 = vld [vmem:[%s4022 + $0x198] sm:$0xff]
    %v4075 = vld [vmem:[%s4022 + $0x1a0] sm:$0xff]
    %v4076 = vld [vmem:[%s4022 + $0x1a8] sm:$0xff]
    %v4077 = vld [vmem:[%s4022 + $0x1b0] sm:$0xff]
    %v4078 = vld [vmem:[%s4022 + $0x1b8] sm:$0xff]
    %v4079 = vld [vmem:[%s4022 + $0x1c0] sm:$0xff]
    %v4080 = vld [vmem:[%s4022 + $0x1c8] sm:$0xff]
    %v4081 = vld [vmem:[%s4022 + $0x1d0] sm:$0xff]
    %v4082 = vld [vmem:[%s4022 + $0x1d8] sm:$0xff]
    %v4083 = vld [vmem:[%s4022 + $0x1e0] sm:$0xff]
    %v4084 = vld [vmem:[%s4022 + $0x1e8] sm:$0xff]
    %v4085 = vld [vmem:[%s4022 + $0x1f0] sm:$0xff]
    %v4086 = vld [vmem:[%s4022 + $0x1f8] sm:$0xff]
    %v4087 = vpack.c.bf16 %v4010, %v4006
    %v4088 = vpack.c.bf16 %v4011, %v4007
    %v4089 = vpack.c.bf16 %v4012, %v4008
    %v4090 = vpack.c.bf16 %v4013, %v4009
    %v4091 = vpack.c.bf16 %v4018, %v4014
    %v4092 = vpack.c.bf16 %v4019, %v4015
    %v4093 = vpack.c.bf16 %v4020, %v4016
    %v4094 = vpack.c.bf16 %v4021, %v4017
    %v4095 = vpack.c.bf16 %v4024, %v4023
    %v4096 = vpack.c.bf16 %v4026, %v4025
    %v4097 = vpack.c.bf16 %v4028, %v4027
    %v4098 = vpack.c.bf16 %v4030, %v4029
    %v4099 = vpack.c.bf16 %v4032, %v4031
    %v4100 = vpack.c.bf16 %v4034, %v4033
    %v4101 = vpack.c.bf16 %v4036, %v4035
    %v4102 = vpack.c.bf16 %v4038, %v4037
    %v4103 = vpack.c.bf16 %v4040, %v4039
    %v4104 = vpack.c.bf16 %v4042, %v4041
    %v4105 = vpack.c.bf16 %v4044, %v4043
    %v4106 = vpack.c.bf16 %v4046, %v4045
    %v4107 = vpack.c.bf16 %v4048, %v4047
    %v4108 = vpack.c.bf16 %v4050, %v4049
    %v4109 = vpack.c.bf16 %v4052, %v4051
    %v4110 = vpack.c.bf16 %v4054, %v4053
    %v4111 = vpack.c.bf16 %v4056, %v4055
    %v4112 = vpack.c.bf16 %v4058, %v4057
    %v4113 = vpack.c.bf16 %v4060, %v4059
    %v4114 = vpack.c.bf16 %v4062, %v4061
    %v4115 = vpack.c.bf16 %v4064, %v4063
    %v4116 = vpack.c.bf16 %v4066, %v4065
    %v4117 = vpack.c.bf16 %v4068, %v4067
    %v4118 = vpack.c.bf16 %v4070, %v4069
    %v4119 = vpack.c.bf16 %v4072, %v4071
    %v4120 = vpack.c.bf16 %v4074, %v4073
    %v4121 = vpack.c.bf16 %v4076, %v4075
    %v4122 = vpack.c.bf16 %v4078, %v4077
    %v4123 = vpack.c.bf16 %v4080, %v4079
    %v4124 = vpack.c.bf16 %v4082, %v4081
    %v4125 = vpack.c.bf16 %v4084, %v4083
    %v4126 = vpack.c.bf16 %v4086, %v4085
    %s4127 = scalar_lea.vmem %s15, 1
    %v4128 = vld [vmem:[%s4127] sm:$0x1]
    %v4130 = vlaneseq
    %v4131 = vshrl.u32 %v4130, 7
    %v4132 = vsub.s32 0, %v4131
    %v4133 = vrot.slane %v4128, %v4132
    %4135 = vmatprep.subr.bf16.mxu0 0
    %4136 = vmatpush1.bf16.msra.mxu0 %v4095
    %4137 = vmatprep.subr.bf16.mxu0 0
    %4138 = vmatpush1.bf16.msra.mxu0 %v4096
    %4139 = vmatprep.subr.bf16.mxu0 0
    %4140 = vmatpush1.bf16.msra.mxu0 %v4097
    %4141 = vmatprep.subr.bf16.mxu0 0
    %4142 = vmatpush1.bf16.msra.mxu0 %v4098
    %4143 = vmatprep.subr.bf16.mxu0 0
    %4144 = vmatpush1.bf16.msra.mxu0 %v4099
    %4145 = vmatprep.subr.bf16.mxu0 0
    %4146 = vmatpush1.bf16.msra.mxu0 %v4100
    %4147 = vmatprep.subr.bf16.mxu0 0
    %4148 = vmatpush1.bf16.msra.mxu0 %v4101
    %4149 = vmatprep.subr.bf16.mxu0 0
    %4150 = vmatpush1.bf16.msra.mxu0 %v4102
    %4151 = vmatprep.subr.bf16.mxu0 0
    %4152 = vmatpush1.bf16.msra.mxu0 %v4103
    %4153 = vmatprep.subr.bf16.mxu0 0
    %4154 = vmatpush1.bf16.msra.mxu0 %v4104
    %4155 = vmatprep.subr.bf16.mxu0 0
    %4156 = vmatpush1.bf16.msra.mxu0 %v4105
    %4157 = vmatprep.subr.bf16.mxu0 0
    %4158 = vmatpush1.bf16.msra.mxu0 %v4106
    %4159 = vmatprep.subr.bf16.mxu0 0
    %4160 = vmatpush1.bf16.msra.mxu0 %v4107
    %4161 = vmatprep.subr.bf16.mxu0 0
    %4162 = vmatpush1.bf16.msra.mxu0 %v4108
    %4163 = vmatprep.subr.bf16.mxu0 0
    %4164 = vmatpush1.bf16.msra.mxu0 %v4109
    %4165 = vmatprep.subr.bf16.mxu0 0
    %4166 = vmatpush1.bf16.msra.mxu0 %v4110
    %4167 = vmatprep.mubr.bf16.mxu0 %v4088
    %4168 = vmatmul.mubr.bf16.gmra.mrb[0].mxu0 %v4087
    %v4169 = vpop.f32.mrb[0].mxu0
    %v4170 = vadd.f32 %v4133, %v4169
    %v4171 = vpop.f32.mrb[0].mxu0
    %v4172 = vpop.f32.mrb[0].mxu0
    %v4173 = vadd.f32 %v4133, %v4172
    %v4174 = vpop.f32.mrb[0].mxu0
    %4175 = vmatprep.mubr.bf16.mxu0 %v4092
    %4176 = vmatmul.mubr.bf16.gmra.mrb[0].mxu0 %v4091
    %v4177 = vpop.f32.mrb[0].mxu0
    %v4178 = vadd.f32 %v4133, %v4177
    %v4179 = vpop.f32.mrb[0].mxu0
    %v4180 = vpop.f32.mrb[0].mxu0
    %v4181 = vadd.f32 %v4133, %v4180
    %v4182 = vpop.f32.mrb[0].mxu0
    %4183 = vdwg.mxu0
    %4184 = vmatprep.subr.bf16.mxu0 0
    %4185 = vmatpush1.bf16.msra.mxu0 %v4111
    %4186 = vmatprep.subr.bf16.mxu0 0
    %4187 = vmatpush1.bf16.msra.mxu0 %v4112
    %4188 = vmatprep.subr.bf16.mxu0 0
    %4189 = vmatpush1.bf16.msra.mxu0 %v4113
    %4190 = vmatprep.subr.bf16.mxu0 0
    %4191 = vmatpush1.bf16.msra.mxu0 %v4114
    %4192 = vmatprep.subr.bf16.mxu0 0
    %4193 = vmatpush1.bf16.msra.mxu0 %v4115
    %4194 = vmatprep.subr.bf16.mxu0 0
    %4195 = vmatpush1.bf16.msra.mxu0 %v4116
    %4196 = vmatprep.subr.bf16.mxu0 0
    %4197 = vmatpush1.bf16.msra.mxu0 %v4117
    %4198 = vmatprep.subr.bf16.mxu0 0
    %4199 = vmatpush1.bf16.msra.mxu0 %v4118
    %4200 = vmatprep.subr.bf16.mxu0 0
    %4201 = vmatpush1.bf16.msra.mxu0 %v4119
    %4202 = vmatprep.subr.bf16.mxu0 0
    %4203 = vmatpush1.bf16.msra.mxu0 %v4120
    %4204 = vmatprep.subr.bf16.mxu0 0
    %4205 = vmatpush1.bf16.msra.mxu0 %v4121
    %4206 = vmatprep.subr.bf16.mxu0 0
    %4207 = vmatpush1.bf16.msra.mxu0 %v4122
    %4208 = vmatprep.subr.bf16.mxu0 0
    %4209 = vmatpush1.bf16.msra.mxu0 %v4123
    %4210 = vmatprep.subr.bf16.mxu0 0
    %4211 = vmatpush1.bf16.msra.mxu0 %v4124
    %4212 = vmatprep.subr.bf16.mxu0 0
    %4213 = vmatpush1.bf16.msra.mxu0 %v4125
    %4214 = vmatprep.subr.bf16.mxu0 0
    %4215 = vmatpush1.bf16.msra.mxu0 %v4126
    %4216 = vmatprep.mubr.bf16.mxu0 %v4090
    %4217 = vmatmul.mubr.bf16.gmra.mrb[0].mxu0 %v4089
    %v4218 = vpop.f32.mrb[0].mxu0
    %v4219 = vadd.f32 %v4170, %v4218
    %v4220 = vpop.f32.mrb[0].mxu0
    %v4221 = vpop.f32.mrb[0].mxu0
    %v4222 = vadd.f32 %v4173, %v4221
    %v4223 = vpop.f32.mrb[0].mxu0
    %4224 = vmatprep.mubr.bf16.mxu0 %v4094
    %4225 = vmatmul.mubr.bf16.gmra.mrb[0].mxu0 %v4093
    %v4226 = vpop.f32.mrb[0].mxu0
    %v4227 = vadd.f32 %v4178, %v4226
    %v4228 = vpop.f32.mrb[0].mxu0
    %v4229 = vpop.f32.mrb[0].mxu0
    %v4230 = vadd.f32 %v4181, %v4229
    %v4231 = vpop.f32.mrb[0].mxu0
    %4232 = vdwg.mxu0
    %v4233 = vadd.f32 %v3646, %v4219
    %v4234 = vadd.f32 %v3647, %v4222
    %v4235 = vadd.f32 %v3648, %v4227
    %v4236 = vadd.f32 %v3649, %v4230
    %s4237 = scalar_lea.vmem %s16, 1
    %v4238 = vld [vmem:[%s4237] sm:$0x1]
    %s4239 = scalar_lea.vmem %s17, 1
    %v4240 = vld [vmem:[%s4239] sm:$0x1]
    %4241 = vadd.xlane.f32.xlu0 %v4233
    %v4242 = vpop.xlane.xlu0 %4241
    %4243 = vadd.xlane.f32.xlu0 %v4234
    %v4244 = vpop.xlane.xlu0 %4243
    %4245 = vadd.xlane.f32.xlu0 %v4235
    %v4246 = vpop.xlane.xlu0 %4245
    %4247 = vadd.xlane.f32.xlu0 %v4236
    %v4248 = vpop.xlane.xlu0 %4247
    %v4249 = vmul.f32 %v4242, %v119
    %v4250 = vmul.f32 %v4244, %v119
    %v4251 = vmul.f32 %v4246, %v119
    %v4252 = vmul.f32 %v4248, %v119
    %v4253 = vsub.f32 %v4233, %v4249
    %v4254 = vsub.f32 %v4234, %v4250
    %v4255 = vsub.f32 %v4235, %v4251
    %v4256 = vsub.f32 %v4236, %v4252
    %v4257 = vmul.f32 %v4253, %v4253
    %v4258 = vmul.f32 %v4254, %v4254
    %v4259 = vmul.f32 %v4255, %v4255
    %v4260 = vmul.f32 %v4256, %v4256
    %4261 = vadd.xlane.f32.xlu0 %v4257
    %v4262 = vpop.xlane.xlu0 %4261
    %4263 = vadd.xlane.f32.xlu0 %v4258
    %v4264 = vpop.xlane.xlu0 %4263
    %4265 = vadd.xlane.f32.xlu0 %v4259
    %v4266 = vpop.xlane.xlu0 %4265
    %4267 = vadd.xlane.f32.xlu0 %v4260
    %v4268 = vpop.xlane.xlu0 %4267
    %v4269 = vmul.f32 %v4262, %v119
    %v4270 = vmul.f32 %v4264, %v119
    %v4271 = vmul.f32 %v4266, %v119
    %v4272 = vmul.f32 %v4268, %v119
    %v4273 = vadd.f32 %v4269, 1e-12
    %v4274 = vadd.f32 %v4270, 1e-12
    %v4275 = vadd.f32 %v4271, 1e-12
    %v4276 = vadd.f32 %v4272, 1e-12
    %v4277 = vrsqrt.pop %v4273
    %v4278 = vrsqrt.pop %v4274
    %v4279 = vrsqrt.pop %v4275
    %v4280 = vrsqrt.pop %v4276
    %v4281 = vmul.f32 %v4253, %v4277
    %v4282 = vmul.f32 %v4254, %v4278
    %v4283 = vmul.f32 %v4255, %v4279
    %v4284 = vmul.f32 %v4256, %v4280
    %v4286 = vlaneseq
    %v4287 = vshrl.u32 %v4286, 7
    %v4288 = vsub.s32 0, %v4287
    %v4289 = vrot.slane %v4238, %v4288
    %v4291 = vmul.f32 %v4281, %v4289
    %v4292 = vmul.f32 %v4282, %v4289
    %v4293 = vmul.f32 %v4283, %v4289
    %v4294 = vmul.f32 %v4284, %v4289
    %v4296 = vlaneseq
    %v4297 = vshrl.u32 %v4296, 7
    %v4298 = vsub.s32 0, %v4297
    %v4299 = vrot.slane %v4240, %v4298
    %v4301 = vadd.f32 %v4291, %v4299
    %v4302 = vadd.f32 %v4292, %v4299
    %v4303 = vadd.f32 %v4293, %v4299
    %v4304 = vadd.f32 %v4294, %v4299
    %v4305 = vld [vmem:[%s2] sm:$0xff]
    %v4306 = vld [vmem:[%s2 + $0x8] sm:$0xff]
    %v4307 = vpack.c.bf16 %v4306, %v4305
    %v4308 = vpack.c.bf16 %v4302, %v4301
    %v4309 = vpack.c.bf16 %v4304, %v4303
    %v4311 = vsel %vm372, %v4307, 0
    %4313 = vmatprep.subr.bf16.mxu0 0
    %4314 = vmatpush1.bf16.msra.mxu0 %v4308
    %4315 = vmatprep.subr.bf16.mxu0 0
    %4316 = vmatpush1.bf16.msra.mxu0 %v4309
    %4317 = vmatprep.subr.bf16.mxu0 0
    %4318 = vmatpush1.bf16.msra.mxu0 0
    %4319 = vmatprep.subr.bf16.mxu0 0
    %4320 = vmatpush1.bf16.msra.mxu0 0
    %4321 = vmatprep.subr.bf16.mxu0 0
    %4322 = vmatpush1.bf16.msra.mxu0 0
    %4323 = vmatprep.subr.bf16.mxu0 0
    %4324 = vmatpush1.bf16.msra.mxu0 0
    %4325 = vmatprep.subr.bf16.mxu0 0
    %4326 = vmatpush1.bf16.msra.mxu0 0
    %4327 = vmatprep.subr.bf16.mxu0 0
    %4328 = vmatpush1.bf16.msra.mxu0 0
    %4329 = vmatprep.subr.bf16.mxu0 0
    %4330 = vmatpush1.bf16.msra.mxu0 0
    %4331 = vmatprep.subr.bf16.mxu0 0
    %4332 = vmatpush1.bf16.msra.mxu0 0
    %4333 = vmatprep.subr.bf16.mxu0 0
    %4334 = vmatpush1.bf16.msra.mxu0 0
    %4335 = vmatprep.subr.bf16.mxu0 0
    %4336 = vmatpush1.bf16.msra.mxu0 0
    %4337 = vmatprep.subr.bf16.mxu0 0
    %4338 = vmatpush1.bf16.msra.mxu0 0
    %4339 = vmatprep.subr.bf16.mxu0 0
    %4340 = vmatpush1.bf16.msra.mxu0 0
    %4341 = vmatprep.subr.bf16.mxu0 0
    %4342 = vmatpush1.bf16.msra.mxu0 0
    %4343 = vmatprep.subr.bf16.mxu0 0
    %4344 = vmatpush1.bf16.msra.mxu0 0
    %4345 = vmatprep.mubr.bf16.mxu0 0
    %4346 = vmatmul.mubr.bf16.gmra.mrb[0].mxu0 %v4311
    %v4347 = vpop.f32.mrb[0].mxu0
    %v4348 = vadd.f32 0.0, %v4347
    %v4349 = vpop.f32.mrb[0].mxu0
    %v4350 = vpop.f32.mrb[0].mxu0
    %v4351 = vadd.f32 0.0, %v4350
    %v4352 = vpop.f32.mrb[0].mxu0
    %4353 = vdwg.mxu0
    %4354 = vst [vmem:[#allocation8] sm:$0xff] %v4348
    %4355 = vst [vmem:[#allocation8 + $0x8] sm:$0xff] %v4351
    %v4356 = vld [vmem:[%s3] sm:$0xff]
    %v4357 = vld [vmem:[%s3 + $0x8] sm:$0xff]
    %vm4358 = vcmp.ge.f32.partialorder %v4356, 0.5
    %vm4359 = vcmp.ge.f32.partialorder %v4357, 0.5
    %v4360 = vsel %vm4358, 1, 0
    %v4361 = vsel %vm4359, 1, 0
    %v4362 = vcvt.s32.f32 %v4360
    %v4363 = vcvt.s32.f32 %v4361
    %v4364 = vmul.f32 %v4348, %v4362
    %v4365 = vmul.f32 %v4351, %v4363
    %v4366 = vmul.f32 %v4364, 2.0
    %v4367 = vmul.f32 %v4365, 2.0
    %4368 = vst [vmem:[#allocation9] sm:$0xff] %v4366
    %4369 = vst [vmem:[#allocation9 + $0x8] sm:$0xff] %v4367
    // Predicated region
    $region86: #{bert_embedding_forward.1} parent=1 // pred_check
      _
    $region87: #{bert_embedding_forward.1} parent=1 // pred_check_branch
      %4371 = sbr.rel (0) target = $region89
    $region88: #{bert_embedding_forward.1} parent=1 // pred_region
      %s4373 = ssub.s32 256, 256
      %4374 = vsyncadd [#allocation4], %s4373
      %s4375 = sshll.u32 [#allocation8], 4
      %s4376 = int_to_ptr.vmem [resolvable:$true] %s4375
      %4381 = dma.vmem_to_hbm [thread:$0]  %s4376, 256, %s18, [#allocation4], 128, 128, 8
    $region89: #{bert_embedding_forward.1} parent=1 // pred_fallthru
      _
    // Predicated region
    $region90: #{bert_embedding_forward.1} parent=1 // pred_check
      _
    $region91: #{bert_embedding_forward.1} parent=1 // pred_check_branch
      %4383 = sbr.rel (0) target = $region93
    $region92: #{bert_embedding_forward.1} parent=1 // pred_region
      %s4385 = ssub.s32 256, 256
      %4386 = vsyncadd [#allocation10], %s4385
      %s4387 = sshll.u32 [#allocation9], 4
      %s4388 = int_to_ptr.vmem [resolvable:$true] %s4387
      %4393 = dma.vmem_to_hbm [thread:$0]  %s4388, 256, %s19, [#allocation10], 128, 128, 8
    $region93: #{bert_embedding_forward.1} parent=1 // pred_fallthru
      _
    // Predicated region
    $region94: #{bert_embedding_forward.1} parent=1 // pred_check
      _
    $region95: #{bert_embedding_forward.1} parent=1 // pred_check_branch
      %4395 = sbr.rel (0) target = $region97
    $region96: #{bert_embedding_forward.1} parent=1 // pred_region
      %4396 = dma.done [#allocation4], 256
    $region97: #{bert_embedding_forward.1} parent=1 // pred_fallthru
      _
    // Predicated region
    $region98: #{bert_embedding_forward.1} parent=1 // pred_check
      _
    $region99: #{bert_embedding_forward.1} parent=1 // pred_check_branch
      %4398 = sbr.rel (0) target = $region101
    $region100: #{bert_embedding_forward.1} parent=1 // pred_region
      %4399 = dma.done [#allocation10], 256
    $region101: #{bert_embedding_forward.1} parent=1 // pred_fallthru
      _
    %4400 = vsyncpa [#allocation3], 1
    %4401 = vsyncpa [#allocation6], 1
    %4402 = vsyncpa [#allocation4], 1
    %4403 = vsyncpa [#allocation10], 1

</llo_original>
